<compile_context>
chip_gen: v7x
topology: tpu7x:2x2x1
jax: 0.10.0
libtpu: 0.0.40
codegen_flags: <defaults>
</compile_context>

<pallas_src>
import functools

import numpy as np
import jax
import jax.numpy as jnp
from jax import lax
from jax.experimental import pallas as pl
from jax.experimental.pallas import tpu as pltpu


# -----------------------------------------------------------------------------
# Fused kernel: claim GRU + batched sentence GRU + entailment head.
# All weights are pre-transposed on the host so matmuls are x @ W.
# -----------------------------------------------------------------------------
def han_fused_kernel(claim_ref, sents_ref,
                     wih_c_ref, whh_c_ref, bih_c_ref, bhh_c_ref,
                     wih_s_ref, whh_s_ref, bih_s_ref, bhh_s_ref,
                     jw_ref, aew_ref, aeb_ref, fw_ref, fb_ref,
                     out_ref, *, N):
    f32 = jnp.float32
    H = whh_c_ref.shape[0]
    T_c = claim_ref.shape[0]
    T_s = sents_ref.shape[0] // N

    def gru_last(gi_steps, whh, bhh):
        """gi_steps: per-timestep precomputed input projections, each (rows, 3H)."""
        rows = gi_steps[0].shape[0]
        h = jnp.zeros((rows, H), dtype=f32)
        # Static full unroll over the small, static time dimension: gives the
        # scheduler cross-iteration visibility so the (rows,H)x(H,3H) MXU
        # recurrence matmuls overlap with EUP sigmoid/tanh and VPU blends.
        for gi in gi_steps:
            gh = jnp.dot(h, whh, preferred_element_type=f32) + bhh        # (rows, 3H)
            r = jax.nn.sigmoid(gi[:, 0:H] + gh[:, 0:H])
            z = jax.nn.sigmoid(gi[:, H:2 * H] + gh[:, H:2 * H])
            n = jnp.tanh(gi[:, 2 * H:3 * H] + r * gh[:, 2 * H:3 * H])
            h = (1.0 - z) * n + z * h
        return h

    # ---- claim GRU: input projection hoisted out of the recurrence ----
    xc = (jnp.dot(claim_ref[...], wih_c_ref[...], preferred_element_type=f32)
          + bih_c_ref[...])                                               # (T_c, 3H)
    claim_h = gru_last([xc[t:t + 1] for t in range(T_c)],
                       whh_c_ref[...], bhh_c_ref[...])                    # (1, H)

    # ---- sentence GRU: all N sequences batched into one recurrence ----
    # sents_ref is time-major (T_s*N, E): rows t*N:(t+1)*N are timestep t.
    xs = (jnp.dot(sents_ref[...], wih_s_ref[...], preferred_element_type=f32)
          + bih_s_ref[...])                                               # (T_s*N, 3H)
    sents_h = gru_last([xs[t * N:(t + 1) * N] for t in range(T_s)],
                       whh_s_ref[...], bhh_s_ref[...])                    # (N, H)

    # ---- head ----
    # The reference reads joint_hidden[i] before writing it (it is still 0),
    # so the zero-multiplied joint terms vanish and every row of joint_hidden
    # equals tanh(claim @ Wj[:, :H].T + |claim| @ Wj[:, 3H:].T).
    # jw_ref is the packed (2H, H) matrix [Wj[:, :H].T ; Wj[:, 3H:].T].
    x2 = jnp.concatenate([claim_h, jnp.abs(claim_h)], axis=1)             # (1, 2H)
    joint_row = jnp.tanh(jnp.dot(x2, jw_ref[...],
                                 preferred_element_type=f32))             # (1, H)

    # entailment attention: softmax over the sentence axis (dim=0)
    e_row = jnp.tanh(jnp.dot(joint_row, aew_ref[...],
                             preferred_element_type=f32) + aeb_ref[...])  # (1, 1)
    e = jnp.broadcast_to(e_row, (N, 1))
    e = e - jnp.max(e, axis=0, keepdims=True)
    pe = jnp.exp(e)
    entail = pe * pl.reciprocal(jnp.sum(pe, axis=0, keepdims=True),
                                approx=True)                              # (N, 1)

    # nli_hidden = entail.T @ sents_hidden  ==  sum_i entail_i * sents_i
    nli = jnp.sum(entail * sents_h, axis=0, keepdims=True)                # (1, H)
    out_ref[...] = jax.nn.sigmoid(
        jnp.dot(nli, fw_ref[...], preferred_element_type=f32) + fb_ref[...])


def han_forward(params, claim, sentences):
    """claim: (T_c, E); sentences: (N, T_s, E) -> (1, output_size)."""
    N, T_s, E = sentences.shape
    H = params["claim_w_hh"].shape[1]
    O = params["final_w"].shape[0]
    H3 = 3 * H

    jw = params["joint_w"].T                                    # (4H, H)
    args = (
        claim.astype(jnp.float32),                              # (T_c, E)
        jnp.transpose(sentences, (1, 0, 2)).reshape(T_s * N, E)
            .astype(jnp.float32),                               # time-major (T_s*N, E)
        params["claim_w_ih"].T,                                 # (E, 3H)  [r|z|n]
        params["claim_w_hh"].T,                                 # (H, 3H)
        params["claim_b_ih"].reshape(1, H3),
        params["claim_b_hh"].reshape(1, H3),
        params["sent_w_ih"].T,                                  # (E, 3H)
        params["sent_w_hh"].T,                                  # (H, 3H)
        params["sent_b_ih"].reshape(1, H3),
        params["sent_b_hh"].reshape(1, H3),
        jnp.concatenate([jw[0:H], jw[3 * H:4 * H]], axis=0),    # (2H, H) packed joint
        params["att_entail_w"].T,                               # (H, 1)
        params["att_entail_b"].reshape(1, 1),                   # (1, 1)
        params["final_w"].T,                                    # (H, O)
        params["final_b"].reshape(1, O),                        # (1, O)
    )
    vmem = pl.BlockSpec(memory_space=pltpu.MemorySpace.VMEM)
    return pl.pallas_call(
        functools.partial(han_fused_kernel, N=N),
        out_shape=jax.ShapeDtypeStruct((1, O), jnp.float32),
        in_specs=[vmem] * len(args),
        out_specs=vmem,
    )(*args)


# -----------------------------------------------------------------------------
# Deterministic parameter initialization (PyTorch parameter shapes).
# Parameters that exist in the module but cannot influence the output
# (gate_*, att_c, att_s, extension) are still created, just not fed to the kernel.
# -----------------------------------------------------------------------------
def init_params(key, E, H, O):
    ks = jax.random.split(key, 19)
    rn = lambda k, s: 0.1 * jax.random.normal(k, s, dtype=jnp.float32)
    return dict(
        claim_w_ih=rn(ks[0], (3 * H, E)), claim_w_hh=rn(ks[1], (3 * H, H)),
        claim_b_ih=rn(ks[2], (3 * H,)), claim_b_hh=rn(ks[3], (3 * H,)),
        sent_w_ih=rn(ks[4], (3 * H, E)), sent_w_hh=rn(ks[5], (3 * H, H)),
        sent_b_ih=rn(ks[6], (3 * H,)), sent_b_hh=rn(ks[7], (3 * H,)),
        gate_s_w=rn(ks[8], (1, H)), gate_c_w=rn(ks[9], (1, H)),
        att_c_w=rn(ks[10], (H, H)), att_s_w=rn(ks[11], (1, H)),
        ext_w=rn(ks[12], (H, 2 * H)), ext_b=rn(ks[13], (H,)),
        joint_w=rn(ks[14], (H, 4 * H)),
        att_entail_w=rn(ks[15], (1, H)), att_entail_b=rn(ks[16], (1,)),
        final_w=rn(ks[17], (O, H)), final_b=rn(ks[18], (O,)),
    )


# -----------------------------------------------------------------------------
# Pure-JAX reference mirroring the FULL PyTorch semantics (including the dead
# extension/coherence compute and the joint_hidden read-before-write quirk),
# used to verify that the dead-code-free kernel produces the same output.
# -----------------------------------------------------------------------------
def _gru_ref(x, w_ih, w_hh, b_ih, b_hh):
    H = w_hh.shape[1]

    def step(h, x_t):
        gi = x_t @ w_ih.T + b_ih
        gh = h @ w_hh.T + b_hh
        r = jax.nn.sigmoid(gi[:H] + gh[:H])
        z = jax.nn.sigmoid(gi[H:2 * H] + gh[H:2 * H])
        n = jnp.tanh(gi[2 * H:] + r * gh[2 * H:])
        return (1 - z) * n + z * h, None

    h, _ = lax.scan(step, jnp.zeros((H,), jnp.float32), x)
    return h


def han_ref(p, claim, sentences):
    claim_h = _gru_ref(claim, p["claim_w_ih"], p["claim_w_hh"],
                       p["claim_b_ih"], p["claim_b_hh"])[None]            # (1, H)
    sents_h = jax.vmap(lambda s: _gru_ref(s, p["sent_w_ih"], p["sent_w_hh"],
                                          p["sent_b_ih"], p["sent_b_hh"]))(sentences)
    g = jax.nn.sigmoid(sents_h @ p["gate_s_w"].T + claim_h @ p["gate_c_w"].T)
    gated = g * sents_h + (1 - g) * claim_h
    scores = (gated @ p["att_c_w"].T) @ gated.T + gated @ p["att_s_w"].T
    coh = jax.nn.softmax(scores, axis=1)
    coh_sents = coh @ gated
    _ = jnp.tanh(jnp.concatenate([sents_h, coh_sents], 1) @ p["ext_w"].T + p["ext_b"])
    zeros = jnp.zeros_like(claim_h)
    tmp = jnp.concatenate([claim_h, zeros, claim_h * zeros, jnp.abs(claim_h - zeros)], 1)
    joint_row = jnp.tanh(tmp @ p["joint_w"].T)
    joint = jnp.broadcast_to(joint_row, sents_h.shape)
    entail = jax.nn.softmax(jnp.tanh(joint @ p["att_entail_w"].T + p["att_entail_b"]),
                            axis=0)
    nli = entail.T @ sents_h
    return jax.nn.sigmoid(nli @ p["final_w"].T + p["final_b"])


if __name__ == "__main__":
    E, H, O = 16, 32, 4       # embedding_size, hidden_size, output_size
    N, T_c, T_s = 6, 10, 8    # num sentences, claim length, sentence length

    key = jax.random.PRNGKey(0)
    kp, kc, ks = jax.random.split(key, 3)
    params = init_params(kp, E, H, O)
    claim = jax.random.normal(kc, (T_c, E), dtype=jnp.float32)
    sentences = jax.random.normal(ks, (N, T_s, E), dtype=jnp.float32)

    out = jax.jit(han_forward)(params, claim, sentences)
    out = jax.block_until_ready(out)
    assert out.shape == (1, O), out.shape

    ref = jax.block_until_ready(han_ref(params, claim, sentences))
    np.testing.assert_allclose(np.asarray(out), np.asarray(ref), rtol=2e-2, atol=2e-2)

    print("KERNEL_OK")
</pallas_src>

<mosaic_0001>
module attributes {stable_mosaic.version = 11 : i64} {
  func.func @han_fused_kernel(%arg0: memref<10x16xf32, #tpu.memory_space<vmem>>, %arg1: memref<48x16xf32, #tpu.memory_space<vmem>>, %arg2: memref<16x96xf32, #tpu.memory_space<vmem>>, %arg3: memref<32x96xf32, #tpu.memory_space<vmem>>, %arg4: memref<1x96xf32, #tpu.memory_space<vmem>>, %arg5: memref<1x96xf32, #tpu.memory_space<vmem>>, %arg6: memref<16x96xf32, #tpu.memory_space<vmem>>, %arg7: memref<32x96xf32, #tpu.memory_space<vmem>>, %arg8: memref<1x96xf32, #tpu.memory_space<vmem>>, %arg9: memref<1x96xf32, #tpu.memory_space<vmem>>, %arg10: memref<64x32xf32, #tpu.memory_space<vmem>>, %arg11: memref<32x1xf32, #tpu.memory_space<vmem>>, %arg12: memref<1x1xf32, #tpu.memory_space<vmem>>, %arg13: memref<32x4xf32, #tpu.memory_space<vmem>>, %arg14: memref<1x4xf32, #tpu.memory_space<vmem>>, %arg15: memref<1x4xf32, #tpu.memory_space<vmem>>) attributes {dimension_semantics = [], scalar_prefetch = 0 : i64, scratch_operands = 0 : i64, tpu.core_type = #tpu.core_type<tc>} {
    %c0 = arith.constant 0 : index
    %c0_0 = arith.constant 0 : index
    %0 = vector.load %arg0[%c0, %c0_0] : memref<10x16xf32, #tpu.memory_space<vmem>>, vector<10x16xf32>
    %c0_1 = arith.constant 0 : index
    %c0_2 = arith.constant 0 : index
    %1 = vector.load %arg2[%c0_1, %c0_2] : memref<16x96xf32, #tpu.memory_space<vmem>>, vector<16x96xf32>
    %cst = arith.constant dense<0.000000e+00> : vector<10x96xf32>
    %2 = tpu.matmul %0, %1, %cst {dimension_numbers = #tpu.dot_dimension_numbers<[1], [0], [0], [1], [0, 0, 1, 1], [], []>} : vector<10x16xf32>, vector<16x96xf32>, vector<10x96xf32> -> vector<10x96xf32>
    %c0_3 = arith.constant 0 : index
    %c0_4 = arith.constant 0 : index
    %3 = vector.load %arg4[%c0_3, %c0_4] : memref<1x96xf32, #tpu.memory_space<vmem>>, vector<1x96xf32>
    %4 = vector.broadcast %3 : vector<1x96xf32> to vector<10x96xf32>
    %5 = arith.addf %2, %4 : vector<10x96xf32>
    %6 = vector.extract_strided_slice %5 {offsets = [0, 0], sizes = [1, 96], strides = [1, 1]} : vector<10x96xf32> to vector<1x96xf32>
    %7 = vector.extract_strided_slice %5 {offsets = [1, 0], sizes = [1, 96], strides = [1, 1]} : vector<10x96xf32> to vector<1x96xf32>
    %8 = vector.extract_strided_slice %5 {offsets = [2, 0], sizes = [1, 96], strides = [1, 1]} : vector<10x96xf32> to vector<1x96xf32>
    %9 = vector.extract_strided_slice %5 {offsets = [3, 0], sizes = [1, 96], strides = [1, 1]} : vector<10x96xf32> to vector<1x96xf32>
    %10 = vector.extract_strided_slice %5 {offsets = [4, 0], sizes = [1, 96], strides = [1, 1]} : vector<10x96xf32> to vector<1x96xf32>
    %11 = vector.extract_strided_slice %5 {offsets = [5, 0], sizes = [1, 96], strides = [1, 1]} : vector<10x96xf32> to vector<1x96xf32>
    %12 = vector.extract_strided_slice %5 {offsets = [6, 0], sizes = [1, 96], strides = [1, 1]} : vector<10x96xf32> to vector<1x96xf32>
    %13 = vector.extract_strided_slice %5 {offsets = [7, 0], sizes = [1, 96], strides = [1, 1]} : vector<10x96xf32> to vector<1x96xf32>
    %14 = vector.extract_strided_slice %5 {offsets = [8, 0], sizes = [1, 96], strides = [1, 1]} : vector<10x96xf32> to vector<1x96xf32>
    %15 = vector.extract_strided_slice %5 {offsets = [9, 0], sizes = [1, 96], strides = [1, 1]} : vector<10x96xf32> to vector<1x96xf32>
    %c0_5 = arith.constant 0 : index
    %c0_6 = arith.constant 0 : index
    %16 = vector.load %arg3[%c0_5, %c0_6] : memref<32x96xf32, #tpu.memory_space<vmem>>, vector<32x96xf32>
    %c0_7 = arith.constant 0 : index
    %c0_8 = arith.constant 0 : index
    %17 = vector.load %arg5[%c0_7, %c0_8] : memref<1x96xf32, #tpu.memory_space<vmem>>, vector<1x96xf32>
    %cst_9 = arith.constant 0.000000e+00 : f32
    %18 = vector.broadcast %cst_9 : f32 to vector<1x32xf32>
    %cst_10 = arith.constant dense<0.000000e+00> : vector<1x96xf32>
    %19 = tpu.matmul %18, %16, %cst_10 {dimension_numbers = #tpu.dot_dimension_numbers<[1], [0], [0], [1], [0, 0, 1, 1], [], []>} : vector<1x32xf32>, vector<32x96xf32>, vector<1x96xf32> -> vector<1x96xf32>
    %20 = arith.addf %19, %17 : vector<1x96xf32>
    %21 = vector.extract_strided_slice %6 {offsets = [0, 0], sizes = [1, 32], strides = [1, 1]} : vector<1x96xf32> to vector<1x32xf32>
    %22 = vector.extract_strided_slice %20 {offsets = [0, 0], sizes = [1, 32], strides = [1, 1]} : vector<1x96xf32> to vector<1x32xf32>
    %23 = arith.addf %21, %22 : vector<1x32xf32>
    %24 = arith.negf %23 : vector<1x32xf32>
    %25 = math.exp %24 : vector<1x32xf32>
    %cst_11 = arith.constant 1.000000e+00 : f32
    %26 = vector.broadcast %cst_11 : f32 to vector<1x32xf32>
    %27 = arith.addf %26, %25 : vector<1x32xf32>
    %28 = arith.divf %26, %27 : vector<1x32xf32>
    %29 = vector.extract_strided_slice %6 {offsets = [0, 32], sizes = [1, 32], strides = [1, 1]} : vector<1x96xf32> to vector<1x32xf32>
    %30 = vector.extract_strided_slice %20 {offsets = [0, 32], sizes = [1, 32], strides = [1, 1]} : vector<1x96xf32> to vector<1x32xf32>
    %31 = arith.addf %29, %30 : vector<1x32xf32>
    %32 = arith.negf %31 : vector<1x32xf32>
    %33 = math.exp %32 : vector<1x32xf32>
    %cst_12 = arith.constant 1.000000e+00 : f32
    %34 = vector.broadcast %cst_12 : f32 to vector<1x32xf32>
    %35 = arith.addf %34, %33 : vector<1x32xf32>
    %36 = arith.divf %34, %35 : vector<1x32xf32>
    %37 = vector.extract_strided_slice %6 {offsets = [0, 64], sizes = [1, 32], strides = [1, 1]} : vector<1x96xf32> to vector<1x32xf32>
    %38 = vector.extract_strided_slice %20 {offsets = [0, 64], sizes = [1, 32], strides = [1, 1]} : vector<1x96xf32> to vector<1x32xf32>
    %39 = arith.mulf %28, %38 : vector<1x32xf32>
    %40 = arith.addf %37, %39 : vector<1x32xf32>
    %41 = math.tanh %40 : vector<1x32xf32>
    %cst_13 = arith.constant 1.000000e+00 : f32
    %42 = vector.broadcast %cst_13 : f32 to vector<1x32xf32>
    %43 = arith.subf %42, %36 : vector<1x32xf32>
    %44 = arith.mulf %43, %41 : vector<1x32xf32>
    %45 = arith.mulf %36, %18 : vector<1x32xf32>
    %46 = arith.addf %44, %45 : vector<1x32xf32>
    %cst_14 = arith.constant dense<0.000000e+00> : vector<1x96xf32>
    %47 = tpu.matmul %46, %16, %cst_14 {dimension_numbers = #tpu.dot_dimension_numbers<[1], [0], [0], [1], [0, 0, 1, 1], [], []>} : vector<1x32xf32>, vector<32x96xf32>, vector<1x96xf32> -> vector<1x96xf32>
    %48 = arith.addf %47, %17 : vector<1x96xf32>
    %49 = vector.extract_strided_slice %7 {offsets = [0, 0], sizes = [1, 32], strides = [1, 1]} : vector<1x96xf32> to vector<1x32xf32>
    %50 = vector.extract_strided_slice %48 {offsets = [0, 0], sizes = [1, 32], strides = [1, 1]} : vector<1x96xf32> to vector<1x32xf32>
    %51 = arith.addf %49, %50 : vector<1x32xf32>
    %52 = arith.negf %51 : vector<1x32xf32>
    %53 = math.exp %52 : vector<1x32xf32>
    %cst_15 = arith.constant 1.000000e+00 : f32
    %54 = vector.broadcast %cst_15 : f32 to vector<1x32xf32>
    %55 = arith.addf %54, %53 : vector<1x32xf32>
    %56 = arith.divf %54, %55 : vector<1x32xf32>
    %57 = vector.extract_strided_slice %7 {offsets = [0, 32], sizes = [1, 32], strides = [1, 1]} : vector<1x96xf32> to vector<1x32xf32>
    %58 = vector.extract_strided_slice %48 {offsets = [0, 32], sizes = [1, 32], strides = [1, 1]} : vector<1x96xf32> to vector<1x32xf32>
    %59 = arith.addf %57, %58 : vector<1x32xf32>
    %60 = arith.negf %59 : vector<1x32xf32>
    %61 = math.exp %60 : vector<1x32xf32>
    %cst_16 = arith.constant 1.000000e+00 : f32
    %62 = vector.broadcast %cst_16 : f32 to vector<1x32xf32>
    %63 = arith.addf %62, %61 : vector<1x32xf32>
    %64 = arith.divf %62, %63 : vector<1x32xf32>
    %65 = vector.extract_strided_slice %7 {offsets = [0, 64], sizes = [1, 32], strides = [1, 1]} : vector<1x96xf32> to vector<1x32xf32>
    %66 = vector.extract_strided_slice %48 {offsets = [0, 64], sizes = [1, 32], strides = [1, 1]} : vector<1x96xf32> to vector<1x32xf32>
    %67 = arith.mulf %56, %66 : vector<1x32xf32>
    %68 = arith.addf %65, %67 : vector<1x32xf32>
    %69 = math.tanh %68 : vector<1x32xf32>
    %cst_17 = arith.constant 1.000000e+00 : f32
    %70 = vector.broadcast %cst_17 : f32 to vector<1x32xf32>
    %71 = arith.subf %70, %64 : vector<1x32xf32>
    %72 = arith.mulf %71, %69 : vector<1x32xf32>
    %73 = arith.mulf %64, %46 : vector<1x32xf32>
    %74 = arith.addf %72, %73 : vector<1x32xf32>
    %cst_18 = arith.constant dense<0.000000e+00> : vector<1x96xf32>
    %75 = tpu.matmul %74, %16, %cst_18 {dimension_numbers = #tpu.dot_dimension_numbers<[1], [0], [0], [1], [0, 0, 1, 1], [], []>} : vector<1x32xf32>, vector<32x96xf32>, vector<1x96xf32> -> vector<1x96xf32>
    %76 = arith.addf %75, %17 : vector<1x96xf32>
    %77 = vector.extract_strided_slice %8 {offsets = [0, 0], sizes = [1, 32], strides = [1, 1]} : vector<1x96xf32> to vector<1x32xf32>
    %78 = vector.extract_strided_slice %76 {offsets = [0, 0], sizes = [1, 32], strides = [1, 1]} : vector<1x96xf32> to vector<1x32xf32>
    %79 = arith.addf %77, %78 : vector<1x32xf32>
    %80 = arith.negf %79 : vector<1x32xf32>
    %81 = math.exp %80 : vector<1x32xf32>
    %cst_19 = arith.constant 1.000000e+00 : f32
    %82 = vector.broadcast %cst_19 : f32 to vector<1x32xf32>
    %83 = arith.addf %82, %81 : vector<1x32xf32>
    %84 = arith.divf %82, %83 : vector<1x32xf32>
    %85 = vector.extract_strided_slice %8 {offsets = [0, 32], sizes = [1, 32], strides = [1, 1]} : vector<1x96xf32> to vector<1x32xf32>
    %86 = vector.extract_strided_slice %76 {offsets = [0, 32], sizes = [1, 32], strides = [1, 1]} : vector<1x96xf32> to vector<1x32xf32>
    %87 = arith.addf %85, %86 : vector<1x32xf32>
    %88 = arith.negf %87 : vector<1x32xf32>
    %89 = math.exp %88 : vector<1x32xf32>
    %cst_20 = arith.constant 1.000000e+00 : f32
    %90 = vector.broadcast %cst_20 : f32 to vector<1x32xf32>
    %91 = arith.addf %90, %89 : vector<1x32xf32>
    %92 = arith.divf %90, %91 : vector<1x32xf32>
    %93 = vector.extract_strided_slice %8 {offsets = [0, 64], sizes = [1, 32], strides = [1, 1]} : vector<1x96xf32> to vector<1x32xf32>
    %94 = vector.extract_strided_slice %76 {offsets = [0, 64], sizes = [1, 32], strides = [1, 1]} : vector<1x96xf32> to vector<1x32xf32>
    %95 = arith.mulf %84, %94 : vector<1x32xf32>
    %96 = arith.addf %93, %95 : vector<1x32xf32>
    %97 = math.tanh %96 : vector<1x32xf32>
    %cst_21 = arith.constant 1.000000e+00 : f32
    %98 = vector.broadcast %cst_21 : f32 to vector<1x32xf32>
    %99 = arith.subf %98, %92 : vector<1x32xf32>
    %100 = arith.mulf %99, %97 : vector<1x32xf32>
    %101 = arith.mulf %92, %74 : vector<1x32xf32>
    %102 = arith.addf %100, %101 : vector<1x32xf32>
    %cst_22 = arith.constant dense<0.000000e+00> : vector<1x96xf32>
    %103 = tpu.matmul %102, %16, %cst_22 {dimension_numbers = #tpu.dot_dimension_numbers<[1], [0], [0], [1], [0, 0, 1, 1], [], []>} : vector<1x32xf32>, vector<32x96xf32>, vector<1x96xf32> -> vector<1x96xf32>
    %104 = arith.addf %103, %17 : vector<1x96xf32>
    %105 = vector.extract_strided_slice %9 {offsets = [0, 0], sizes = [1, 32], strides = [1, 1]} : vector<1x96xf32> to vector<1x32xf32>
    %106 = vector.extract_strided_slice %104 {offsets = [0, 0], sizes = [1, 32], strides = [1, 1]} : vector<1x96xf32> to vector<1x32xf32>
    %107 = arith.addf %105, %106 : vector<1x32xf32>
    %108 = arith.negf %107 : vector<1x32xf32>
    %109 = math.exp %108 : vector<1x32xf32>
    %cst_23 = arith.constant 1.000000e+00 : f32
    %110 = vector.broadcast %cst_23 : f32 to vector<1x32xf32>
    %111 = arith.addf %110, %109 : vector<1x32xf32>
    %112 = arith.divf %110, %111 : vector<1x32xf32>
    %113 = vector.extract_strided_slice %9 {offsets = [0, 32], sizes = [1, 32], strides = [1, 1]} : vector<1x96xf32> to vector<1x32xf32>
    %114 = vector.extract_strided_slice %104 {offsets = [0, 32], sizes = [1, 32], strides = [1, 1]} : vector<1x96xf32> to vector<1x32xf32>
    %115 = arith.addf %113, %114 : vector<1x32xf32>
    %116 = arith.negf %115 : vector<1x32xf32>
    %117 = math.exp %116 : vector<1x32xf32>
    %cst_24 = arith.constant 1.000000e+00 : f32
    %118 = vector.broadcast %cst_24 : f32 to vector<1x32xf32>
    %119 = arith.addf %118, %117 : vector<1x32xf32>
    %120 = arith.divf %118, %119 : vector<1x32xf32>
    %121 = vector.extract_strided_slice %9 {offsets = [0, 64], sizes = [1, 32], strides = [1, 1]} : vector<1x96xf32> to vector<1x32xf32>
    %122 = vector.extract_strided_slice %104 {offsets = [0, 64], sizes = [1, 32], strides = [1, 1]} : vector<1x96xf32> to vector<1x32xf32>
    %123 = arith.mulf %112, %122 : vector<1x32xf32>
    %124 = arith.addf %121, %123 : vector<1x32xf32>
    %125 = math.tanh %124 : vector<1x32xf32>
    %cst_25 = arith.constant 1.000000e+00 : f32
    %126 = vector.broadcast %cst_25 : f32 to vector<1x32xf32>
    %127 = arith.subf %126, %120 : vector<1x32xf32>
    %128 = arith.mulf %127, %125 : vector<1x32xf32>
    %129 = arith.mulf %120, %102 : vector<1x32xf32>
    %130 = arith.addf %128, %129 : vector<1x32xf32>
    %cst_26 = arith.constant dense<0.000000e+00> : vector<1x96xf32>
    %131 = tpu.matmul %130, %16, %cst_26 {dimension_numbers = #tpu.dot_dimension_numbers<[1], [0], [0], [1], [0, 0, 1, 1], [], []>} : vector<1x32xf32>, vector<32x96xf32>, vector<1x96xf32> -> vector<1x96xf32>
    %132 = arith.addf %131, %17 : vector<1x96xf32>
    %133 = vector.extract_strided_slice %10 {offsets = [0, 0], sizes = [1, 32], strides = [1, 1]} : vector<1x96xf32> to vector<1x32xf32>
    %134 = vector.extract_strided_slice %132 {offsets = [0, 0], sizes = [1, 32], strides = [1, 1]} : vector<1x96xf32> to vector<1x32xf32>
    %135 = arith.addf %133, %134 : vector<1x32xf32>
    %136 = arith.negf %135 : vector<1x32xf32>
    %137 = math.exp %136 : vector<1x32xf32>
    %cst_27 = arith.constant 1.000000e+00 : f32
    %138 = vector.broadcast %cst_27 : f32 to vector<1x32xf32>
    %139 = arith.addf %138, %137 : vector<1x32xf32>
    %140 = arith.divf %138, %139 : vector<1x32xf32>
    %141 = vector.extract_strided_slice %10 {offsets = [0, 32], sizes = [1, 32], strides = [1, 1]} : vector<1x96xf32> to vector<1x32xf32>
    %142 = vector.extract_strided_slice %132 {offsets = [0, 32], sizes = [1, 32], strides = [1, 1]} : vector<1x96xf32> to vector<1x32xf32>
    %143 = arith.addf %141, %142 : vector<1x32xf32>
    %144 = arith.negf %143 : vector<1x32xf32>
    %145 = math.exp %144 : vector<1x32xf32>
    %cst_28 = arith.constant 1.000000e+00 : f32
    %146 = vector.broadcast %cst_28 : f32 to vector<1x32xf32>
    %147 = arith.addf %146, %145 : vector<1x32xf32>
    %148 = arith.divf %146, %147 : vector<1x32xf32>
    %149 = vector.extract_strided_slice %10 {offsets = [0, 64], sizes = [1, 32], strides = [1, 1]} : vector<1x96xf32> to vector<1x32xf32>
    %150 = vector.extract_strided_slice %132 {offsets = [0, 64], sizes = [1, 32], strides = [1, 1]} : vector<1x96xf32> to vector<1x32xf32>
    %151 = arith.mulf %140, %150 : vector<1x32xf32>
    %152 = arith.addf %149, %151 : vector<1x32xf32>
    %153 = math.tanh %152 : vector<1x32xf32>
    %cst_29 = arith.constant 1.000000e+00 : f32
    %154 = vector.broadcast %cst_29 : f32 to vector<1x32xf32>
    %155 = arith.subf %154, %148 : vector<1x32xf32>
    %156 = arith.mulf %155, %153 : vector<1x32xf32>
    %157 = arith.mulf %148, %130 : vector<1x32xf32>
    %158 = arith.addf %156, %157 : vector<1x32xf32>
    %cst_30 = arith.constant dense<0.000000e+00> : vector<1x96xf32>
    %159 = tpu.matmul %158, %16, %cst_30 {dimension_numbers = #tpu.dot_dimension_numbers<[1], [0], [0], [1], [0, 0, 1, 1], [], []>} : vector<1x32xf32>, vector<32x96xf32>, vector<1x96xf32> -> vector<1x96xf32>
    %160 = arith.addf %159, %17 : vector<1x96xf32>
    %161 = vector.extract_strided_slice %11 {offsets = [0, 0], sizes = [1, 32], strides = [1, 1]} : vector<1x96xf32> to vector<1x32xf32>
    %162 = vector.extract_strided_slice %160 {offsets = [0, 0], sizes = [1, 32], strides = [1, 1]} : vector<1x96xf32> to vector<1x32xf32>
    %163 = arith.addf %161, %162 : vector<1x32xf32>
    %164 = arith.negf %163 : vector<1x32xf32>
    %165 = math.exp %164 : vector<1x32xf32>
    %cst_31 = arith.constant 1.000000e+00 : f32
    %166 = vector.broadcast %cst_31 : f32 to vector<1x32xf32>
    %167 = arith.addf %166, %165 : vector<1x32xf32>
    %168 = arith.divf %166, %167 : vector<1x32xf32>
    %169 = vector.extract_strided_slice %11 {offsets = [0, 32], sizes = [1, 32], strides = [1, 1]} : vector<1x96xf32> to vector<1x32xf32>
    %170 = vector.extract_strided_slice %160 {offsets = [0, 32], sizes = [1, 32], strides = [1, 1]} : vector<1x96xf32> to vector<1x32xf32>
    %171 = arith.addf %169, %170 : vector<1x32xf32>
    %172 = arith.negf %171 : vector<1x32xf32>
    %173 = math.exp %172 : vector<1x32xf32>
    %cst_32 = arith.constant 1.000000e+00 : f32
    %174 = vector.broadcast %cst_32 : f32 to vector<1x32xf32>
    %175 = arith.addf %174, %173 : vector<1x32xf32>
    %176 = arith.divf %174, %175 : vector<1x32xf32>
    %177 = vector.extract_strided_slice %11 {offsets = [0, 64], sizes = [1, 32], strides = [1, 1]} : vector<1x96xf32> to vector<1x32xf32>
    %178 = vector.extract_strided_slice %160 {offsets = [0, 64], sizes = [1, 32], strides = [1, 1]} : vector<1x96xf32> to vector<1x32xf32>
    %179 = arith.mulf %168, %178 : vector<1x32xf32>
    %180 = arith.addf %177, %179 : vector<1x32xf32>
    %181 = math.tanh %180 : vector<1x32xf32>
    %cst_33 = arith.constant 1.000000e+00 : f32
    %182 = vector.broadcast %cst_33 : f32 to vector<1x32xf32>
    %183 = arith.subf %182, %176 : vector<1x32xf32>
    %184 = arith.mulf %183, %181 : vector<1x32xf32>
    %185 = arith.mulf %176, %158 : vector<1x32xf32>
    %186 = arith.addf %184, %185 : vector<1x32xf32>
    %cst_34 = arith.constant dense<0.000000e+00> : vector<1x96xf32>
    %187 = tpu.matmul %186, %16, %cst_34 {dimension_numbers = #tpu.dot_dimension_numbers<[1], [0], [0], [1], [0, 0, 1, 1], [], []>} : vector<1x32xf32>, vector<32x96xf32>, vector<1x96xf32> -> vector<1x96xf32>
    %188 = arith.addf %187, %17 : vector<1x96xf32>
    %189 = vector.extract_strided_slice %12 {offsets = [0, 0], sizes = [1, 32], strides = [1, 1]} : vector<1x96xf32> to vector<1x32xf32>
    %190 = vector.extract_strided_slice %188 {offsets = [0, 0], sizes = [1, 32], strides = [1, 1]} : vector<1x96xf32> to vector<1x32xf32>
    %191 = arith.addf %189, %190 : vector<1x32xf32>
    %192 = arith.negf %191 : vector<1x32xf32>
    %193 = math.exp %192 : vector<1x32xf32>
    %cst_35 = arith.constant 1.000000e+00 : f32
    %194 = vector.broadcast %cst_35 : f32 to vector<1x32xf32>
    %195 = arith.addf %194, %193 : vector<1x32xf32>
    %196 = arith.divf %194, %195 : vector<1x32xf32>
    %197 = vector.extract_strided_slice %12 {offsets = [0, 32], sizes = [1, 32], strides = [1, 1]} : vector<1x96xf32> to vector<1x32xf32>
    %198 = vector.extract_strided_slice %188 {offsets = [0, 32], sizes = [1, 32], strides = [1, 1]} : vector<1x96xf32> to vector<1x32xf32>
    %199 = arith.addf %197, %198 : vector<1x32xf32>
    %200 = arith.negf %199 : vector<1x32xf32>
    %201 = math.exp %200 : vector<1x32xf32>
    %cst_36 = arith.constant 1.000000e+00 : f32
    %202 = vector.broadcast %cst_36 : f32 to vector<1x32xf32>
    %203 = arith.addf %202, %201 : vector<1x32xf32>
    %204 = arith.divf %202, %203 : vector<1x32xf32>
    %205 = vector.extract_strided_slice %12 {offsets = [0, 64], sizes = [1, 32], strides = [1, 1]} : vector<1x96xf32> to vector<1x32xf32>
    %206 = vector.extract_strided_slice %188 {offsets = [0, 64], sizes = [1, 32], strides = [1, 1]} : vector<1x96xf32> to vector<1x32xf32>
    %207 = arith.mulf %196, %206 : vector<1x32xf32>
    %208 = arith.addf %205, %207 : vector<1x32xf32>
    %209 = math.tanh %208 : vector<1x32xf32>
    %cst_37 = arith.constant 1.000000e+00 : f32
    %210 = vector.broadcast %cst_37 : f32 to vector<1x32xf32>
    %211 = arith.subf %210, %204 : vector<1x32xf32>
    %212 = arith.mulf %211, %209 : vector<1x32xf32>
    %213 = arith.mulf %204, %186 : vector<1x32xf32>
    %214 = arith.addf %212, %213 : vector<1x32xf32>
    %cst_38 = arith.constant dense<0.000000e+00> : vector<1x96xf32>
    %215 = tpu.matmul %214, %16, %cst_38 {dimension_numbers = #tpu.dot_dimension_numbers<[1], [0], [0], [1], [0, 0, 1, 1], [], []>} : vector<1x32xf32>, vector<32x96xf32>, vector<1x96xf32> -> vector<1x96xf32>
    %216 = arith.addf %215, %17 : vector<1x96xf32>
    %217 = vector.extract_strided_slice %13 {offsets = [0, 0], sizes = [1, 32], strides = [1, 1]} : vector<1x96xf32> to vector<1x32xf32>
    %218 = vector.extract_strided_slice %216 {offsets = [0, 0], sizes = [1, 32], strides = [1, 1]} : vector<1x96xf32> to vector<1x32xf32>
    %219 = arith.addf %217, %218 : vector<1x32xf32>
    %220 = arith.negf %219 : vector<1x32xf32>
    %221 = math.exp %220 : vector<1x32xf32>
    %cst_39 = arith.constant 1.000000e+00 : f32
    %222 = vector.broadcast %cst_39 : f32 to vector<1x32xf32>
    %223 = arith.addf %222, %221 : vector<1x32xf32>
    %224 = arith.divf %222, %223 : vector<1x32xf32>
    %225 = vector.extract_strided_slice %13 {offsets = [0, 32], sizes = [1, 32], strides = [1, 1]} : vector<1x96xf32> to vector<1x32xf32>
    %226 = vector.extract_strided_slice %216 {offsets = [0, 32], sizes = [1, 32], strides = [1, 1]} : vector<1x96xf32> to vector<1x32xf32>
    %227 = arith.addf %225, %226 : vector<1x32xf32>
    %228 = arith.negf %227 : vector<1x32xf32>
    %229 = math.exp %228 : vector<1x32xf32>
    %cst_40 = arith.constant 1.000000e+00 : f32
    %230 = vector.broadcast %cst_40 : f32 to vector<1x32xf32>
    %231 = arith.addf %230, %229 : vector<1x32xf32>
    %232 = arith.divf %230, %231 : vector<1x32xf32>
    %233 = vector.extract_strided_slice %13 {offsets = [0, 64], sizes = [1, 32], strides = [1, 1]} : vector<1x96xf32> to vector<1x32xf32>
    %234 = vector.extract_strided_slice %216 {offsets = [0, 64], sizes = [1, 32], strides = [1, 1]} : vector<1x96xf32> to vector<1x32xf32>
    %235 = arith.mulf %224, %234 : vector<1x32xf32>
    %236 = arith.addf %233, %235 : vector<1x32xf32>
    %237 = math.tanh %236 : vector<1x32xf32>
    %cst_41 = arith.constant 1.000000e+00 : f32
    %238 = vector.broadcast %cst_41 : f32 to vector<1x32xf32>
    %239 = arith.subf %238, %232 : vector<1x32xf32>
    %240 = arith.mulf %239, %237 : vector<1x32xf32>
    %241 = arith.mulf %232, %214 : vector<1x32xf32>
    %242 = arith.addf %240, %241 : vector<1x32xf32>
    %cst_42 = arith.constant dense<0.000000e+00> : vector<1x96xf32>
    %243 = tpu.matmul %242, %16, %cst_42 {dimension_numbers = #tpu.dot_dimension_numbers<[1], [0], [0], [1], [0, 0, 1, 1], [], []>} : vector<1x32xf32>, vector<32x96xf32>, vector<1x96xf32> -> vector<1x96xf32>
    %244 = arith.addf %243, %17 : vector<1x96xf32>
    %245 = vector.extract_strided_slice %14 {offsets = [0, 0], sizes = [1, 32], strides = [1, 1]} : vector<1x96xf32> to vector<1x32xf32>
    %246 = vector.extract_strided_slice %244 {offsets = [0, 0], sizes = [1, 32], strides = [1, 1]} : vector<1x96xf32> to vector<1x32xf32>
    %247 = arith.addf %245, %246 : vector<1x32xf32>
    %248 = arith.negf %247 : vector<1x32xf32>
    %249 = math.exp %248 : vector<1x32xf32>
    %cst_43 = arith.constant 1.000000e+00 : f32
    %250 = vector.broadcast %cst_43 : f32 to vector<1x32xf32>
    %251 = arith.addf %250, %249 : vector<1x32xf32>
    %252 = arith.divf %250, %251 : vector<1x32xf32>
    %253 = vector.extract_strided_slice %14 {offsets = [0, 32], sizes = [1, 32], strides = [1, 1]} : vector<1x96xf32> to vector<1x32xf32>
    %254 = vector.extract_strided_slice %244 {offsets = [0, 32], sizes = [1, 32], strides = [1, 1]} : vector<1x96xf32> to vector<1x32xf32>
    %255 = arith.addf %253, %254 : vector<1x32xf32>
    %256 = arith.negf %255 : vector<1x32xf32>
    %257 = math.exp %256 : vector<1x32xf32>
    %cst_44 = arith.constant 1.000000e+00 : f32
    %258 = vector.broadcast %cst_44 : f32 to vector<1x32xf32>
    %259 = arith.addf %258, %257 : vector<1x32xf32>
    %260 = arith.divf %258, %259 : vector<1x32xf32>
    %261 = vector.extract_strided_slice %14 {offsets = [0, 64], sizes = [1, 32], strides = [1, 1]} : vector<1x96xf32> to vector<1x32xf32>
    %262 = vector.extract_strided_slice %244 {offsets = [0, 64], sizes = [1, 32], strides = [1, 1]} : vector<1x96xf32> to vector<1x32xf32>
    %263 = arith.mulf %252, %262 : vector<1x32xf32>
    %264 = arith.addf %261, %263 : vector<1x32xf32>
    %265 = math.tanh %264 : vector<1x32xf32>
    %cst_45 = arith.constant 1.000000e+00 : f32
    %266 = vector.broadcast %cst_45 : f32 to vector<1x32xf32>
    %267 = arith.subf %266, %260 : vector<1x32xf32>
    %268 = arith.mulf %267, %265 : vector<1x32xf32>
    %269 = arith.mulf %260, %242 : vector<1x32xf32>
    %270 = arith.addf %268, %269 : vector<1x32xf32>
    %cst_46 = arith.constant dense<0.000000e+00> : vector<1x96xf32>
    %271 = tpu.matmul %270, %16, %cst_46 {dimension_numbers = #tpu.dot_dimension_numbers<[1], [0], [0], [1], [0, 0, 1, 1], [], []>} : vector<1x32xf32>, vector<32x96xf32>, vector<1x96xf32> -> vector<1x96xf32>
    %272 = arith.addf %271, %17 : vector<1x96xf32>
    %273 = vector.extract_strided_slice %15 {offsets = [0, 0], sizes = [1, 32], strides = [1, 1]} : vector<1x96xf32> to vector<1x32xf32>
    %274 = vector.extract_strided_slice %272 {offsets = [0, 0], sizes = [1, 32], strides = [1, 1]} : vector<1x96xf32> to vector<1x32xf32>
    %275 = arith.addf %273, %274 : vector<1x32xf32>
    %276 = arith.negf %275 : vector<1x32xf32>
    %277 = math.exp %276 : vector<1x32xf32>
    %cst_47 = arith.constant 1.000000e+00 : f32
    %278 = vector.broadcast %cst_47 : f32 to vector<1x32xf32>
    %279 = arith.addf %278, %277 : vector<1x32xf32>
    %280 = arith.divf %278, %279 : vector<1x32xf32>
    %281 = vector.extract_strided_slice %15 {offsets = [0, 32], sizes = [1, 32], strides = [1, 1]} : vector<1x96xf32> to vector<1x32xf32>
    %282 = vector.extract_strided_slice %272 {offsets = [0, 32], sizes = [1, 32], strides = [1, 1]} : vector<1x96xf32> to vector<1x32xf32>
    %283 = arith.addf %281, %282 : vector<1x32xf32>
    %284 = arith.negf %283 : vector<1x32xf32>
    %285 = math.exp %284 : vector<1x32xf32>
    %cst_48 = arith.constant 1.000000e+00 : f32
    %286 = vector.broadcast %cst_48 : f32 to vector<1x32xf32>
    %287 = arith.addf %286, %285 : vector<1x32xf32>
    %288 = arith.divf %286, %287 : vector<1x32xf32>
    %289 = vector.extract_strided_slice %15 {offsets = [0, 64], sizes = [1, 32], strides = [1, 1]} : vector<1x96xf32> to vector<1x32xf32>
    %290 = vector.extract_strided_slice %272 {offsets = [0, 64], sizes = [1, 32], strides = [1, 1]} : vector<1x96xf32> to vector<1x32xf32>
    %291 = arith.mulf %280, %290 : vector<1x32xf32>
    %292 = arith.addf %289, %291 : vector<1x32xf32>
    %293 = math.tanh %292 : vector<1x32xf32>
    %cst_49 = arith.constant 1.000000e+00 : f32
    %294 = vector.broadcast %cst_49 : f32 to vector<1x32xf32>
    %295 = arith.subf %294, %288 : vector<1x32xf32>
    %296 = arith.mulf %295, %293 : vector<1x32xf32>
    %297 = arith.mulf %288, %270 : vector<1x32xf32>
    %298 = arith.addf %296, %297 : vector<1x32xf32>
    %c0_50 = arith.constant 0 : index
    %c0_51 = arith.constant 0 : index
    %299 = vector.load %arg1[%c0_50, %c0_51] : memref<48x16xf32, #tpu.memory_space<vmem>>, vector<48x16xf32>
    %c0_52 = arith.constant 0 : index
    %c0_53 = arith.constant 0 : index
    %300 = vector.load %arg6[%c0_52, %c0_53] : memref<16x96xf32, #tpu.memory_space<vmem>>, vector<16x96xf32>
    %cst_54 = arith.constant dense<0.000000e+00> : vector<48x96xf32>
    %301 = tpu.matmul %299, %300, %cst_54 {dimension_numbers = #tpu.dot_dimension_numbers<[1], [0], [0], [1], [0, 0, 1, 1], [], []>} : vector<48x16xf32>, vector<16x96xf32>, vector<48x96xf32> -> vector<48x96xf32>
    %c0_55 = arith.constant 0 : index
    %c0_56 = arith.constant 0 : index
    %302 = vector.load %arg8[%c0_55, %c0_56] : memref<1x96xf32, #tpu.memory_space<vmem>>, vector<1x96xf32>
    %303 = vector.broadcast %302 : vector<1x96xf32> to vector<48x96xf32>
    %304 = arith.addf %301, %303 : vector<48x96xf32>
    %305 = vector.extract_strided_slice %304 {offsets = [0, 0], sizes = [6, 96], strides = [1, 1]} : vector<48x96xf32> to vector<6x96xf32>
    %306 = vector.extract_strided_slice %304 {offsets = [6, 0], sizes = [6, 96], strides = [1, 1]} : vector<48x96xf32> to vector<6x96xf32>
    %307 = vector.extract_strided_slice %304 {offsets = [12, 0], sizes = [6, 96], strides = [1, 1]} : vector<48x96xf32> to vector<6x96xf32>
    %308 = vector.extract_strided_slice %304 {offsets = [18, 0], sizes = [6, 96], strides = [1, 1]} : vector<48x96xf32> to vector<6x96xf32>
    %309 = vector.extract_strided_slice %304 {offsets = [24, 0], sizes = [6, 96], strides = [1, 1]} : vector<48x96xf32> to vector<6x96xf32>
    %310 = vector.extract_strided_slice %304 {offsets = [30, 0], sizes = [6, 96], strides = [1, 1]} : vector<48x96xf32> to vector<6x96xf32>
    %311 = vector.extract_strided_slice %304 {offsets = [36, 0], sizes = [6, 96], strides = [1, 1]} : vector<48x96xf32> to vector<6x96xf32>
    %312 = vector.extract_strided_slice %304 {offsets = [42, 0], sizes = [6, 96], strides = [1, 1]} : vector<48x96xf32> to vector<6x96xf32>
    %c0_57 = arith.constant 0 : index
    %c0_58 = arith.constant 0 : index
    %313 = vector.load %arg7[%c0_57, %c0_58] : memref<32x96xf32, #tpu.memory_space<vmem>>, vector<32x96xf32>
    %c0_59 = arith.constant 0 : index
    %c0_60 = arith.constant 0 : index
    %314 = vector.load %arg9[%c0_59, %c0_60] : memref<1x96xf32, #tpu.memory_space<vmem>>, vector<1x96xf32>
    %cst_61 = arith.constant 0.000000e+00 : f32
    %315 = vector.broadcast %cst_61 : f32 to vector<6x32xf32>
    %cst_62 = arith.constant dense<0.000000e+00> : vector<6x96xf32>
    %316 = tpu.matmul %315, %313, %cst_62 {dimension_numbers = #tpu.dot_dimension_numbers<[1], [0], [0], [1], [0, 0, 1, 1], [], []>} : vector<6x32xf32>, vector<32x96xf32>, vector<6x96xf32> -> vector<6x96xf32>
    %317 = vector.broadcast %314 : vector<1x96xf32> to vector<6x96xf32>
    %318 = arith.addf %316, %317 : vector<6x96xf32>
    %319 = vector.extract_strided_slice %305 {offsets = [0, 0], sizes = [6, 32], strides = [1, 1]} : vector<6x96xf32> to vector<6x32xf32>
    %320 = vector.extract_strided_slice %318 {offsets = [0, 0], sizes = [6, 32], strides = [1, 1]} : vector<6x96xf32> to vector<6x32xf32>
    %321 = arith.addf %319, %320 : vector<6x32xf32>
    %322 = arith.negf %321 : vector<6x32xf32>
    %323 = math.exp %322 : vector<6x32xf32>
    %cst_63 = arith.constant 1.000000e+00 : f32
    %324 = vector.broadcast %cst_63 : f32 to vector<6x32xf32>
    %325 = arith.addf %324, %323 : vector<6x32xf32>
    %326 = arith.divf %324, %325 : vector<6x32xf32>
    %327 = vector.extract_strided_slice %305 {offsets = [0, 32], sizes = [6, 32], strides = [1, 1]} : vector<6x96xf32> to vector<6x32xf32>
    %328 = vector.extract_strided_slice %318 {offsets = [0, 32], sizes = [6, 32], strides = [1, 1]} : vector<6x96xf32> to vector<6x32xf32>
    %329 = arith.addf %327, %328 : vector<6x32xf32>
    %330 = arith.negf %329 : vector<6x32xf32>
    %331 = math.exp %330 : vector<6x32xf32>
    %cst_64 = arith.constant 1.000000e+00 : f32
    %332 = vector.broadcast %cst_64 : f32 to vector<6x32xf32>
    %333 = arith.addf %332, %331 : vector<6x32xf32>
    %334 = arith.divf %332, %333 : vector<6x32xf32>
    %335 = vector.extract_strided_slice %305 {offsets = [0, 64], sizes = [6, 32], strides = [1, 1]} : vector<6x96xf32> to vector<6x32xf32>
    %336 = vector.extract_strided_slice %318 {offsets = [0, 64], sizes = [6, 32], strides = [1, 1]} : vector<6x96xf32> to vector<6x32xf32>
    %337 = arith.mulf %326, %336 : vector<6x32xf32>
    %338 = arith.addf %335, %337 : vector<6x32xf32>
    %339 = math.tanh %338 : vector<6x32xf32>
    %cst_65 = arith.constant 1.000000e+00 : f32
    %340 = vector.broadcast %cst_65 : f32 to vector<6x32xf32>
    %341 = arith.subf %340, %334 : vector<6x32xf32>
    %342 = arith.mulf %341, %339 : vector<6x32xf32>
    %343 = arith.mulf %334, %315 : vector<6x32xf32>
    %344 = arith.addf %342, %343 : vector<6x32xf32>
    %cst_66 = arith.constant dense<0.000000e+00> : vector<6x96xf32>
    %345 = tpu.matmul %344, %313, %cst_66 {dimension_numbers = #tpu.dot_dimension_numbers<[1], [0], [0], [1], [0, 0, 1, 1], [], []>} : vector<6x32xf32>, vector<32x96xf32>, vector<6x96xf32> -> vector<6x96xf32>
    %346 = vector.broadcast %314 : vector<1x96xf32> to vector<6x96xf32>
    %347 = arith.addf %345, %346 : vector<6x96xf32>
    %348 = vector.extract_strided_slice %306 {offsets = [0, 0], sizes = [6, 32], strides = [1, 1]} : vector<6x96xf32> to vector<6x32xf32>
    %349 = vector.extract_strided_slice %347 {offsets = [0, 0], sizes = [6, 32], strides = [1, 1]} : vector<6x96xf32> to vector<6x32xf32>
    %350 = arith.addf %348, %349 : vector<6x32xf32>
    %351 = arith.negf %350 : vector<6x32xf32>
    %352 = math.exp %351 : vector<6x32xf32>
    %cst_67 = arith.constant 1.000000e+00 : f32
    %353 = vector.broadcast %cst_67 : f32 to vector<6x32xf32>
    %354 = arith.addf %353, %352 : vector<6x32xf32>
    %355 = arith.divf %353, %354 : vector<6x32xf32>
    %356 = vector.extract_strided_slice %306 {offsets = [0, 32], sizes = [6, 32], strides = [1, 1]} : vector<6x96xf32> to vector<6x32xf32>
    %357 = vector.extract_strided_slice %347 {offsets = [0, 32], sizes = [6, 32], strides = [1, 1]} : vector<6x96xf32> to vector<6x32xf32>
    %358 = arith.addf %356, %357 : vector<6x32xf32>
    %359 = arith.negf %358 : vector<6x32xf32>
    %360 = math.exp %359 : vector<6x32xf32>
    %cst_68 = arith.constant 1.000000e+00 : f32
    %361 = vector.broadcast %cst_68 : f32 to vector<6x32xf32>
    %362 = arith.addf %361, %360 : vector<6x32xf32>
    %363 = arith.divf %361, %362 : vector<6x32xf32>
    %364 = vector.extract_strided_slice %306 {offsets = [0, 64], sizes = [6, 32], strides = [1, 1]} : vector<6x96xf32> to vector<6x32xf32>
    %365 = vector.extract_strided_slice %347 {offsets = [0, 64], sizes = [6, 32], strides = [1, 1]} : vector<6x96xf32> to vector<6x32xf32>
    %366 = arith.mulf %355, %365 : vector<6x32xf32>
    %367 = arith.addf %364, %366 : vector<6x32xf32>
    %368 = math.tanh %367 : vector<6x32xf32>
    %cst_69 = arith.constant 1.000000e+00 : f32
    %369 = vector.broadcast %cst_69 : f32 to vector<6x32xf32>
    %370 = arith.subf %369, %363 : vector<6x32xf32>
    %371 = arith.mulf %370, %368 : vector<6x32xf32>
    %372 = arith.mulf %363, %344 : vector<6x32xf32>
    %373 = arith.addf %371, %372 : vector<6x32xf32>
    %cst_70 = arith.constant dense<0.000000e+00> : vector<6x96xf32>
    %374 = tpu.matmul %373, %313, %cst_70 {dimension_numbers = #tpu.dot_dimension_numbers<[1], [0], [0], [1], [0, 0, 1, 1], [], []>} : vector<6x32xf32>, vector<32x96xf32>, vector<6x96xf32> -> vector<6x96xf32>
    %375 = vector.broadcast %314 : vector<1x96xf32> to vector<6x96xf32>
    %376 = arith.addf %374, %375 : vector<6x96xf32>
    %377 = vector.extract_strided_slice %307 {offsets = [0, 0], sizes = [6, 32], strides = [1, 1]} : vector<6x96xf32> to vector<6x32xf32>
    %378 = vector.extract_strided_slice %376 {offsets = [0, 0], sizes = [6, 32], strides = [1, 1]} : vector<6x96xf32> to vector<6x32xf32>
    %379 = arith.addf %377, %378 : vector<6x32xf32>
    %380 = arith.negf %379 : vector<6x32xf32>
    %381 = math.exp %380 : vector<6x32xf32>
    %cst_71 = arith.constant 1.000000e+00 : f32
    %382 = vector.broadcast %cst_71 : f32 to vector<6x32xf32>
    %383 = arith.addf %382, %381 : vector<6x32xf32>
    %384 = arith.divf %382, %383 : vector<6x32xf32>
    %385 = vector.extract_strided_slice %307 {offsets = [0, 32], sizes = [6, 32], strides = [1, 1]} : vector<6x96xf32> to vector<6x32xf32>
    %386 = vector.extract_strided_slice %376 {offsets = [0, 32], sizes = [6, 32], strides = [1, 1]} : vector<6x96xf32> to vector<6x32xf32>
    %387 = arith.addf %385, %386 : vector<6x32xf32>
    %388 = arith.negf %387 : vector<6x32xf32>
    %389 = math.exp %388 : vector<6x32xf32>
    %cst_72 = arith.constant 1.000000e+00 : f32
    %390 = vector.broadcast %cst_72 : f32 to vector<6x32xf32>
    %391 = arith.addf %390, %389 : vector<6x32xf32>
    %392 = arith.divf %390, %391 : vector<6x32xf32>
    %393 = vector.extract_strided_slice %307 {offsets = [0, 64], sizes = [6, 32], strides = [1, 1]} : vector<6x96xf32> to vector<6x32xf32>
    %394 = vector.extract_strided_slice %376 {offsets = [0, 64], sizes = [6, 32], strides = [1, 1]} : vector<6x96xf32> to vector<6x32xf32>
    %395 = arith.mulf %384, %394 : vector<6x32xf32>
    %396 = arith.addf %393, %395 : vector<6x32xf32>
    %397 = math.tanh %396 : vector<6x32xf32>
    %cst_73 = arith.constant 1.000000e+00 : f32
    %398 = vector.broadcast %cst_73 : f32 to vector<6x32xf32>
    %399 = arith.subf %398, %392 : vector<6x32xf32>
    %400 = arith.mulf %399, %397 : vector<6x32xf32>
    %401 = arith.mulf %392, %373 : vector<6x32xf32>
    %402 = arith.addf %400, %401 : vector<6x32xf32>
    %cst_74 = arith.constant dense<0.000000e+00> : vector<6x96xf32>
    %403 = tpu.matmul %402, %313, %cst_74 {dimension_numbers = #tpu.dot_dimension_numbers<[1], [0], [0], [1], [0, 0, 1, 1], [], []>} : vector<6x32xf32>, vector<32x96xf32>, vector<6x96xf32> -> vector<6x96xf32>
    %404 = vector.broadcast %314 : vector<1x96xf32> to vector<6x96xf32>
    %405 = arith.addf %403, %404 : vector<6x96xf32>
    %406 = vector.extract_strided_slice %308 {offsets = [0, 0], sizes = [6, 32], strides = [1, 1]} : vector<6x96xf32> to vector<6x32xf32>
    %407 = vector.extract_strided_slice %405 {offsets = [0, 0], sizes = [6, 32], strides = [1, 1]} : vector<6x96xf32> to vector<6x32xf32>
    %408 = arith.addf %406, %407 : vector<6x32xf32>
    %409 = arith.negf %408 : vector<6x32xf32>
    %410 = math.exp %409 : vector<6x32xf32>
    %cst_75 = arith.constant 1.000000e+00 : f32
    %411 = vector.broadcast %cst_75 : f32 to vector<6x32xf32>
    %412 = arith.addf %411, %410 : vector<6x32xf32>
    %413 = arith.divf %411, %412 : vector<6x32xf32>
    %414 = vector.extract_strided_slice %308 {offsets = [0, 32], sizes = [6, 32], strides = [1, 1]} : vector<6x96xf32> to vector<6x32xf32>
    %415 = vector.extract_strided_slice %405 {offsets = [0, 32], sizes = [6, 32], strides = [1, 1]} : vector<6x96xf32> to vector<6x32xf32>
    %416 = arith.addf %414, %415 : vector<6x32xf32>
    %417 = arith.negf %416 : vector<6x32xf32>
    %418 = math.exp %417 : vector<6x32xf32>
    %cst_76 = arith.constant 1.000000e+00 : f32
    %419 = vector.broadcast %cst_76 : f32 to vector<6x32xf32>
    %420 = arith.addf %419, %418 : vector<6x32xf32>
    %421 = arith.divf %419, %420 : vector<6x32xf32>
    %422 = vector.extract_strided_slice %308 {offsets = [0, 64], sizes = [6, 32], strides = [1, 1]} : vector<6x96xf32> to vector<6x32xf32>
    %423 = vector.extract_strided_slice %405 {offsets = [0, 64], sizes = [6, 32], strides = [1, 1]} : vector<6x96xf32> to vector<6x32xf32>
    %424 = arith.mulf %413, %423 : vector<6x32xf32>
    %425 = arith.addf %422, %424 : vector<6x32xf32>
    %426 = math.tanh %425 : vector<6x32xf32>
    %cst_77 = arith.constant 1.000000e+00 : f32
    %427 = vector.broadcast %cst_77 : f32 to vector<6x32xf32>
    %428 = arith.subf %427, %421 : vector<6x32xf32>
    %429 = arith.mulf %428, %426 : vector<6x32xf32>
    %430 = arith.mulf %421, %402 : vector<6x32xf32>
    %431 = arith.addf %429, %430 : vector<6x32xf32>
    %cst_78 = arith.constant dense<0.000000e+00> : vector<6x96xf32>
    %432 = tpu.matmul %431, %313, %cst_78 {dimension_numbers = #tpu.dot_dimension_numbers<[1], [0], [0], [1], [0, 0, 1, 1], [], []>} : vector<6x32xf32>, vector<32x96xf32>, vector<6x96xf32> -> vector<6x96xf32>
    %433 = vector.broadcast %314 : vector<1x96xf32> to vector<6x96xf32>
    %434 = arith.addf %432, %433 : vector<6x96xf32>
    %435 = vector.extract_strided_slice %309 {offsets = [0, 0], sizes = [6, 32], strides = [1, 1]} : vector<6x96xf32> to vector<6x32xf32>
    %436 = vector.extract_strided_slice %434 {offsets = [0, 0], sizes = [6, 32], strides = [1, 1]} : vector<6x96xf32> to vector<6x32xf32>
    %437 = arith.addf %435, %436 : vector<6x32xf32>
    %438 = arith.negf %437 : vector<6x32xf32>
    %439 = math.exp %438 : vector<6x32xf32>
    %cst_79 = arith.constant 1.000000e+00 : f32
    %440 = vector.broadcast %cst_79 : f32 to vector<6x32xf32>
    %441 = arith.addf %440, %439 : vector<6x32xf32>
    %442 = arith.divf %440, %441 : vector<6x32xf32>
    %443 = vector.extract_strided_slice %309 {offsets = [0, 32], sizes = [6, 32], strides = [1, 1]} : vector<6x96xf32> to vector<6x32xf32>
    %444 = vector.extract_strided_slice %434 {offsets = [0, 32], sizes = [6, 32], strides = [1, 1]} : vector<6x96xf32> to vector<6x32xf32>
    %445 = arith.addf %443, %444 : vector<6x32xf32>
    %446 = arith.negf %445 : vector<6x32xf32>
    %447 = math.exp %446 : vector<6x32xf32>
    %cst_80 = arith.constant 1.000000e+00 : f32
    %448 = vector.broadcast %cst_80 : f32 to vector<6x32xf32>
    %449 = arith.addf %448, %447 : vector<6x32xf32>
    %450 = arith.divf %448, %449 : vector<6x32xf32>
    %451 = vector.extract_strided_slice %309 {offsets = [0, 64], sizes = [6, 32], strides = [1, 1]} : vector<6x96xf32> to vector<6x32xf32>
    %452 = vector.extract_strided_slice %434 {offsets = [0, 64], sizes = [6, 32], strides = [1, 1]} : vector<6x96xf32> to vector<6x32xf32>
    %453 = arith.mulf %442, %452 : vector<6x32xf32>
    %454 = arith.addf %451, %453 : vector<6x32xf32>
    %455 = math.tanh %454 : vector<6x32xf32>
    %cst_81 = arith.constant 1.000000e+00 : f32
    %456 = vector.broadcast %cst_81 : f32 to vector<6x32xf32>
    %457 = arith.subf %456, %450 : vector<6x32xf32>
    %458 = arith.mulf %457, %455 : vector<6x32xf32>
    %459 = arith.mulf %450, %431 : vector<6x32xf32>
    %460 = arith.addf %458, %459 : vector<6x32xf32>
    %cst_82 = arith.constant dense<0.000000e+00> : vector<6x96xf32>
    %461 = tpu.matmul %460, %313, %cst_82 {dimension_numbers = #tpu.dot_dimension_numbers<[1], [0], [0], [1], [0, 0, 1, 1], [], []>} : vector<6x32xf32>, vector<32x96xf32>, vector<6x96xf32> -> vector<6x96xf32>
    %462 = vector.broadcast %314 : vector<1x96xf32> to vector<6x96xf32>
    %463 = arith.addf %461, %462 : vector<6x96xf32>
    %464 = vector.extract_strided_slice %310 {offsets = [0, 0], sizes = [6, 32], strides = [1, 1]} : vector<6x96xf32> to vector<6x32xf32>
    %465 = vector.extract_strided_slice %463 {offsets = [0, 0], sizes = [6, 32], strides = [1, 1]} : vector<6x96xf32> to vector<6x32xf32>
    %466 = arith.addf %464, %465 : vector<6x32xf32>
    %467 = arith.negf %466 : vector<6x32xf32>
    %468 = math.exp %467 : vector<6x32xf32>
    %cst_83 = arith.constant 1.000000e+00 : f32
    %469 = vector.broadcast %cst_83 : f32 to vector<6x32xf32>
    %470 = arith.addf %469, %468 : vector<6x32xf32>
    %471 = arith.divf %469, %470 : vector<6x32xf32>
    %472 = vector.extract_strided_slice %310 {offsets = [0, 32], sizes = [6, 32], strides = [1, 1]} : vector<6x96xf32> to vector<6x32xf32>
    %473 = vector.extract_strided_slice %463 {offsets = [0, 32], sizes = [6, 32], strides = [1, 1]} : vector<6x96xf32> to vector<6x32xf32>
    %474 = arith.addf %472, %473 : vector<6x32xf32>
    %475 = arith.negf %474 : vector<6x32xf32>
    %476 = math.exp %475 : vector<6x32xf32>
    %cst_84 = arith.constant 1.000000e+00 : f32
    %477 = vector.broadcast %cst_84 : f32 to vector<6x32xf32>
    %478 = arith.addf %477, %476 : vector<6x32xf32>
    %479 = arith.divf %477, %478 : vector<6x32xf32>
    %480 = vector.extract_strided_slice %310 {offsets = [0, 64], sizes = [6, 32], strides = [1, 1]} : vector<6x96xf32> to vector<6x32xf32>
    %481 = vector.extract_strided_slice %463 {offsets = [0, 64], sizes = [6, 32], strides = [1, 1]} : vector<6x96xf32> to vector<6x32xf32>
    %482 = arith.mulf %471, %481 : vector<6x32xf32>
    %483 = arith.addf %480, %482 : vector<6x32xf32>
    %484 = math.tanh %483 : vector<6x32xf32>
    %cst_85 = arith.constant 1.000000e+00 : f32
    %485 = vector.broadcast %cst_85 : f32 to vector<6x32xf32>
    %486 = arith.subf %485, %479 : vector<6x32xf32>
    %487 = arith.mulf %486, %484 : vector<6x32xf32>
    %488 = arith.mulf %479, %460 : vector<6x32xf32>
    %489 = arith.addf %487, %488 : vector<6x32xf32>
    %cst_86 = arith.constant dense<0.000000e+00> : vector<6x96xf32>
    %490 = tpu.matmul %489, %313, %cst_86 {dimension_numbers = #tpu.dot_dimension_numbers<[1], [0], [0], [1], [0, 0, 1, 1], [], []>} : vector<6x32xf32>, vector<32x96xf32>, vector<6x96xf32> -> vector<6x96xf32>
    %491 = vector.broadcast %314 : vector<1x96xf32> to vector<6x96xf32>
    %492 = arith.addf %490, %491 : vector<6x96xf32>
    %493 = vector.extract_strided_slice %311 {offsets = [0, 0], sizes = [6, 32], strides = [1, 1]} : vector<6x96xf32> to vector<6x32xf32>
    %494 = vector.extract_strided_slice %492 {offsets = [0, 0], sizes = [6, 32], strides = [1, 1]} : vector<6x96xf32> to vector<6x32xf32>
    %495 = arith.addf %493, %494 : vector<6x32xf32>
    %496 = arith.negf %495 : vector<6x32xf32>
    %497 = math.exp %496 : vector<6x32xf32>
    %cst_87 = arith.constant 1.000000e+00 : f32
    %498 = vector.broadcast %cst_87 : f32 to vector<6x32xf32>
    %499 = arith.addf %498, %497 : vector<6x32xf32>
    %500 = arith.divf %498, %499 : vector<6x32xf32>
    %501 = vector.extract_strided_slice %311 {offsets = [0, 32], sizes = [6, 32], strides = [1, 1]} : vector<6x96xf32> to vector<6x32xf32>
    %502 = vector.extract_strided_slice %492 {offsets = [0, 32], sizes = [6, 32], strides = [1, 1]} : vector<6x96xf32> to vector<6x32xf32>
    %503 = arith.addf %501, %502 : vector<6x32xf32>
    %504 = arith.negf %503 : vector<6x32xf32>
    %505 = math.exp %504 : vector<6x32xf32>
    %cst_88 = arith.constant 1.000000e+00 : f32
    %506 = vector.broadcast %cst_88 : f32 to vector<6x32xf32>
    %507 = arith.addf %506, %505 : vector<6x32xf32>
    %508 = arith.divf %506, %507 : vector<6x32xf32>
    %509 = vector.extract_strided_slice %311 {offsets = [0, 64], sizes = [6, 32], strides = [1, 1]} : vector<6x96xf32> to vector<6x32xf32>
    %510 = vector.extract_strided_slice %492 {offsets = [0, 64], sizes = [6, 32], strides = [1, 1]} : vector<6x96xf32> to vector<6x32xf32>
    %511 = arith.mulf %500, %510 : vector<6x32xf32>
    %512 = arith.addf %509, %511 : vector<6x32xf32>
    %513 = math.tanh %512 : vector<6x32xf32>
    %cst_89 = arith.constant 1.000000e+00 : f32
    %514 = vector.broadcast %cst_89 : f32 to vector<6x32xf32>
    %515 = arith.subf %514, %508 : vector<6x32xf32>
    %516 = arith.mulf %515, %513 : vector<6x32xf32>
    %517 = arith.mulf %508, %489 : vector<6x32xf32>
    %518 = arith.addf %516, %517 : vector<6x32xf32>
    %cst_90 = arith.constant dense<0.000000e+00> : vector<6x96xf32>
    %519 = tpu.matmul %518, %313, %cst_90 {dimension_numbers = #tpu.dot_dimension_numbers<[1], [0], [0], [1], [0, 0, 1, 1], [], []>} : vector<6x32xf32>, vector<32x96xf32>, vector<6x96xf32> -> vector<6x96xf32>
    %520 = vector.broadcast %314 : vector<1x96xf32> to vector<6x96xf32>
    %521 = arith.addf %519, %520 : vector<6x96xf32>
    %522 = vector.extract_strided_slice %312 {offsets = [0, 0], sizes = [6, 32], strides = [1, 1]} : vector<6x96xf32> to vector<6x32xf32>
    %523 = vector.extract_strided_slice %521 {offsets = [0, 0], sizes = [6, 32], strides = [1, 1]} : vector<6x96xf32> to vector<6x32xf32>
    %524 = arith.addf %522, %523 : vector<6x32xf32>
    %525 = arith.negf %524 : vector<6x32xf32>
    %526 = math.exp %525 : vector<6x32xf32>
    %cst_91 = arith.constant 1.000000e+00 : f32
    %527 = vector.broadcast %cst_91 : f32 to vector<6x32xf32>
    %528 = arith.addf %527, %526 : vector<6x32xf32>
    %529 = arith.divf %527, %528 : vector<6x32xf32>
    %530 = vector.extract_strided_slice %312 {offsets = [0, 32], sizes = [6, 32], strides = [1, 1]} : vector<6x96xf32> to vector<6x32xf32>
    %531 = vector.extract_strided_slice %521 {offsets = [0, 32], sizes = [6, 32], strides = [1, 1]} : vector<6x96xf32> to vector<6x32xf32>
    %532 = arith.addf %530, %531 : vector<6x32xf32>
    %533 = arith.negf %532 : vector<6x32xf32>
    %534 = math.exp %533 : vector<6x32xf32>
    %cst_92 = arith.constant 1.000000e+00 : f32
    %535 = vector.broadcast %cst_92 : f32 to vector<6x32xf32>
    %536 = arith.addf %535, %534 : vector<6x32xf32>
    %537 = arith.divf %535, %536 : vector<6x32xf32>
    %538 = vector.extract_strided_slice %312 {offsets = [0, 64], sizes = [6, 32], strides = [1, 1]} : vector<6x96xf32> to vector<6x32xf32>
    %539 = vector.extract_strided_slice %521 {offsets = [0, 64], sizes = [6, 32], strides = [1, 1]} : vector<6x96xf32> to vector<6x32xf32>
    %540 = arith.mulf %529, %539 : vector<6x32xf32>
    %541 = arith.addf %538, %540 : vector<6x32xf32>
    %542 = math.tanh %541 : vector<6x32xf32>
    %cst_93 = arith.constant 1.000000e+00 : f32
    %543 = vector.broadcast %cst_93 : f32 to vector<6x32xf32>
    %544 = arith.subf %543, %537 : vector<6x32xf32>
    %545 = arith.mulf %544, %542 : vector<6x32xf32>
    %546 = arith.mulf %537, %518 : vector<6x32xf32>
    %547 = arith.addf %545, %546 : vector<6x32xf32>
    %548 = math.absf %298 : vector<1x32xf32>
    %549 = tpu.concatenate %298, %548 in 1 : vector<1x32xf32>, vector<1x32xf32> -> vector<1x64xf32>
    %c0_94 = arith.constant 0 : index
    %c0_95 = arith.constant 0 : index
    %550 = vector.load %arg10[%c0_94, %c0_95] : memref<64x32xf32, #tpu.memory_space<vmem>>, vector<64x32xf32>
    %cst_96 = arith.constant dense<0.000000e+00> : vector<1x32xf32>
    %551 = tpu.matmul %549, %550, %cst_96 {dimension_numbers = #tpu.dot_dimension_numbers<[1], [0], [0], [1], [0, 0, 1, 1], [], []>} : vector<1x64xf32>, vector<64x32xf32>, vector<1x32xf32> -> vector<1x32xf32>
    %552 = math.tanh %551 : vector<1x32xf32>
    %c0_97 = arith.constant 0 : index
    %c0_98 = arith.constant 0 : index
    %553 = vector.load %arg11[%c0_97, %c0_98] : memref<32x1xf32, #tpu.memory_space<vmem>>, vector<32x1xf32>
    %cst_99 = arith.constant dense<0.000000e+00> : vector<1x1xf32>
    %554 = tpu.matmul %552, %553, %cst_99 {dimension_numbers = #tpu.dot_dimension_numbers<[1], [0], [0], [1], [0, 0, 1, 1], [], []>} : vector<1x32xf32>, vector<32x1xf32>, vector<1x1xf32> -> vector<1x1xf32>
    %c0_100 = arith.constant 0 : index
    %c0_101 = arith.constant 0 : index
    %555 = vector.load %arg12[%c0_100, %c0_101] : memref<1x1xf32, #tpu.memory_space<vmem>>, vector<1x1xf32>
    %556 = arith.addf %554, %555 : vector<1x1xf32>
    %557 = math.tanh %556 : vector<1x1xf32>
    %558 = vector.shape_cast %557 : vector<1x1xf32> to vector<1x1xf32>
    %559 = vector.broadcast %558 : vector<1x1xf32> to vector<6x1xf32>
    %cst_102 = arith.constant dense<0xFF800000> : vector<1xf32>
    %560 = vector.multi_reduction <maximumf>, %559, %cst_102 [0] : vector<6x1xf32> to vector<1xf32>
    %561 = vector.shape_cast %560 : vector<1xf32> to vector<1x1xf32>
    %562 = vector.broadcast %561 : vector<1x1xf32> to vector<6x1xf32>
    %563 = arith.subf %559, %562 : vector<6x1xf32>
    %564 = math.exp %563 : vector<6x1xf32>
    %cst_103 = arith.constant dense<0.000000e+00> : vector<1xf32>
    %565 = vector.multi_reduction <add>, %564, %cst_103 [0] : vector<6x1xf32> to vector<1xf32>
    %566 = vector.shape_cast %565 : vector<1xf32> to vector<1x1xf32>
    %567 = tpu.reciprocal %566 {approx = true} : vector<1x1xf32> -> vector<1x1xf32>
    %568 = vector.broadcast %567 : vector<1x1xf32> to vector<6x1xf32>
    %569 = arith.mulf %564, %568 : vector<6x1xf32>
    %570 = vector.broadcast %569 : vector<6x1xf32> to vector<6x32xf32>
    %571 = arith.mulf %570, %547 : vector<6x32xf32>
    %cst_104 = arith.constant dense<0.000000e+00> : vector<32xf32>
    %572 = vector.multi_reduction <add>, %571, %cst_104 [0] : vector<6x32xf32> to vector<32xf32>
    %573 = vector.shape_cast %572 : vector<32xf32> to vector<1x32xf32>
    %c0_105 = arith.constant 0 : index
    %c0_106 = arith.constant 0 : index
    %574 = vector.load %arg13[%c0_105, %c0_106] : memref<32x4xf32, #tpu.memory_space<vmem>>, vector<32x4xf32>
    %cst_107 = arith.constant dense<0.000000e+00> : vector<1x4xf32>
    %575 = tpu.matmul %573, %574, %cst_107 {dimension_numbers = #tpu.dot_dimension_numbers<[1], [0], [0], [1], [0, 0, 1, 1], [], []>} : vector<1x32xf32>, vector<32x4xf32>, vector<1x4xf32> -> vector<1x4xf32>
    %c0_108 = arith.constant 0 : index
    %c0_109 = arith.constant 0 : index
    %576 = vector.load %arg14[%c0_108, %c0_109] : memref<1x4xf32, #tpu.memory_space<vmem>>, vector<1x4xf32>
    %577 = arith.addf %575, %576 : vector<1x4xf32>
    %578 = arith.negf %577 : vector<1x4xf32>
    %579 = math.exp %578 : vector<1x4xf32>
    %cst_110 = arith.constant 1.000000e+00 : f32
    %580 = vector.broadcast %cst_110 : f32 to vector<1x4xf32>
    %581 = arith.addf %580, %579 : vector<1x4xf32>
    %582 = arith.divf %580, %581 : vector<1x4xf32>
    %c0_111 = arith.constant 0 : index
    %c0_112 = arith.constant 0 : index
    %583 = vector.load %arg15[%c0_111, %c0_112] : memref<1x4xf32, #tpu.memory_space<vmem>>, vector<1x4xf32>
    tpu.vector_store %arg15[%c0_111, %c0_112], %582 {strides = array<i32>} : memref<1x4xf32, #tpu.memory_space<vmem>>, vector<1x4xf32>,
    return
  }
}

</mosaic_0001>

<llo_original>
// kernel: han_forward.1
$region0: #{han_forward.1}
  #allocation0 [shape = 'u32[]', space=smem, size = 0x4, offset = 0x4, fixed_abs, tag = 'smem constant byte address 0x4 - core index']
  #allocation1 [shape = 'u32[144,128]{1,0:T(1,128)}', space=vmem, size = 0x12000, scoped, tag = 'internal scratch']
  #allocation2 [shape = 'f32[1,1]{1,0:T(1,128)S(1)}', space=vmem, size = 0x200, scoped, tag = 'scoped memory for han_forward.1']
  %s0 = inlined_call_operand.vmem [shape: f32[10,16], index: 0, kind: input, shape index: {}]
  %s1 = inlined_call_operand.vmem [shape: f32[48,16], index: 1, kind: input, shape index: {}]
  %s2 = inlined_call_operand.vmem [shape: f32[16,96], index: 2, kind: input, shape index: {}]
  %s3 = inlined_call_operand.vmem [shape: f32[32,96], index: 3, kind: input, shape index: {}]
  %s4 = inlined_call_operand.vmem [shape: f32[1,96], index: 4, kind: input, shape index: {}]
  %s5 = inlined_call_operand.vmem [shape: f32[1,96], index: 5, kind: input, shape index: {}]
  %s6 = inlined_call_operand.vmem [shape: f32[16,96], index: 6, kind: input, shape index: {}]
  %s7 = inlined_call_operand.vmem [shape: f32[32,96], index: 7, kind: input, shape index: {}]
  %s8 = inlined_call_operand.vmem [shape: f32[1,96], index: 8, kind: input, shape index: {}]
  %s9 = inlined_call_operand.vmem [shape: f32[1,96], index: 9, kind: input, shape index: {}]
  %s10 = inlined_call_operand.vmem [shape: f32[64,32], index: 10, kind: input, shape index: {}]
  %s11 = inlined_call_operand.vmem [shape: f32[32,1], index: 11, kind: input, shape index: {}]
  %s12 = inlined_call_operand.<no memory space> [shape: f32[1,1], index: 12, kind: input, shape index: {}]
  %s13 = inlined_call_operand.vmem [shape: f32[32,4], index: 13, kind: input, shape index: {}]
  %s14 = inlined_call_operand.vmem [shape: f32[1,4], index: 14, kind: input, shape index: {}]
  %s15 = inlined_call_operand.hbm [shape: f32[1,4], index: 15, kind: output, shape index: {}]
  %s16 = sld [smem:[#allocation0]]
  $region70: #{han_forward.1} parent=0
    _
  %s18 = ssub.s32 1, %s16
  %s19 = scalar_select 0, %s18, %s16
  %v20 = vstv %s12
  %21 = vst [vmem:[#allocation2] sm:$0x1] %v20
  $region1: #{han_forward.1} parent=0
    #allocation3 [shape = 'u8[512]{0}', space=vmem, size = 0x400, scoped, tag = 'output window, operand 0, single buffered']
    #allocation4 [shape = 's32[1]{0}', space=sflag, size = 0x4, scoped, tag = 'scoped memory for han_forward.1']
    %22 = vsyncpa [#allocation4], 0
    // Predicated region
    $region2: #{han_forward.1} parent=1 // pred_check
      _
    $region3: #{han_forward.1} parent=1 // pred_check_branch
      %24 = sbr.rel (0) target = $region5
    $region4: #{han_forward.1} parent=1 // pred_region
      _
    $region5: #{han_forward.1} parent=1 // pred_fallthru
      _
    // Predicated region
    $region6: #{han_forward.1} parent=1 // pred_check
      _
    $region7: #{han_forward.1} parent=1 // pred_check_branch
      %26 = sbr.rel (0) target = $region9
    $region8: #{han_forward.1} parent=1 // pred_region
      _
    $region9: #{han_forward.1} parent=1 // pred_fallthru
      _
    // Predicated region
    $region10: #{han_forward.1} parent=1 // pred_check
      _
    $region11: #{han_forward.1} parent=1 // pred_check_branch
      %28 = sbr.rel (0) target = $region13
    $region12: #{han_forward.1} parent=1 // pred_region
      _
    $region13: #{han_forward.1} parent=1 // pred_fallthru
      _
    // Predicated region
    $region14: #{han_forward.1} parent=1 // pred_check
      _
    $region15: #{han_forward.1} parent=1 // pred_check_branch
      %30 = sbr.rel (0) target = $region17
    $region16: #{han_forward.1} parent=1 // pred_region
      _
    $region17: #{han_forward.1} parent=1 // pred_fallthru
      _
    // Predicated region
    $region18: #{han_forward.1} parent=1 // pred_check
      _
    $region19: #{han_forward.1} parent=1 // pred_check_branch
      %32 = sbr.rel (0) target = $region21
    $region20: #{han_forward.1} parent=1 // pred_region
      _
    $region21: #{han_forward.1} parent=1 // pred_fallthru
      _
    // Predicated region
    $region22: #{han_forward.1} parent=1 // pred_check
      _
    $region23: #{han_forward.1} parent=1 // pred_check_branch
      %34 = sbr.rel (0) target = $region25
    $region24: #{han_forward.1} parent=1 // pred_region
      _
    $region25: #{han_forward.1} parent=1 // pred_fallthru
      _
    // Predicated region
    $region26: #{han_forward.1} parent=1 // pred_check
      _
    $region27: #{han_forward.1} parent=1 // pred_check_branch
      %36 = sbr.rel (0) target = $region29
    $region28: #{han_forward.1} parent=1 // pred_region
      _
    $region29: #{han_forward.1} parent=1 // pred_fallthru
      _
    // Predicated region
    $region30: #{han_forward.1} parent=1 // pred_check
      _
    $region31: #{han_forward.1} parent=1 // pred_check_branch
      %38 = sbr.rel (0) target = $region33
    $region32: #{han_forward.1} parent=1 // pred_region
      _
    $region33: #{han_forward.1} parent=1 // pred_fallthru
      _
    // Predicated region
    $region34: #{han_forward.1} parent=1 // pred_check
      _
    $region35: #{han_forward.1} parent=1 // pred_check_branch
      %40 = sbr.rel (0) target = $region37
    $region36: #{han_forward.1} parent=1 // pred_region
      _
    $region37: #{han_forward.1} parent=1 // pred_fallthru
      _
    // Predicated region
    $region38: #{han_forward.1} parent=1 // pred_check
      _
    $region39: #{han_forward.1} parent=1 // pred_check_branch
      %42 = sbr.rel (0) target = $region41
    $region40: #{han_forward.1} parent=1 // pred_region
      _
    $region41: #{han_forward.1} parent=1 // pred_fallthru
      _
    // Predicated region
    $region42: #{han_forward.1} parent=1 // pred_check
      _
    $region43: #{han_forward.1} parent=1 // pred_check_branch
      %44 = sbr.rel (0) target = $region45
    $region44: #{han_forward.1} parent=1 // pred_region
      _
    $region45: #{han_forward.1} parent=1 // pred_fallthru
      _
    // Predicated region
    $region46: #{han_forward.1} parent=1 // pred_check
      _
    $region47: #{han_forward.1} parent=1 // pred_check_branch
      %46 = sbr.rel (0) target = $region49
    $region48: #{han_forward.1} parent=1 // pred_region
      _
    $region49: #{han_forward.1} parent=1 // pred_fallthru
      _
    // Predicated region
    $region50: #{han_forward.1} parent=1 // pred_check
      _
    $region51: #{han_forward.1} parent=1 // pred_check_branch
      %48 = sbr.rel (0) target = $region53
    $region52: #{han_forward.1} parent=1 // pred_region
      _
    $region53: #{han_forward.1} parent=1 // pred_fallthru
      _
    // Predicated region
    $region54: #{han_forward.1} parent=1 // pred_check
      _
    $region55: #{han_forward.1} parent=1 // pred_check_branch
      %50 = sbr.rel (0) target = $region57
    $region56: #{han_forward.1} parent=1 // pred_region
      _
    $region57: #{han_forward.1} parent=1 // pred_fallthru
      _
    // Predicated region
    $region58: #{han_forward.1} parent=1 // pred_check
      _
    $region59: #{han_forward.1} parent=1 // pred_check_branch
      %52 = sbr.rel (0) target = $region61
    $region60: #{han_forward.1} parent=1 // pred_region
      _
    $region61: #{han_forward.1} parent=1 // pred_fallthru
      _
    %v53 = vld [vmem:[%s0] sm:$0xff]
    %v54 = vld [vmem:[%s0 + $0x8] sm:$0x3]
    %v55 = vld [vmem:[%s2] sm:$0xff]
    %v56 = vld [vmem:[%s2 + $0x8] sm:$0xff]
    %v57 = vld [vmem:[%s4] sm:$0x1]
    %v59 = vlaneseq
    %v60 = vshrl.u32 %v59, 7
    %v61 = vsub.s32 0, %v60
    %v62 = vrot.slane %v57, %v61
    %vm64 = vcmask 130048
    %v66 = vsel %vm64, %v53, 0
    %v69 = vsel %vm64, %v54, 0
    %71 = vmatprep.subr.mxu0 0.0
    %72 = vmatpush1.msra.mxu0 %v55
    %73 = vmatprep.subr.mxu0 0.0
    %74 = vmatpush1.msra.mxu0 %v56
    %75 = vmatprep.subr.mxu0 0.0
    %76 = vmatpush1.msra.mxu0 0.0
    %77 = vmatprep.subr.mxu0 0.0
    %78 = vmatpush1.msra.mxu0 0.0
    %79 = vmatprep.subr.mxu0 0.0
    %80 = vmatpush1.msra.mxu0 0.0
    %81 = vmatprep.subr.mxu0 0.0
    %82 = vmatpush1.msra.mxu0 0.0
    %83 = vmatprep.subr.mxu0 0.0
    %84 = vmatpush1.msra.mxu0 0.0
    %85 = vmatprep.subr.mxu0 0.0
    %86 = vmatpush1.msra.mxu0 0.0
    %87 = vmatprep.subr.mxu0 0.0
    %88 = vmatpush1.msra.mxu0 0.0
    %89 = vmatprep.subr.mxu0 0.0
    %90 = vmatpush1.msra.mxu0 0.0
    %91 = vmatprep.subr.mxu0 0.0
    %92 = vmatpush1.msra.mxu0 0.0
    %93 = vmatprep.subr.mxu0 0.0
    %94 = vmatpush1.msra.mxu0 0.0
    %95 = vmatprep.subr.mxu0 0.0
    %96 = vmatpush1.msra.mxu0 0.0
    %97 = vmatprep.subr.mxu0 0.0
    %98 = vmatpush1.msra.mxu0 0.0
    %99 = vmatprep.subr.mxu0 0.0
    %100 = vmatpush1.msra.mxu0 0.0
    %101 = vmatprep.subr.mxu0 0.0
    %102 = vmatpush1.msra.mxu0 0.0
    %103 = vmatprep.subr.mxu0 0.0
    %104 = vmatpush1.msra.mxu0 0.0
    %105 = vmatprep.subr.mxu0 0.0
    %106 = vmatpush1.msra.mxu0 0.0
    %107 = vmatprep.subr.mxu0 0.0
    %108 = vmatpush1.msra.mxu0 0.0
    %109 = vmatprep.subr.mxu0 0.0
    %110 = vmatpush1.msra.mxu0 0.0
    %111 = vmatprep.subr.mxu0 0.0
    %112 = vmatpush1.msra.mxu0 0.0
    %113 = vmatprep.subr.mxu0 0.0
    %114 = vmatpush1.msra.mxu0 0.0
    %115 = vmatprep.subr.mxu0 0.0
    %116 = vmatpush1.msra.mxu0 0.0
    %117 = vmatprep.subr.mxu0 0.0
    %118 = vmatpush1.msra.mxu0 0.0
    %119 = vmatprep.subr.mxu0 0.0
    %120 = vmatpush1.msra.mxu0 0.0
    %121 = vmatprep.subr.mxu0 0.0
    %122 = vmatpush1.msra.mxu0 0.0
    %123 = vmatprep.subr.mxu0 0.0
    %124 = vmatpush1.msra.mxu0 0.0
    %125 = vmatprep.subr.mxu0 0.0
    %126 = vmatpush1.msra.mxu0 0.0
    %127 = vmatprep.subr.mxu0 0.0
    %128 = vmatpush1.msra.mxu0 0.0
    %129 = vmatprep.subr.mxu0 0.0
    %130 = vmatpush1.msra.mxu0 0.0
    %131 = vmatprep.subr.mxu0 0.0
    %132 = vmatpush1.msra.mxu0 0.0
    %133 = vmatprep.subr.mxu0 0.0
    %134 = vmatpush1.msra.mxu0 0.0
    %135 = vmatprep.mubr.f32.mxu0 0.0
    %136 = vmatmul.mubr.f32.gmra.mrb[0].mxu0 %v66
    %v137 = vpop.f32.mrb[0].mxu0
    %v138 = vadd.f32 %v62, %v137
    %v139 = vpop.f32.mrb[0].mxu0
    %140 = vmatprep.mubr.f32.mxu0 0.0
    %141 = vmatmul.mubr.f32.gmra.mrb[0].mxu0 %v69
    %v142 = vpop.f32.mrb[0].mxu0
    %v143 = vadd.f32 %v62, %v142
    %v144 = vpop.f32.mrb[0].mxu0
    %145 = vdwg.mxu0
    %v146 = vld [vmem:[%s3] sm:$0xff]
    %v147 = vld [vmem:[%s3 + $0x8] sm:$0xff]
    %v148 = vld [vmem:[%s3 + $0x10] sm:$0xff]
    %v149 = vld [vmem:[%s3 + $0x18] sm:$0xff]
    %v150 = vld [vmem:[%s5] sm:$0x1]
    %vm151 = vcmask 261120
    %v153 = vsel %vm151, 0.0, 0
    %155 = vmatprep.subr.mxu0 0.0
    %156 = vmatpush1.msra.mxu0 %v146
    %157 = vmatprep.subr.mxu0 0.0
    %158 = vmatpush1.msra.mxu0 %v147
    %159 = vmatprep.subr.mxu0 0.0
    %160 = vmatpush1.msra.mxu0 %v148
    %161 = vmatprep.subr.mxu0 0.0
    %162 = vmatpush1.msra.mxu0 %v149
    %163 = vmatprep.subr.mxu0 0.0
    %164 = vmatpush1.msra.mxu0 0.0
    %165 = vmatprep.subr.mxu0 0.0
    %166 = vmatpush1.msra.mxu0 0.0
    %167 = vmatprep.subr.mxu0 0.0
    %168 = vmatpush1.msra.mxu0 0.0
    %169 = vmatprep.subr.mxu0 0.0
    %170 = vmatpush1.msra.mxu0 0.0
    %171 = vmatprep.subr.mxu0 0.0
    %172 = vmatpush1.msra.mxu0 0.0
    %173 = vmatprep.subr.mxu0 0.0
    %174 = vmatpush1.msra.mxu0 0.0
    %175 = vmatprep.subr.mxu0 0.0
    %176 = vmatpush1.msra.mxu0 0.0
    %177 = vmatprep.subr.mxu0 0.0
    %178 = vmatpush1.msra.mxu0 0.0
    %179 = vmatprep.subr.mxu0 0.0
    %180 = vmatpush1.msra.mxu0 0.0
    %181 = vmatprep.subr.mxu0 0.0
    %182 = vmatpush1.msra.mxu0 0.0
    %183 = vmatprep.subr.mxu0 0.0
    %184 = vmatpush1.msra.mxu0 0.0
    %185 = vmatprep.subr.mxu0 0.0
    %186 = vmatpush1.msra.mxu0 0.0
    %187 = vmatprep.subr.mxu0 0.0
    %188 = vmatpush1.msra.mxu0 0.0
    %189 = vmatprep.subr.mxu0 0.0
    %190 = vmatpush1.msra.mxu0 0.0
    %191 = vmatprep.subr.mxu0 0.0
    %192 = vmatpush1.msra.mxu0 0.0
    %193 = vmatprep.subr.mxu0 0.0
    %194 = vmatpush1.msra.mxu0 0.0
    %195 = vmatprep.subr.mxu0 0.0
    %196 = vmatpush1.msra.mxu0 0.0
    %197 = vmatprep.subr.mxu0 0.0
    %198 = vmatpush1.msra.mxu0 0.0
    %199 = vmatprep.subr.mxu0 0.0
    %200 = vmatpush1.msra.mxu0 0.0
    %201 = vmatprep.subr.mxu0 0.0
    %202 = vmatpush1.msra.mxu0 0.0
    %203 = vmatprep.subr.mxu0 0.0
    %204 = vmatpush1.msra.mxu0 0.0
    %205 = vmatprep.subr.mxu0 0.0
    %206 = vmatpush1.msra.mxu0 0.0
    %207 = vmatprep.subr.mxu0 0.0
    %208 = vmatpush1.msra.mxu0 0.0
    %209 = vmatprep.subr.mxu0 0.0
    %210 = vmatpush1.msra.mxu0 0.0
    %211 = vmatprep.subr.mxu0 0.0
    %212 = vmatpush1.msra.mxu0 0.0
    %213 = vmatprep.subr.mxu0 0.0
    %214 = vmatpush1.msra.mxu0 0.0
    %215 = vmatprep.subr.mxu0 0.0
    %216 = vmatpush1.msra.mxu0 0.0
    %217 = vmatprep.subr.mxu0 0.0
    %218 = vmatpush1.msra.mxu0 0.0
    %219 = vmatprep.mubr.f32.mxu0 0.0
    %220 = vmatmul.mubr.f32.gmra.mrb[0].mxu0 %v153
    %v221 = vpop.f32.mrb[0].mxu0
    %v222 = vadd.f32 %v150, %v221
    %v223 = vpop.f32.mrb[0].mxu0
    %224 = vdwg.mxu0
    %v225 = vadd.f32 %v138, %v222
    %v226 = vxor.u32 %v225, 2147483648
    %v227 = vmul.f32 %v226, 1.442695
    %v228 = vpow.pop %v227
    %v229 = vadd.f32 %v228, 1.0
    %v230 = vrcp.pop %v229
    %v231 = vmul.f32 1.0, %v230
    %233 = vrot.lane.b32.xlu0 %v222, 64
    %v234 = vpop.permute.xlu0 %233
    %v236 = vmul.f32 %v231, %v234
    %238 = vrot.lane.b32.xlu0 %v236, 64
    %v239 = vpop.permute.xlu0 %238
    %v241 = vadd.f32 %v138, %v239
    %v242 = vtanh.pop %v241
    %v243 = vsub.f32 1.0, %v231
    %245 = vrot.lane.b32.xlu0 %v242, 96
    %v246 = vpop.permute.xlu0 %245
    %v248 = vmul.f32 %v243, %v246
    %v249 = vmul.f32 %v231, 0.0
    %v250 = vadd.f32 %v248, %v249
    %252 = vrot.lane.b32.xlu0 %v250, 96
    %v253 = vpop.permute.xlu0 %252
    %v254 = vsel %vm151, %v253, 0
    %256 = vmatprep.subr.mxu0 0.0
    %257 = vmatpush1.msra.mxu0 %v146
    %258 = vmatprep.subr.mxu0 0.0
    %259 = vmatpush1.msra.mxu0 %v147
    %260 = vmatprep.subr.mxu0 0.0
    %261 = vmatpush1.msra.mxu0 %v148
    %262 = vmatprep.subr.mxu0 0.0
    %263 = vmatpush1.msra.mxu0 %v149
    %264 = vmatprep.subr.mxu0 0.0
    %265 = vmatpush1.msra.mxu0 0.0
    %266 = vmatprep.subr.mxu0 0.0
    %267 = vmatpush1.msra.mxu0 0.0
    %268 = vmatprep.subr.mxu0 0.0
    %269 = vmatpush1.msra.mxu0 0.0
    %270 = vmatprep.subr.mxu0 0.0
    %271 = vmatpush1.msra.mxu0 0.0
    %272 = vmatprep.subr.mxu0 0.0
    %273 = vmatpush1.msra.mxu0 0.0
    %274 = vmatprep.subr.mxu0 0.0
    %275 = vmatpush1.msra.mxu0 0.0
    %276 = vmatprep.subr.mxu0 0.0
    %277 = vmatpush1.msra.mxu0 0.0
    %278 = vmatprep.subr.mxu0 0.0
    %279 = vmatpush1.msra.mxu0 0.0
    %280 = vmatprep.subr.mxu0 0.0
    %281 = vmatpush1.msra.mxu0 0.0
    %282 = vmatprep.subr.mxu0 0.0
    %283 = vmatpush1.msra.mxu0 0.0
    %284 = vmatprep.subr.mxu0 0.0
    %285 = vmatpush1.msra.mxu0 0.0
    %286 = vmatprep.subr.mxu0 0.0
    %287 = vmatpush1.msra.mxu0 0.0
    %288 = vmatprep.subr.mxu0 0.0
    %289 = vmatpush1.msra.mxu0 0.0
    %290 = vmatprep.subr.mxu0 0.0
    %291 = vmatpush1.msra.mxu0 0.0
    %292 = vmatprep.subr.mxu0 0.0
    %293 = vmatpush1.msra.mxu0 0.0
    %294 = vmatprep.subr.mxu0 0.0
    %295 = vmatpush1.msra.mxu0 0.0
    %296 = vmatprep.subr.mxu0 0.0
    %297 = vmatpush1.msra.mxu0 0.0
    %298 = vmatprep.subr.mxu0 0.0
    %299 = vmatpush1.msra.mxu0 0.0
    %300 = vmatprep.subr.mxu0 0.0
    %301 = vmatpush1.msra.mxu0 0.0
    %302 = vmatprep.subr.mxu0 0.0
    %303 = vmatpush1.msra.mxu0 0.0
    %304 = vmatprep.subr.mxu0 0.0
    %305 = vmatpush1.msra.mxu0 0.0
    %306 = vmatprep.subr.mxu0 0.0
    %307 = vmatpush1.msra.mxu0 0.0
    %308 = vmatprep.subr.mxu0 0.0
    %309 = vmatpush1.msra.mxu0 0.0
    %310 = vmatprep.subr.mxu0 0.0
    %311 = vmatpush1.msra.mxu0 0.0
    %312 = vmatprep.subr.mxu0 0.0
    %313 = vmatpush1.msra.mxu0 0.0
    %314 = vmatprep.subr.mxu0 0.0
    %315 = vmatpush1.msra.mxu0 0.0
    %316 = vmatprep.subr.mxu0 0.0
    %317 = vmatpush1.msra.mxu0 0.0
    %318 = vmatprep.subr.mxu0 0.0
    %319 = vmatpush1.msra.mxu0 0.0
    %320 = vmatprep.mubr.f32.mxu0 0.0
    %321 = vmatmul.mubr.f32.gmra.mrb[0].mxu0 %v254
    %v322 = vpop.f32.mrb[0].mxu0
    %v323 = vadd.f32 %v150, %v322
    %v324 = vpop.f32.mrb[0].mxu0
    %325 = vdwg.mxu0
    %v327 = vrot.slane %v323, 7
    %v329 = vadd.f32 %v138, %v327
    %v330 = vxor.u32 %v329, 2147483648
    %v331 = vmul.f32 %v330, 1.442695
    %v332 = vpow.pop %v331
    %v333 = vadd.f32 %v332, 1.0
    %v334 = vrcp.pop %v333
    %v335 = vmul.f32 1.0, %v334
    %336 = vrot.lane.b32.xlu0 %v327, 64
    %v337 = vpop.permute.xlu0 %336
    %v339 = vmul.f32 %v335, %v337
    %341 = vrot.lane.b32.xlu0 %v339, 64
    %v342 = vpop.permute.xlu0 %341
    %v344 = vadd.f32 %v138, %v342
    %v345 = vtanh.pop %v344
    %v346 = vsub.f32 1.0, %v335
    %348 = vrot.lane.b32.xlu0 %v345, 96
    %v349 = vpop.permute.xlu0 %348
    %v351 = vmul.f32 %v346, %v349
    %v352 = vrot.slane %v250, 7
    %v354 = vmul.f32 %v335, %v352
    %v355 = vadd.f32 %v351, %v354
    %v357 = vrot.slane %v355, 1
    %358 = vrot.lane.b32.xlu0 %v357, 96
    %v359 = vpop.permute.xlu0 %358
    %v360 = vsel %vm151, %v359, 0
    %362 = vmatprep.subr.mxu0 0.0
    %363 = vmatpush1.msra.mxu0 %v146
    %364 = vmatprep.subr.mxu0 0.0
    %365 = vmatpush1.msra.mxu0 %v147
    %366 = vmatprep.subr.mxu0 0.0
    %367 = vmatpush1.msra.mxu0 %v148
    %368 = vmatprep.subr.mxu0 0.0
    %369 = vmatpush1.msra.mxu0 %v149
    %370 = vmatprep.subr.mxu0 0.0
    %371 = vmatpush1.msra.mxu0 0.0
    %372 = vmatprep.subr.mxu0 0.0
    %373 = vmatpush1.msra.mxu0 0.0
    %374 = vmatprep.subr.mxu0 0.0
    %375 = vmatpush1.msra.mxu0 0.0
    %376 = vmatprep.subr.mxu0 0.0
    %377 = vmatpush1.msra.mxu0 0.0
    %378 = vmatprep.subr.mxu0 0.0
    %379 = vmatpush1.msra.mxu0 0.0
    %380 = vmatprep.subr.mxu0 0.0
    %381 = vmatpush1.msra.mxu0 0.0
    %382 = vmatprep.subr.mxu0 0.0
    %383 = vmatpush1.msra.mxu0 0.0
    %384 = vmatprep.subr.mxu0 0.0
    %385 = vmatpush1.msra.mxu0 0.0
    %386 = vmatprep.subr.mxu0 0.0
    %387 = vmatpush1.msra.mxu0 0.0
    %388 = vmatprep.subr.mxu0 0.0
    %389 = vmatpush1.msra.mxu0 0.0
    %390 = vmatprep.subr.mxu0 0.0
    %391 = vmatpush1.msra.mxu0 0.0
    %392 = vmatprep.subr.mxu0 0.0
    %393 = vmatpush1.msra.mxu0 0.0
    %394 = vmatprep.subr.mxu0 0.0
    %395 = vmatpush1.msra.mxu0 0.0
    %396 = vmatprep.subr.mxu0 0.0
    %397 = vmatpush1.msra.mxu0 0.0
    %398 = vmatprep.subr.mxu0 0.0
    %399 = vmatpush1.msra.mxu0 0.0
    %400 = vmatprep.subr.mxu0 0.0
    %401 = vmatpush1.msra.mxu0 0.0
    %402 = vmatprep.subr.mxu0 0.0
    %403 = vmatpush1.msra.mxu0 0.0
    %404 = vmatprep.subr.mxu0 0.0
    %405 = vmatpush1.msra.mxu0 0.0
    %406 = vmatprep.subr.mxu0 0.0
    %407 = vmatpush1.msra.mxu0 0.0
    %408 = vmatprep.subr.mxu0 0.0
    %409 = vmatpush1.msra.mxu0 0.0
    %410 = vmatprep.subr.mxu0 0.0
    %411 = vmatpush1.msra.mxu0 0.0
    %412 = vmatprep.subr.mxu0 0.0
    %413 = vmatpush1.msra.mxu0 0.0
    %414 = vmatprep.subr.mxu0 0.0
    %415 = vmatpush1.msra.mxu0 0.0
    %416 = vmatprep.subr.mxu0 0.0
    %417 = vmatpush1.msra.mxu0 0.0
    %418 = vmatprep.subr.mxu0 0.0
    %419 = vmatpush1.msra.mxu0 0.0
    %420 = vmatprep.subr.mxu0 0.0
    %421 = vmatpush1.msra.mxu0 0.0
    %422 = vmatprep.subr.mxu0 0.0
    %423 = vmatpush1.msra.mxu0 0.0
    %424 = vmatprep.subr.mxu0 0.0
    %425 = vmatpush1.msra.mxu0 0.0
    %426 = vmatprep.mubr.f32.mxu0 0.0
    %427 = vmatmul.mubr.f32.gmra.mrb[0].mxu0 %v360
    %v428 = vpop.f32.mrb[0].mxu0
    %v429 = vadd.f32 %v150, %v428
    %v430 = vpop.f32.mrb[0].mxu0
    %431 = vdwg.mxu0
    %v433 = vrot.slane %v429, 6
    %v435 = vadd.f32 %v138, %v433
    %v436 = vxor.u32 %v435, 2147483648
    %v437 = vmul.f32 %v436, 1.442695
    %v438 = vpow.pop %v437
    %v439 = vadd.f32 %v438, 1.0
    %v440 = vrcp.pop %v439
    %v441 = vmul.f32 1.0, %v440
    %442 = vrot.lane.b32.xlu0 %v433, 64
    %v443 = vpop.permute.xlu0 %442
    %v445 = vmul.f32 %v441, %v443
    %447 = vrot.lane.b32.xlu0 %v445, 64
    %v448 = vpop.permute.xlu0 %447
    %v450 = vadd.f32 %v138, %v448
    %v451 = vtanh.pop %v450
    %v452 = vsub.f32 1.0, %v441
    %454 = vrot.lane.b32.xlu0 %v451, 96
    %v455 = vpop.permute.xlu0 %454
    %v457 = vmul.f32 %v452, %v455
    %v458 = vrot.slane %v355, 7
    %v460 = vmul.f32 %v441, %v458
    %v461 = vadd.f32 %v457, %v460
    %v463 = vrot.slane %v461, 2
    %464 = vrot.lane.b32.xlu0 %v463, 96
    %v465 = vpop.permute.xlu0 %464
    %v466 = vsel %vm151, %v465, 0
    %468 = vmatprep.subr.mxu0 0.0
    %469 = vmatpush1.msra.mxu0 %v146
    %470 = vmatprep.subr.mxu0 0.0
    %471 = vmatpush1.msra.mxu0 %v147
    %472 = vmatprep.subr.mxu0 0.0
    %473 = vmatpush1.msra.mxu0 %v148
    %474 = vmatprep.subr.mxu0 0.0
    %475 = vmatpush1.msra.mxu0 %v149
    %476 = vmatprep.subr.mxu0 0.0
    %477 = vmatpush1.msra.mxu0 0.0
    %478 = vmatprep.subr.mxu0 0.0
    %479 = vmatpush1.msra.mxu0 0.0
    %480 = vmatprep.subr.mxu0 0.0
    %481 = vmatpush1.msra.mxu0 0.0
    %482 = vmatprep.subr.mxu0 0.0
    %483 = vmatpush1.msra.mxu0 0.0
    %484 = vmatprep.subr.mxu0 0.0
    %485 = vmatpush1.msra.mxu0 0.0
    %486 = vmatprep.subr.mxu0 0.0
    %487 = vmatpush1.msra.mxu0 0.0
    %488 = vmatprep.subr.mxu0 0.0
    %489 = vmatpush1.msra.mxu0 0.0
    %490 = vmatprep.subr.mxu0 0.0
    %491 = vmatpush1.msra.mxu0 0.0
    %492 = vmatprep.subr.mxu0 0.0
    %493 = vmatpush1.msra.mxu0 0.0
    %494 = vmatprep.subr.mxu0 0.0
    %495 = vmatpush1.msra.mxu0 0.0
    %496 = vmatprep.subr.mxu0 0.0
    %497 = vmatpush1.msra.mxu0 0.0
    %498 = vmatprep.subr.mxu0 0.0
    %499 = vmatpush1.msra.mxu0 0.0
    %500 = vmatprep.subr.mxu0 0.0
    %501 = vmatpush1.msra.mxu0 0.0
    %502 = vmatprep.subr.mxu0 0.0
    %503 = vmatpush1.msra.mxu0 0.0
    %504 = vmatprep.subr.mxu0 0.0
    %505 = vmatpush1.msra.mxu0 0.0
    %506 = vmatprep.subr.mxu0 0.0
    %507 = vmatpush1.msra.mxu0 0.0
    %508 = vmatprep.subr.mxu0 0.0
    %509 = vmatpush1.msra.mxu0 0.0
    %510 = vmatprep.subr.mxu0 0.0
    %511 = vmatpush1.msra.mxu0 0.0
    %512 = vmatprep.subr.mxu0 0.0
    %513 = vmatpush1.msra.mxu0 0.0
    %514 = vmatprep.subr.mxu0 0.0
    %515 = vmatpush1.msra.mxu0 0.0
    %516 = vmatprep.subr.mxu0 0.0
    %517 = vmatpush1.msra.mxu0 0.0
    %518 = vmatprep.subr.mxu0 0.0
    %519 = vmatpush1.msra.mxu0 0.0
    %520 = vmatprep.subr.mxu0 0.0
    %521 = vmatpush1.msra.mxu0 0.0
    %522 = vmatprep.subr.mxu0 0.0
    %523 = vmatpush1.msra.mxu0 0.0
    %524 = vmatprep.subr.mxu0 0.0
    %525 = vmatpush1.msra.mxu0 0.0
    %526 = vmatprep.subr.mxu0 0.0
    %527 = vmatpush1.msra.mxu0 0.0
    %528 = vmatprep.subr.mxu0 0.0
    %529 = vmatpush1.msra.mxu0 0.0
    %530 = vmatprep.subr.mxu0 0.0
    %531 = vmatpush1.msra.mxu0 0.0
    %532 = vmatprep.mubr.f32.mxu0 0.0
    %533 = vmatmul.mubr.f32.gmra.mrb[0].mxu0 %v466
    %v534 = vpop.f32.mrb[0].mxu0
    %v535 = vadd.f32 %v150, %v534
    %v536 = vpop.f32.mrb[0].mxu0
    %537 = vdwg.mxu0
    %v539 = vrot.slane %v535, 5
    %v541 = vadd.f32 %v138, %v539
    %v542 = vxor.u32 %v541, 2147483648
    %v543 = vmul.f32 %v542, 1.442695
    %v544 = vpow.pop %v543
    %v545 = vadd.f32 %v544, 1.0
    %v546 = vrcp.pop %v545
    %v547 = vmul.f32 1.0, %v546
    %548 = vrot.lane.b32.xlu0 %v539, 64
    %v549 = vpop.permute.xlu0 %548
    %v551 = vmul.f32 %v547, %v549
    %553 = vrot.lane.b32.xlu0 %v551, 64
    %v554 = vpop.permute.xlu0 %553
    %v556 = vadd.f32 %v138, %v554
    %v557 = vtanh.pop %v556
    %v558 = vsub.f32 1.0, %v547
    %560 = vrot.lane.b32.xlu0 %v557, 96
    %v561 = vpop.permute.xlu0 %560
    %v563 = vmul.f32 %v558, %v561
    %v564 = vrot.slane %v461, 7
    %v566 = vmul.f32 %v547, %v564
    %v567 = vadd.f32 %v563, %v566
    %v569 = vrot.slane %v567, 3
    %570 = vrot.lane.b32.xlu0 %v569, 96
    %v571 = vpop.permute.xlu0 %570
    %v572 = vsel %vm151, %v571, 0
    %574 = vmatprep.subr.mxu0 0.0
    %575 = vmatpush1.msra.mxu0 %v146
    %576 = vmatprep.subr.mxu0 0.0
    %577 = vmatpush1.msra.mxu0 %v147
    %578 = vmatprep.subr.mxu0 0.0
    %579 = vmatpush1.msra.mxu0 %v148
    %580 = vmatprep.subr.mxu0 0.0
    %581 = vmatpush1.msra.mxu0 %v149
    %582 = vmatprep.subr.mxu0 0.0
    %583 = vmatpush1.msra.mxu0 0.0
    %584 = vmatprep.subr.mxu0 0.0
    %585 = vmatpush1.msra.mxu0 0.0
    %586 = vmatprep.subr.mxu0 0.0
    %587 = vmatpush1.msra.mxu0 0.0
    %588 = vmatprep.subr.mxu0 0.0
    %589 = vmatpush1.msra.mxu0 0.0
    %590 = vmatprep.subr.mxu0 0.0
    %591 = vmatpush1.msra.mxu0 0.0
    %592 = vmatprep.subr.mxu0 0.0
    %593 = vmatpush1.msra.mxu0 0.0
    %594 = vmatprep.subr.mxu0 0.0
    %595 = vmatpush1.msra.mxu0 0.0
    %596 = vmatprep.subr.mxu0 0.0
    %597 = vmatpush1.msra.mxu0 0.0
    %598 = vmatprep.subr.mxu0 0.0
    %599 = vmatpush1.msra.mxu0 0.0
    %600 = vmatprep.subr.mxu0 0.0
    %601 = vmatpush1.msra.mxu0 0.0
    %602 = vmatprep.subr.mxu0 0.0
    %603 = vmatpush1.msra.mxu0 0.0
    %604 = vmatprep.subr.mxu0 0.0
    %605 = vmatpush1.msra.mxu0 0.0
    %606 = vmatprep.subr.mxu0 0.0
    %607 = vmatpush1.msra.mxu0 0.0
    %608 = vmatprep.subr.mxu0 0.0
    %609 = vmatpush1.msra.mxu0 0.0
    %610 = vmatprep.subr.mxu0 0.0
    %611 = vmatpush1.msra.mxu0 0.0
    %612 = vmatprep.subr.mxu0 0.0
    %613 = vmatpush1.msra.mxu0 0.0
    %614 = vmatprep.subr.mxu0 0.0
    %615 = vmatpush1.msra.mxu0 0.0
    %616 = vmatprep.subr.mxu0 0.0
    %617 = vmatpush1.msra.mxu0 0.0
    %618 = vmatprep.subr.mxu0 0.0
    %619 = vmatpush1.msra.mxu0 0.0
    %620 = vmatprep.subr.mxu0 0.0
    %621 = vmatpush1.msra.mxu0 0.0
    %622 = vmatprep.subr.mxu0 0.0
    %623 = vmatpush1.msra.mxu0 0.0
    %624 = vmatprep.subr.mxu0 0.0
    %625 = vmatpush1.msra.mxu0 0.0
    %626 = vmatprep.subr.mxu0 0.0
    %627 = vmatpush1.msra.mxu0 0.0
    %628 = vmatprep.subr.mxu0 0.0
    %629 = vmatpush1.msra.mxu0 0.0
    %630 = vmatprep.subr.mxu0 0.0
    %631 = vmatpush1.msra.mxu0 0.0
    %632 = vmatprep.subr.mxu0 0.0
    %633 = vmatpush1.msra.mxu0 0.0
    %634 = vmatprep.subr.mxu0 0.0
    %635 = vmatpush1.msra.mxu0 0.0
    %636 = vmatprep.subr.mxu0 0.0
    %637 = vmatpush1.msra.mxu0 0.0
    %638 = vmatprep.mubr.f32.mxu0 0.0
    %639 = vmatmul.mubr.f32.gmra.mrb[0].mxu0 %v572
    %v640 = vpop.f32.mrb[0].mxu0
    %v641 = vadd.f32 %v150, %v640
    %v642 = vpop.f32.mrb[0].mxu0
    %643 = vdwg.mxu0
    %v645 = vrot.slane %v641, 4
    %v647 = vadd.f32 %v138, %v645
    %v648 = vxor.u32 %v647, 2147483648
    %v649 = vmul.f32 %v648, 1.442695
    %v650 = vpow.pop %v649
    %v651 = vadd.f32 %v650, 1.0
    %v652 = vrcp.pop %v651
    %v653 = vmul.f32 1.0, %v652
    %654 = vrot.lane.b32.xlu0 %v645, 64
    %v655 = vpop.permute.xlu0 %654
    %v657 = vmul.f32 %v653, %v655
    %659 = vrot.lane.b32.xlu0 %v657, 64
    %v660 = vpop.permute.xlu0 %659
    %v662 = vadd.f32 %v138, %v660
    %v663 = vtanh.pop %v662
    %v664 = vsub.f32 1.0, %v653
    %666 = vrot.lane.b32.xlu0 %v663, 96
    %v667 = vpop.permute.xlu0 %666
    %v669 = vmul.f32 %v664, %v667
    %v670 = vrot.slane %v567, 7
    %v672 = vmul.f32 %v653, %v670
    %v673 = vadd.f32 %v669, %v672
    %v675 = vrot.slane %v673, 4
    %676 = vrot.lane.b32.xlu0 %v675, 96
    %v677 = vpop.permute.xlu0 %676
    %v678 = vsel %vm151, %v677, 0
    %680 = vmatprep.subr.mxu0 0.0
    %681 = vmatpush1.msra.mxu0 %v146
    %682 = vmatprep.subr.mxu0 0.0
    %683 = vmatpush1.msra.mxu0 %v147
    %684 = vmatprep.subr.mxu0 0.0
    %685 = vmatpush1.msra.mxu0 %v148
    %686 = vmatprep.subr.mxu0 0.0
    %687 = vmatpush1.msra.mxu0 %v149
    %688 = vmatprep.subr.mxu0 0.0
    %689 = vmatpush1.msra.mxu0 0.0
    %690 = vmatprep.subr.mxu0 0.0
    %691 = vmatpush1.msra.mxu0 0.0
    %692 = vmatprep.subr.mxu0 0.0
    %693 = vmatpush1.msra.mxu0 0.0
    %694 = vmatprep.subr.mxu0 0.0
    %695 = vmatpush1.msra.mxu0 0.0
    %696 = vmatprep.subr.mxu0 0.0
    %697 = vmatpush1.msra.mxu0 0.0
    %698 = vmatprep.subr.mxu0 0.0
    %699 = vmatpush1.msra.mxu0 0.0
    %700 = vmatprep.subr.mxu0 0.0
    %701 = vmatpush1.msra.mxu0 0.0
    %702 = vmatprep.subr.mxu0 0.0
    %703 = vmatpush1.msra.mxu0 0.0
    %704 = vmatprep.subr.mxu0 0.0
    %705 = vmatpush1.msra.mxu0 0.0
    %706 = vmatprep.subr.mxu0 0.0
    %707 = vmatpush1.msra.mxu0 0.0
    %708 = vmatprep.subr.mxu0 0.0
    %709 = vmatpush1.msra.mxu0 0.0
    %710 = vmatprep.subr.mxu0 0.0
    %711 = vmatpush1.msra.mxu0 0.0
    %712 = vmatprep.subr.mxu0 0.0
    %713 = vmatpush1.msra.mxu0 0.0
    %714 = vmatprep.subr.mxu0 0.0
    %715 = vmatpush1.msra.mxu0 0.0
    %716 = vmatprep.subr.mxu0 0.0
    %717 = vmatpush1.msra.mxu0 0.0
    %718 = vmatprep.subr.mxu0 0.0
    %719 = vmatpush1.msra.mxu0 0.0
    %720 = vmatprep.subr.mxu0 0.0
    %721 = vmatpush1.msra.mxu0 0.0
    %722 = vmatprep.subr.mxu0 0.0
    %723 = vmatpush1.msra.mxu0 0.0
    %724 = vmatprep.subr.mxu0 0.0
    %725 = vmatpush1.msra.mxu0 0.0
    %726 = vmatprep.subr.mxu0 0.0
    %727 = vmatpush1.msra.mxu0 0.0
    %728 = vmatprep.subr.mxu0 0.0
    %729 = vmatpush1.msra.mxu0 0.0
    %730 = vmatprep.subr.mxu0 0.0
    %731 = vmatpush1.msra.mxu0 0.0
    %732 = vmatprep.subr.mxu0 0.0
    %733 = vmatpush1.msra.mxu0 0.0
    %734 = vmatprep.subr.mxu0 0.0
    %735 = vmatpush1.msra.mxu0 0.0
    %736 = vmatprep.subr.mxu0 0.0
    %737 = vmatpush1.msra.mxu0 0.0
    %738 = vmatprep.subr.mxu0 0.0
    %739 = vmatpush1.msra.mxu0 0.0
    %740 = vmatprep.subr.mxu0 0.0
    %741 = vmatpush1.msra.mxu0 0.0
    %742 = vmatprep.subr.mxu0 0.0
    %743 = vmatpush1.msra.mxu0 0.0
    %744 = vmatprep.mubr.f32.mxu0 0.0
    %745 = vmatmul.mubr.f32.gmra.mrb[0].mxu0 %v678
    %v746 = vpop.f32.mrb[0].mxu0
    %v747 = vadd.f32 %v150, %v746
    %v748 = vpop.f32.mrb[0].mxu0
    %749 = vdwg.mxu0
    %v751 = vrot.slane %v747, 3
    %v753 = vadd.f32 %v138, %v751
    %v754 = vxor.u32 %v753, 2147483648
    %v755 = vmul.f32 %v754, 1.442695
    %v756 = vpow.pop %v755
    %v757 = vadd.f32 %v756, 1.0
    %v758 = vrcp.pop %v757
    %v759 = vmul.f32 1.0, %v758
    %760 = vrot.lane.b32.xlu0 %v751, 64
    %v761 = vpop.permute.xlu0 %760
    %v763 = vmul.f32 %v759, %v761
    %765 = vrot.lane.b32.xlu0 %v763, 64
    %v766 = vpop.permute.xlu0 %765
    %v768 = vadd.f32 %v138, %v766
    %v769 = vtanh.pop %v768
    %v770 = vsub.f32 1.0, %v759
    %772 = vrot.lane.b32.xlu0 %v769, 96
    %v773 = vpop.permute.xlu0 %772
    %v775 = vmul.f32 %v770, %v773
    %v776 = vrot.slane %v673, 7
    %v778 = vmul.f32 %v759, %v776
    %v779 = vadd.f32 %v775, %v778
    %v781 = vrot.slane %v779, 5
    %782 = vrot.lane.b32.xlu0 %v781, 96
    %v783 = vpop.permute.xlu0 %782
    %v784 = vsel %vm151, %v783, 0
    %786 = vmatprep.subr.mxu0 0.0
    %787 = vmatpush1.msra.mxu0 %v146
    %788 = vmatprep.subr.mxu0 0.0
    %789 = vmatpush1.msra.mxu0 %v147
    %790 = vmatprep.subr.mxu0 0.0
    %791 = vmatpush1.msra.mxu0 %v148
    %792 = vmatprep.subr.mxu0 0.0
    %793 = vmatpush1.msra.mxu0 %v149
    %794 = vmatprep.subr.mxu0 0.0
    %795 = vmatpush1.msra.mxu0 0.0
    %796 = vmatprep.subr.mxu0 0.0
    %797 = vmatpush1.msra.mxu0 0.0
    %798 = vmatprep.subr.mxu0 0.0
    %799 = vmatpush1.msra.mxu0 0.0
    %800 = vmatprep.subr.mxu0 0.0
    %801 = vmatpush1.msra.mxu0 0.0
    %802 = vmatprep.subr.mxu0 0.0
    %803 = vmatpush1.msra.mxu0 0.0
    %804 = vmatprep.subr.mxu0 0.0
    %805 = vmatpush1.msra.mxu0 0.0
    %806 = vmatprep.subr.mxu0 0.0
    %807 = vmatpush1.msra.mxu0 0.0
    %808 = vmatprep.subr.mxu0 0.0
    %809 = vmatpush1.msra.mxu0 0.0
    %810 = vmatprep.subr.mxu0 0.0
    %811 = vmatpush1.msra.mxu0 0.0
    %812 = vmatprep.subr.mxu0 0.0
    %813 = vmatpush1.msra.mxu0 0.0
    %814 = vmatprep.subr.mxu0 0.0
    %815 = vmatpush1.msra.mxu0 0.0
    %816 = vmatprep.subr.mxu0 0.0
    %817 = vmatpush1.msra.mxu0 0.0
    %818 = vmatprep.subr.mxu0 0.0
    %819 = vmatpush1.msra.mxu0 0.0
    %820 = vmatprep.subr.mxu0 0.0
    %821 = vmatpush1.msra.mxu0 0.0
    %822 = vmatprep.subr.mxu0 0.0
    %823 = vmatpush1.msra.mxu0 0.0
    %824 = vmatprep.subr.mxu0 0.0
    %825 = vmatpush1.msra.mxu0 0.0
    %826 = vmatprep.subr.mxu0 0.0
    %827 = vmatpush1.msra.mxu0 0.0
    %828 = vmatprep.subr.mxu0 0.0
    %829 = vmatpush1.msra.mxu0 0.0
    %830 = vmatprep.subr.mxu0 0.0
    %831 = vmatpush1.msra.mxu0 0.0
    %832 = vmatprep.subr.mxu0 0.0
    %833 = vmatpush1.msra.mxu0 0.0
    %834 = vmatprep.subr.mxu0 0.0
    %835 = vmatpush1.msra.mxu0 0.0
    %836 = vmatprep.subr.mxu0 0.0
    %837 = vmatpush1.msra.mxu0 0.0
    %838 = vmatprep.subr.mxu0 0.0
    %839 = vmatpush1.msra.mxu0 0.0
    %840 = vmatprep.subr.mxu0 0.0
    %841 = vmatpush1.msra.mxu0 0.0
    %842 = vmatprep.subr.mxu0 0.0
    %843 = vmatpush1.msra.mxu0 0.0
    %844 = vmatprep.subr.mxu0 0.0
    %845 = vmatpush1.msra.mxu0 0.0
    %846 = vmatprep.subr.mxu0 0.0
    %847 = vmatpush1.msra.mxu0 0.0
    %848 = vmatprep.subr.mxu0 0.0
    %849 = vmatpush1.msra.mxu0 0.0
    %850 = vmatprep.mubr.f32.mxu0 0.0
    %851 = vmatmul.mubr.f32.gmra.mrb[0].mxu0 %v784
    %v852 = vpop.f32.mrb[0].mxu0
    %v853 = vadd.f32 %v150, %v852
    %v854 = vpop.f32.mrb[0].mxu0
    %855 = vdwg.mxu0
    %v857 = vrot.slane %v853, 2
    %v859 = vadd.f32 %v138, %v857
    %v860 = vxor.u32 %v859, 2147483648
    %v861 = vmul.f32 %v860, 1.442695
    %v862 = vpow.pop %v861
    %v863 = vadd.f32 %v862, 1.0
    %v864 = vrcp.pop %v863
    %v865 = vmul.f32 1.0, %v864
    %866 = vrot.lane.b32.xlu0 %v857, 64
    %v867 = vpop.permute.xlu0 %866
    %v869 = vmul.f32 %v865, %v867
    %871 = vrot.lane.b32.xlu0 %v869, 64
    %v872 = vpop.permute.xlu0 %871
    %v874 = vadd.f32 %v138, %v872
    %v875 = vtanh.pop %v874
    %v876 = vsub.f32 1.0, %v865
    %878 = vrot.lane.b32.xlu0 %v875, 96
    %v879 = vpop.permute.xlu0 %878
    %v881 = vmul.f32 %v876, %v879
    %v882 = vrot.slane %v779, 7
    %v884 = vmul.f32 %v865, %v882
    %v885 = vadd.f32 %v881, %v884
    %v887 = vrot.slane %v885, 6
    %888 = vrot.lane.b32.xlu0 %v887, 96
    %v889 = vpop.permute.xlu0 %888
    %v890 = vsel %vm151, %v889, 0
    %892 = vmatprep.subr.mxu0 0.0
    %893 = vmatpush1.msra.mxu0 %v146
    %894 = vmatprep.subr.mxu0 0.0
    %895 = vmatpush1.msra.mxu0 %v147
    %896 = vmatprep.subr.mxu0 0.0
    %897 = vmatpush1.msra.mxu0 %v148
    %898 = vmatprep.subr.mxu0 0.0
    %899 = vmatpush1.msra.mxu0 %v149
    %900 = vmatprep.subr.mxu0 0.0
    %901 = vmatpush1.msra.mxu0 0.0
    %902 = vmatprep.subr.mxu0 0.0
    %903 = vmatpush1.msra.mxu0 0.0
    %904 = vmatprep.subr.mxu0 0.0
    %905 = vmatpush1.msra.mxu0 0.0
    %906 = vmatprep.subr.mxu0 0.0
    %907 = vmatpush1.msra.mxu0 0.0
    %908 = vmatprep.subr.mxu0 0.0
    %909 = vmatpush1.msra.mxu0 0.0
    %910 = vmatprep.subr.mxu0 0.0
    %911 = vmatpush1.msra.mxu0 0.0
    %912 = vmatprep.subr.mxu0 0.0
    %913 = vmatpush1.msra.mxu0 0.0
    %914 = vmatprep.subr.mxu0 0.0
    %915 = vmatpush1.msra.mxu0 0.0
    %916 = vmatprep.subr.mxu0 0.0
    %917 = vmatpush1.msra.mxu0 0.0
    %918 = vmatprep.subr.mxu0 0.0
    %919 = vmatpush1.msra.mxu0 0.0
    %920 = vmatprep.subr.mxu0 0.0
    %921 = vmatpush1.msra.mxu0 0.0
    %922 = vmatprep.subr.mxu0 0.0
    %923 = vmatpush1.msra.mxu0 0.0
    %924 = vmatprep.subr.mxu0 0.0
    %925 = vmatpush1.msra.mxu0 0.0
    %926 = vmatprep.subr.mxu0 0.0
    %927 = vmatpush1.msra.mxu0 0.0
    %928 = vmatprep.subr.mxu0 0.0
    %929 = vmatpush1.msra.mxu0 0.0
    %930 = vmatprep.subr.mxu0 0.0
    %931 = vmatpush1.msra.mxu0 0.0
    %932 = vmatprep.subr.mxu0 0.0
    %933 = vmatpush1.msra.mxu0 0.0
    %934 = vmatprep.subr.mxu0 0.0
    %935 = vmatpush1.msra.mxu0 0.0
    %936 = vmatprep.subr.mxu0 0.0
    %937 = vmatpush1.msra.mxu0 0.0
    %938 = vmatprep.subr.mxu0 0.0
    %939 = vmatpush1.msra.mxu0 0.0
    %940 = vmatprep.subr.mxu0 0.0
    %941 = vmatpush1.msra.mxu0 0.0
    %942 = vmatprep.subr.mxu0 0.0
    %943 = vmatpush1.msra.mxu0 0.0
    %944 = vmatprep.subr.mxu0 0.0
    %945 = vmatpush1.msra.mxu0 0.0
    %946 = vmatprep.subr.mxu0 0.0
    %947 = vmatpush1.msra.mxu0 0.0
    %948 = vmatprep.subr.mxu0 0.0
    %949 = vmatpush1.msra.mxu0 0.0
    %950 = vmatprep.subr.mxu0 0.0
    %951 = vmatpush1.msra.mxu0 0.0
    %952 = vmatprep.subr.mxu0 0.0
    %953 = vmatpush1.msra.mxu0 0.0
    %954 = vmatprep.subr.mxu0 0.0
    %955 = vmatpush1.msra.mxu0 0.0
    %956 = vmatprep.mubr.f32.mxu0 0.0
    %957 = vmatmul.mubr.f32.gmra.mrb[0].mxu0 %v890
    %v958 = vpop.f32.mrb[0].mxu0
    %v959 = vadd.f32 %v150, %v958
    %v960 = vpop.f32.mrb[0].mxu0
    %961 = vdwg.mxu0
    %v963 = vrot.slane %v959, 1
    %v965 = vadd.f32 %v138, %v963
    %v966 = vxor.u32 %v965, 2147483648
    %v967 = vmul.f32 %v966, 1.442695
    %v968 = vpow.pop %v967
    %v969 = vadd.f32 %v968, 1.0
    %v970 = vrcp.pop %v969
    %v971 = vmul.f32 1.0, %v970
    %972 = vrot.lane.b32.xlu0 %v963, 64
    %v973 = vpop.permute.xlu0 %972
    %v975 = vmul.f32 %v971, %v973
    %977 = vrot.lane.b32.xlu0 %v975, 64
    %v978 = vpop.permute.xlu0 %977
    %v980 = vadd.f32 %v138, %v978
    %v981 = vtanh.pop %v980
    %v982 = vsub.f32 1.0, %v971
    %984 = vrot.lane.b32.xlu0 %v981, 96
    %v985 = vpop.permute.xlu0 %984
    %v987 = vmul.f32 %v982, %v985
    %v988 = vrot.slane %v885, 7
    %v990 = vmul.f32 %v971, %v988
    %v991 = vadd.f32 %v987, %v990
    %v993 = vrot.slane %v991, 7
    %994 = vrot.lane.b32.xlu0 %v993, 96
    %v995 = vpop.permute.xlu0 %994
    %v996 = vsel %vm151, %v995, 0
    %998 = vmatprep.subr.mxu0 0.0
    %999 = vmatpush1.msra.mxu0 %v146
    %1000 = vmatprep.subr.mxu0 0.0
    %1001 = vmatpush1.msra.mxu0 %v147
    %1002 = vmatprep.subr.mxu0 0.0
    %1003 = vmatpush1.msra.mxu0 %v148
    %1004 = vmatprep.subr.mxu0 0.0
    %1005 = vmatpush1.msra.mxu0 %v149
    %1006 = vmatprep.subr.mxu0 0.0
    %1007 = vmatpush1.msra.mxu0 0.0
    %1008 = vmatprep.subr.mxu0 0.0
    %1009 = vmatpush1.msra.mxu0 0.0
    %1010 = vmatprep.subr.mxu0 0.0
    %1011 = vmatpush1.msra.mxu0 0.0
    %1012 = vmatprep.subr.mxu0 0.0
    %1013 = vmatpush1.msra.mxu0 0.0
    %1014 = vmatprep.subr.mxu0 0.0
    %1015 = vmatpush1.msra.mxu0 0.0
    %1016 = vmatprep.subr.mxu0 0.0
    %1017 = vmatpush1.msra.mxu0 0.0
    %1018 = vmatprep.subr.mxu0 0.0
    %1019 = vmatpush1.msra.mxu0 0.0
    %1020 = vmatprep.subr.mxu0 0.0
    %1021 = vmatpush1.msra.mxu0 0.0
    %1022 = vmatprep.subr.mxu0 0.0
    %1023 = vmatpush1.msra.mxu0 0.0
    %1024 = vmatprep.subr.mxu0 0.0
    %1025 = vmatpush1.msra.mxu0 0.0
    %1026 = vmatprep.subr.mxu0 0.0
    %1027 = vmatpush1.msra.mxu0 0.0
    %1028 = vmatprep.subr.mxu0 0.0
    %1029 = vmatpush1.msra.mxu0 0.0
    %1030 = vmatprep.subr.mxu0 0.0
    %1031 = vmatpush1.msra.mxu0 0.0
    %1032 = vmatprep.subr.mxu0 0.0
    %1033 = vmatpush1.msra.mxu0 0.0
    %1034 = vmatprep.subr.mxu0 0.0
    %1035 = vmatpush1.msra.mxu0 0.0
    %1036 = vmatprep.subr.mxu0 0.0
    %1037 = vmatpush1.msra.mxu0 0.0
    %1038 = vmatprep.subr.mxu0 0.0
    %1039 = vmatpush1.msra.mxu0 0.0
    %1040 = vmatprep.subr.mxu0 0.0
    %1041 = vmatpush1.msra.mxu0 0.0
    %1042 = vmatprep.subr.mxu0 0.0
    %1043 = vmatpush1.msra.mxu0 0.0
    %1044 = vmatprep.subr.mxu0 0.0
    %1045 = vmatpush1.msra.mxu0 0.0
    %1046 = vmatprep.subr.mxu0 0.0
    %1047 = vmatpush1.msra.mxu0 0.0
    %1048 = vmatprep.subr.mxu0 0.0
    %1049 = vmatpush1.msra.mxu0 0.0
    %1050 = vmatprep.subr.mxu0 0.0
    %1051 = vmatpush1.msra.mxu0 0.0
    %1052 = vmatprep.subr.mxu0 0.0
    %1053 = vmatpush1.msra.mxu0 0.0
    %1054 = vmatprep.subr.mxu0 0.0
    %1055 = vmatpush1.msra.mxu0 0.0
    %1056 = vmatprep.subr.mxu0 0.0
    %1057 = vmatpush1.msra.mxu0 0.0
    %1058 = vmatprep.subr.mxu0 0.0
    %1059 = vmatpush1.msra.mxu0 0.0
    %1060 = vmatprep.subr.mxu0 0.0
    %1061 = vmatpush1.msra.mxu0 0.0
    %1062 = vmatprep.mubr.f32.mxu0 0.0
    %1063 = vmatmul.mubr.f32.gmra.mrb[0].mxu0 %v996
    %v1064 = vpop.f32.mrb[0].mxu0
    %v1065 = vadd.f32 %v150, %v1064
    %v1066 = vpop.f32.mrb[0].mxu0
    %1067 = vdwg.mxu0
    %v1068 = vadd.f32 %v143, %v1065
    %v1069 = vxor.u32 %v1068, 2147483648
    %v1070 = vmul.f32 %v1069, 1.442695
    %v1071 = vpow.pop %v1070
    %v1072 = vadd.f32 %v1071, 1.0
    %v1073 = vrcp.pop %v1072
    %v1074 = vmul.f32 1.0, %v1073
    %1076 = vrot.lane.b32.xlu0 %v1065, 64
    %v1077 = vpop.permute.xlu0 %1076
    %v1079 = vmul.f32 %v1074, %v1077
    %1081 = vrot.lane.b32.xlu0 %v1079, 64
    %v1082 = vpop.permute.xlu0 %1081
    %v1084 = vadd.f32 %v143, %v1082
    %v1085 = vtanh.pop %v1084
    %v1086 = vsub.f32 1.0, %v1074
    %1088 = vrot.lane.b32.xlu0 %v1085, 96
    %v1089 = vpop.permute.xlu0 %1088
    %v1091 = vmul.f32 %v1086, %v1089
    %v1093 = vmul.f32 %v1074, %v993
    %v1094 = vadd.f32 %v1091, %v1093
    %1096 = vrot.lane.b32.xlu0 %v1094, 96
    %v1097 = vpop.permute.xlu0 %1096
    %v1098 = vsel %vm151, %v1097, 0
    %1100 = vmatprep.subr.mxu0 0.0
    %1101 = vmatpush1.msra.mxu0 %v146
    %1102 = vmatprep.subr.mxu0 0.0
    %1103 = vmatpush1.msra.mxu0 %v147
    %1104 = vmatprep.subr.mxu0 0.0
    %1105 = vmatpush1.msra.mxu0 %v148
    %1106 = vmatprep.subr.mxu0 0.0
    %1107 = vmatpush1.msra.mxu0 %v149
    %1108 = vmatprep.subr.mxu0 0.0
    %1109 = vmatpush1.msra.mxu0 0.0
    %1110 = vmatprep.subr.mxu0 0.0
    %1111 = vmatpush1.msra.mxu0 0.0
    %1112 = vmatprep.subr.mxu0 0.0
    %1113 = vmatpush1.msra.mxu0 0.0
    %1114 = vmatprep.subr.mxu0 0.0
    %1115 = vmatpush1.msra.mxu0 0.0
    %1116 = vmatprep.subr.mxu0 0.0
    %1117 = vmatpush1.msra.mxu0 0.0
    %1118 = vmatprep.subr.mxu0 0.0
    %1119 = vmatpush1.msra.mxu0 0.0
    %1120 = vmatprep.subr.mxu0 0.0
    %1121 = vmatpush1.msra.mxu0 0.0
    %1122 = vmatprep.subr.mxu0 0.0
    %1123 = vmatpush1.msra.mxu0 0.0
    %1124 = vmatprep.subr.mxu0 0.0
    %1125 = vmatpush1.msra.mxu0 0.0
    %1126 = vmatprep.subr.mxu0 0.0
    %1127 = vmatpush1.msra.mxu0 0.0
    %1128 = vmatprep.subr.mxu0 0.0
    %1129 = vmatpush1.msra.mxu0 0.0
    %1130 = vmatprep.subr.mxu0 0.0
    %1131 = vmatpush1.msra.mxu0 0.0
    %1132 = vmatprep.subr.mxu0 0.0
    %1133 = vmatpush1.msra.mxu0 0.0
    %1134 = vmatprep.subr.mxu0 0.0
    %1135 = vmatpush1.msra.mxu0 0.0
    %1136 = vmatprep.subr.mxu0 0.0
    %1137 = vmatpush1.msra.mxu0 0.0
    %1138 = vmatprep.subr.mxu0 0.0
    %1139 = vmatpush1.msra.mxu0 0.0
    %1140 = vmatprep.subr.mxu0 0.0
    %1141 = vmatpush1.msra.mxu0 0.0
    %1142 = vmatprep.subr.mxu0 0.0
    %1143 = vmatpush1.msra.mxu0 0.0
    %1144 = vmatprep.subr.mxu0 0.0
    %1145 = vmatpush1.msra.mxu0 0.0
    %1146 = vmatprep.subr.mxu0 0.0
    %1147 = vmatpush1.msra.mxu0 0.0
    %1148 = vmatprep.subr.mxu0 0.0
    %1149 = vmatpush1.msra.mxu0 0.0
    %1150 = vmatprep.subr.mxu0 0.0
    %1151 = vmatpush1.msra.mxu0 0.0
    %1152 = vmatprep.subr.mxu0 0.0
    %1153 = vmatpush1.msra.mxu0 0.0
    %1154 = vmatprep.subr.mxu0 0.0
    %1155 = vmatpush1.msra.mxu0 0.0
    %1156 = vmatprep.subr.mxu0 0.0
    %1157 = vmatpush1.msra.mxu0 0.0
    %1158 = vmatprep.subr.mxu0 0.0
    %1159 = vmatpush1.msra.mxu0 0.0
    %1160 = vmatprep.subr.mxu0 0.0
    %1161 = vmatpush1.msra.mxu0 0.0
    %1162 = vmatprep.subr.mxu0 0.0
    %1163 = vmatpush1.msra.mxu0 0.0
    %1164 = vmatprep.mubr.f32.mxu0 0.0
    %1165 = vmatmul.mubr.f32.gmra.mrb[0].mxu0 %v1098
    %v1166 = vpop.f32.mrb[0].mxu0
    %v1167 = vadd.f32 %v150, %v1166
    %v1168 = vpop.f32.mrb[0].mxu0
    %1169 = vdwg.mxu0
    %v1171 = vrot.slane %v1167, 7
    %v1173 = vadd.f32 %v143, %v1171
    %v1174 = vxor.u32 %v1173, 2147483648
    %v1175 = vmul.f32 %v1174, 1.442695
    %v1176 = vpow.pop %v1175
    %v1177 = vadd.f32 %v1176, 1.0
    %v1178 = vrcp.pop %v1177
    %v1179 = vmul.f32 1.0, %v1178
    %1180 = vrot.lane.b32.xlu0 %v1171, 64
    %v1181 = vpop.permute.xlu0 %1180
    %v1183 = vmul.f32 %v1179, %v1181
    %1185 = vrot.lane.b32.xlu0 %v1183, 64
    %v1186 = vpop.permute.xlu0 %1185
    %v1188 = vadd.f32 %v143, %v1186
    %v1189 = vtanh.pop %v1188
    %v1190 = vsub.f32 1.0, %v1179
    %1192 = vrot.lane.b32.xlu0 %v1189, 96
    %v1193 = vpop.permute.xlu0 %1192
    %v1195 = vmul.f32 %v1190, %v1193
    %v1196 = vrot.slane %v1094, 7
    %v1198 = vmul.f32 %v1179, %v1196
    %v1199 = vadd.f32 %v1195, %v1198
    %v1200 = vld [vmem:[%s1] sm:$0xff]
    %v1201 = vld [vmem:[%s1 + $0x8] sm:$0xff]
    %v1202 = vld [vmem:[%s1 + $0x10] sm:$0xff]
    %v1203 = vld [vmem:[%s1 + $0x18] sm:$0xff]
    %v1204 = vld [vmem:[%s1 + $0x20] sm:$0xff]
    %v1205 = vld [vmem:[%s1 + $0x28] sm:$0xff]
    %v1206 = vld [vmem:[%s6] sm:$0xff]
    %v1207 = vld [vmem:[%s6 + $0x8] sm:$0xff]
    %v1208 = vld [vmem:[%s8] sm:$0x1]
    %v1210 = vlaneseq
    %v1211 = vshrl.u32 %v1210, 7
    %v1212 = vsub.s32 0, %v1211
    %v1213 = vrot.slane %v1208, %v1212
    %v1216 = vsel %vm64, %v1200, 0
    %v1219 = vsel %vm64, %v1201, 0
    %v1222 = vsel %vm64, %v1202, 0
    %v1225 = vsel %vm64, %v1203, 0
    %v1228 = vsel %vm64, %v1204, 0
    %v1231 = vsel %vm64, %v1205, 0
    %1233 = vmatprep.subr.mxu0 0.0
    %1234 = vmatpush1.msra.mxu0 %v1206
    %1235 = vmatprep.subr.mxu0 0.0
    %1236 = vmatpush1.msra.mxu0 %v1207
    %1237 = vmatprep.subr.mxu0 0.0
    %1238 = vmatpush1.msra.mxu0 0.0
    %1239 = vmatprep.subr.mxu0 0.0
    %1240 = vmatpush1.msra.mxu0 0.0
    %1241 = vmatprep.subr.mxu0 0.0
    %1242 = vmatpush1.msra.mxu0 0.0
    %1243 = vmatprep.subr.mxu0 0.0
    %1244 = vmatpush1.msra.mxu0 0.0
    %1245 = vmatprep.subr.mxu0 0.0
    %1246 = vmatpush1.msra.mxu0 0.0
    %1247 = vmatprep.subr.mxu0 0.0
    %1248 = vmatpush1.msra.mxu0 0.0
    %1249 = vmatprep.subr.mxu0 0.0
    %1250 = vmatpush1.msra.mxu0 0.0
    %1251 = vmatprep.subr.mxu0 0.0
    %1252 = vmatpush1.msra.mxu0 0.0
    %1253 = vmatprep.subr.mxu0 0.0
    %1254 = vmatpush1.msra.mxu0 0.0
    %1255 = vmatprep.subr.mxu0 0.0
    %1256 = vmatpush1.msra.mxu0 0.0
    %1257 = vmatprep.subr.mxu0 0.0
    %1258 = vmatpush1.msra.mxu0 0.0
    %1259 = vmatprep.subr.mxu0 0.0
    %1260 = vmatpush1.msra.mxu0 0.0
    %1261 = vmatprep.subr.mxu0 0.0
    %1262 = vmatpush1.msra.mxu0 0.0
    %1263 = vmatprep.subr.mxu0 0.0
    %1264 = vmatpush1.msra.mxu0 0.0
    %1265 = vmatprep.subr.mxu0 0.0
    %1266 = vmatpush1.msra.mxu0 0.0
    %1267 = vmatprep.subr.mxu0 0.0
    %1268 = vmatpush1.msra.mxu0 0.0
    %1269 = vmatprep.subr.mxu0 0.0
    %1270 = vmatpush1.msra.mxu0 0.0
    %1271 = vmatprep.subr.mxu0 0.0
    %1272 = vmatpush1.msra.mxu0 0.0
    %1273 = vmatprep.subr.mxu0 0.0
    %1274 = vmatpush1.msra.mxu0 0.0
    %1275 = vmatprep.subr.mxu0 0.0
    %1276 = vmatpush1.msra.mxu0 0.0
    %1277 = vmatprep.subr.mxu0 0.0
    %1278 = vmatpush1.msra.mxu0 0.0
    %1279 = vmatprep.subr.mxu0 0.0
    %1280 = vmatpush1.msra.mxu0 0.0
    %1281 = vmatprep.subr.mxu0 0.0
    %1282 = vmatpush1.msra.mxu0 0.0
    %1283 = vmatprep.subr.mxu0 0.0
    %1284 = vmatpush1.msra.mxu0 0.0
    %1285 = vmatprep.subr.mxu0 0.0
    %1286 = vmatpush1.msra.mxu0 0.0
    %1287 = vmatprep.subr.mxu0 0.0
    %1288 = vmatpush1.msra.mxu0 0.0
    %1289 = vmatprep.subr.mxu0 0.0
    %1290 = vmatpush1.msra.mxu0 0.0
    %1291 = vmatprep.subr.mxu0 0.0
    %1292 = vmatpush1.msra.mxu0 0.0
    %1293 = vmatprep.subr.mxu0 0.0
    %1294 = vmatpush1.msra.mxu0 0.0
    %1295 = vmatprep.subr.mxu0 0.0
    %1296 = vmatpush1.msra.mxu0 0.0
    %1297 = vmatprep.mubr.f32.mxu0 0.0
    %1298 = vmatmul.mubr.f32.gmra.mrb[0].mxu0 %v1216
    %v1299 = vpop.f32.mrb[0].mxu0
    %v1300 = vadd.f32 %v1213, %v1299
    %v1301 = vpop.f32.mrb[0].mxu0
    %1302 = vmatprep.mubr.f32.mxu0 0.0
    %1303 = vmatmul.mubr.f32.gmra.mrb[0].mxu0 %v1219
    %v1304 = vpop.f32.mrb[0].mxu0
    %v1305 = vadd.f32 %v1213, %v1304
    %v1306 = vpop.f32.mrb[0].mxu0
    %1307 = vmatprep.mubr.f32.mxu0 0.0
    %1308 = vmatmul.mubr.f32.gmra.mrb[0].mxu0 %v1222
    %v1309 = vpop.f32.mrb[0].mxu0
    %v1310 = vadd.f32 %v1213, %v1309
    %v1311 = vpop.f32.mrb[0].mxu0
    %1312 = vmatprep.mubr.f32.mxu0 0.0
    %1313 = vmatmul.mubr.f32.gmra.mrb[0].mxu0 %v1225
    %v1314 = vpop.f32.mrb[0].mxu0
    %v1315 = vadd.f32 %v1213, %v1314
    %v1316 = vpop.f32.mrb[0].mxu0
    %1317 = vmatprep.mubr.f32.mxu0 0.0
    %1318 = vmatmul.mubr.f32.gmra.mrb[0].mxu0 %v1228
    %v1319 = vpop.f32.mrb[0].mxu0
    %v1320 = vadd.f32 %v1213, %v1319
    %v1321 = vpop.f32.mrb[0].mxu0
    %1322 = vmatprep.mubr.f32.mxu0 0.0
    %1323 = vmatmul.mubr.f32.gmra.mrb[0].mxu0 %v1231
    %v1324 = vpop.f32.mrb[0].mxu0
    %v1325 = vadd.f32 %v1213, %v1324
    %v1326 = vpop.f32.mrb[0].mxu0
    %1327 = vdwg.mxu0
    %v1328 = vld [vmem:[%s7] sm:$0xff]
    %v1329 = vld [vmem:[%s7 + $0x8] sm:$0xff]
    %v1330 = vld [vmem:[%s7 + $0x10] sm:$0xff]
    %v1331 = vld [vmem:[%s7 + $0x18] sm:$0xff]
    %v1332 = vld [vmem:[%s9] sm:$0x1]
    %v1334 = vlaneseq
    %v1335 = vshrl.u32 %v1334, 7
    %v1336 = vsub.s32 0, %v1335
    %v1337 = vrot.slane %v1332, %v1336
    %1339 = vmatprep.subr.mxu0 0.0
    %1340 = vmatpush1.msra.mxu0 %v1328
    %1341 = vmatprep.subr.mxu0 0.0
    %1342 = vmatpush1.msra.mxu0 %v1329
    %1343 = vmatprep.subr.mxu0 0.0
    %1344 = vmatpush1.msra.mxu0 %v1330
    %1345 = vmatprep.subr.mxu0 0.0
    %1346 = vmatpush1.msra.mxu0 %v1331
    %1347 = vmatprep.subr.mxu0 0.0
    %1348 = vmatpush1.msra.mxu0 0.0
    %1349 = vmatprep.subr.mxu0 0.0
    %1350 = vmatpush1.msra.mxu0 0.0
    %1351 = vmatprep.subr.mxu0 0.0
    %1352 = vmatpush1.msra.mxu0 0.0
    %1353 = vmatprep.subr.mxu0 0.0
    %1354 = vmatpush1.msra.mxu0 0.0
    %1355 = vmatprep.subr.mxu0 0.0
    %1356 = vmatpush1.msra.mxu0 0.0
    %1357 = vmatprep.subr.mxu0 0.0
    %1358 = vmatpush1.msra.mxu0 0.0
    %1359 = vmatprep.subr.mxu0 0.0
    %1360 = vmatpush1.msra.mxu0 0.0
    %1361 = vmatprep.subr.mxu0 0.0
    %1362 = vmatpush1.msra.mxu0 0.0
    %1363 = vmatprep.subr.mxu0 0.0
    %1364 = vmatpush1.msra.mxu0 0.0
    %1365 = vmatprep.subr.mxu0 0.0
    %1366 = vmatpush1.msra.mxu0 0.0
    %1367 = vmatprep.subr.mxu0 0.0
    %1368 = vmatpush1.msra.mxu0 0.0
    %1369 = vmatprep.subr.mxu0 0.0
    %1370 = vmatpush1.msra.mxu0 0.0
    %1371 = vmatprep.subr.mxu0 0.0
    %1372 = vmatpush1.msra.mxu0 0.0
    %1373 = vmatprep.subr.mxu0 0.0
    %1374 = vmatpush1.msra.mxu0 0.0
    %1375 = vmatprep.subr.mxu0 0.0
    %1376 = vmatpush1.msra.mxu0 0.0
    %1377 = vmatprep.subr.mxu0 0.0
    %1378 = vmatpush1.msra.mxu0 0.0
    %1379 = vmatprep.subr.mxu0 0.0
    %1380 = vmatpush1.msra.mxu0 0.0
    %1381 = vmatprep.subr.mxu0 0.0
    %1382 = vmatpush1.msra.mxu0 0.0
    %1383 = vmatprep.subr.mxu0 0.0
    %1384 = vmatpush1.msra.mxu0 0.0
    %1385 = vmatprep.subr.mxu0 0.0
    %1386 = vmatpush1.msra.mxu0 0.0
    %1387 = vmatprep.subr.mxu0 0.0
    %1388 = vmatpush1.msra.mxu0 0.0
    %1389 = vmatprep.subr.mxu0 0.0
    %1390 = vmatpush1.msra.mxu0 0.0
    %1391 = vmatprep.subr.mxu0 0.0
    %1392 = vmatpush1.msra.mxu0 0.0
    %1393 = vmatprep.subr.mxu0 0.0
    %1394 = vmatpush1.msra.mxu0 0.0
    %1395 = vmatprep.subr.mxu0 0.0
    %1396 = vmatpush1.msra.mxu0 0.0
    %1397 = vmatprep.subr.mxu0 0.0
    %1398 = vmatpush1.msra.mxu0 0.0
    %1399 = vmatprep.subr.mxu0 0.0
    %1400 = vmatpush1.msra.mxu0 0.0
    %1401 = vmatprep.subr.mxu0 0.0
    %1402 = vmatpush1.msra.mxu0 0.0
    %1403 = vmatprep.mubr.f32.mxu0 0.0
    %1404 = vmatmul.mubr.f32.gmra.mrb[0].mxu0 %v153
    %v1405 = vpop.f32.mrb[0].mxu0
    %v1406 = vadd.f32 %v1337, %v1405
    %v1407 = vpop.f32.mrb[0].mxu0
    %1408 = vdwg.mxu0
    %v1409 = vadd.f32 %v1300, %v1406
    %v1410 = vxor.u32 %v1409, 2147483648
    %v1411 = vmul.f32 %v1410, 1.442695
    %v1412 = vpow.pop %v1411
    %v1413 = vadd.f32 %v1412, 1.0
    %v1414 = vrcp.pop %v1413
    %v1415 = vmul.f32 1.0, %v1414
    %1417 = vrot.lane.b32.xlu0 %v1406, 64
    %v1418 = vpop.permute.xlu0 %1417
    %v1420 = vmul.f32 %v1415, %v1418
    %1422 = vrot.lane.b32.xlu0 %v1420, 64
    %v1423 = vpop.permute.xlu0 %1422
    %v1425 = vadd.f32 %v1300, %v1423
    %v1426 = vtanh.pop %v1425
    %v1427 = vsub.f32 1.0, %v1415
    %1429 = vrot.lane.b32.xlu0 %v1426, 96
    %v1430 = vpop.permute.xlu0 %1429
    %v1432 = vmul.f32 %v1427, %v1430
    %v1433 = vmul.f32 %v1415, 0.0
    %v1434 = vadd.f32 %v1432, %v1433
    %1436 = vrot.lane.b32.xlu0 %v1434, 96
    %v1437 = vpop.permute.xlu0 %1436
    %v1438 = vsel %vm151, %v1437, 0
    %1440 = vmatprep.subr.mxu0 0.0
    %1441 = vmatpush1.msra.mxu0 %v1328
    %1442 = vmatprep.subr.mxu0 0.0
    %1443 = vmatpush1.msra.mxu0 %v1329
    %1444 = vmatprep.subr.mxu0 0.0
    %1445 = vmatpush1.msra.mxu0 %v1330
    %1446 = vmatprep.subr.mxu0 0.0
    %1447 = vmatpush1.msra.mxu0 %v1331
    %1448 = vmatprep.subr.mxu0 0.0
    %1449 = vmatpush1.msra.mxu0 0.0
    %1450 = vmatprep.subr.mxu0 0.0
    %1451 = vmatpush1.msra.mxu0 0.0
    %1452 = vmatprep.subr.mxu0 0.0
    %1453 = vmatpush1.msra.mxu0 0.0
    %1454 = vmatprep.subr.mxu0 0.0
    %1455 = vmatpush1.msra.mxu0 0.0
    %1456 = vmatprep.subr.mxu0 0.0
    %1457 = vmatpush1.msra.mxu0 0.0
    %1458 = vmatprep.subr.mxu0 0.0
    %1459 = vmatpush1.msra.mxu0 0.0
    %1460 = vmatprep.subr.mxu0 0.0
    %1461 = vmatpush1.msra.mxu0 0.0
    %1462 = vmatprep.subr.mxu0 0.0
    %1463 = vmatpush1.msra.mxu0 0.0
    %1464 = vmatprep.subr.mxu0 0.0
    %1465 = vmatpush1.msra.mxu0 0.0
    %1466 = vmatprep.subr.mxu0 0.0
    %1467 = vmatpush1.msra.mxu0 0.0
    %1468 = vmatprep.subr.mxu0 0.0
    %1469 = vmatpush1.msra.mxu0 0.0
    %1470 = vmatprep.subr.mxu0 0.0
    %1471 = vmatpush1.msra.mxu0 0.0
    %1472 = vmatprep.subr.mxu0 0.0
    %1473 = vmatpush1.msra.mxu0 0.0
    %1474 = vmatprep.subr.mxu0 0.0
    %1475 = vmatpush1.msra.mxu0 0.0
    %1476 = vmatprep.subr.mxu0 0.0
    %1477 = vmatpush1.msra.mxu0 0.0
    %1478 = vmatprep.subr.mxu0 0.0
    %1479 = vmatpush1.msra.mxu0 0.0
    %1480 = vmatprep.subr.mxu0 0.0
    %1481 = vmatpush1.msra.mxu0 0.0
    %1482 = vmatprep.subr.mxu0 0.0
    %1483 = vmatpush1.msra.mxu0 0.0
    %1484 = vmatprep.subr.mxu0 0.0
    %1485 = vmatpush1.msra.mxu0 0.0
    %1486 = vmatprep.subr.mxu0 0.0
    %1487 = vmatpush1.msra.mxu0 0.0
    %1488 = vmatprep.subr.mxu0 0.0
    %1489 = vmatpush1.msra.mxu0 0.0
    %1490 = vmatprep.subr.mxu0 0.0
    %1491 = vmatpush1.msra.mxu0 0.0
    %1492 = vmatprep.subr.mxu0 0.0
    %1493 = vmatpush1.msra.mxu0 0.0
    %1494 = vmatprep.subr.mxu0 0.0
    %1495 = vmatpush1.msra.mxu0 0.0
    %1496 = vmatprep.subr.mxu0 0.0
    %1497 = vmatpush1.msra.mxu0 0.0
    %1498 = vmatprep.subr.mxu0 0.0
    %1499 = vmatpush1.msra.mxu0 0.0
    %1500 = vmatprep.subr.mxu0 0.0
    %1501 = vmatpush1.msra.mxu0 0.0
    %1502 = vmatprep.subr.mxu0 0.0
    %1503 = vmatpush1.msra.mxu0 0.0
    %1504 = vmatprep.mubr.f32.mxu0 0.0
    %1505 = vmatmul.mubr.f32.gmra.mrb[0].mxu0 %v1438
    %v1506 = vpop.f32.mrb[0].mxu0
    %v1507 = vadd.f32 %v1337, %v1506
    %v1508 = vpop.f32.mrb[0].mxu0
    %1509 = vdwg.mxu0
    %v1511 = vrot.slane %v1507, 2
    %v1513 = vadd.f32 %v1300, %v1511
    %v1514 = vadd.f32 %v1305, %v1511
    %v1515 = vxor.u32 %v1513, 2147483648
    %v1516 = vxor.u32 %v1514, 2147483648
    %v1517 = vmul.f32 %v1515, 1.442695
    %v1518 = vpow.pop %v1517
    %v1519 = vmul.f32 %v1516, 1.442695
    %v1520 = vpow.pop %v1519
    %v1521 = vadd.f32 %v1518, 1.0
    %v1522 = vadd.f32 %v1520, 1.0
    %v1523 = vrcp.pop %v1521
    %v1524 = vmul.f32 1.0, %v1523
    %v1525 = vrcp.pop %v1522
    %v1526 = vmul.f32 1.0, %v1525
    %1527 = vrot.lane.b32.xlu0 %v1511, 64
    %v1528 = vpop.permute.xlu0 %1527
    %v1530 = vmul.f32 %v1524, %v1528
    %v1531 = vmul.f32 %v1526, %v1528
    %1534 = vrot.lane.b32.xlu0 %v1530, 64
    %v1535 = vpop.permute.xlu0 %1534
    %1536 = vrot.lane.b32.xlu0 %v1531, 64
    %v1537 = vpop.permute.xlu0 %1536
    %v1540 = vadd.f32 %v1300, %v1535
    %v1541 = vadd.f32 %v1305, %v1537
    %v1542 = vtanh.pop %v1540
    %v1543 = vtanh.pop %v1541
    %v1544 = vsub.f32 1.0, %v1524
    %v1545 = vsub.f32 1.0, %v1526
    %1548 = vrot.lane.b32.xlu0 %v1542, 96
    %v1549 = vpop.permute.xlu0 %1548
    %1550 = vrot.lane.b32.xlu0 %v1543, 96
    %v1551 = vpop.permute.xlu0 %1550
    %v1554 = vmul.f32 %v1544, %v1549
    %v1555 = vmul.f32 %v1545, %v1551
    %v1556 = vrot.slane %v1434, 2
    %v1558 = vmul.f32 %v1524, %v1556
    %v1559 = vmul.f32 %v1526, %v1556
    %v1560 = vadd.f32 %v1554, %v1558
    %v1561 = vadd.f32 %v1555, %v1559
    %vm1564 = vcmask 1041408
    %v1565 = vrot.slane %v1560, 6
    %v1566 = vrot.slane %v1561, 6
    %v1567 = vsel %vm1564, %v1565, %v1566
    %1568 = vrot.lane.b32.xlu0 %v1567, 96
    %v1569 = vpop.permute.xlu0 %1568
    %v1570 = vsel %vm151, %v1569, 0
    %1572 = vmatprep.subr.mxu0 0.0
    %1573 = vmatpush1.msra.mxu0 %v1328
    %1574 = vmatprep.subr.mxu0 0.0
    %1575 = vmatpush1.msra.mxu0 %v1329
    %1576 = vmatprep.subr.mxu0 0.0
    %1577 = vmatpush1.msra.mxu0 %v1330
    %1578 = vmatprep.subr.mxu0 0.0
    %1579 = vmatpush1.msra.mxu0 %v1331
    %1580 = vmatprep.subr.mxu0 0.0
    %1581 = vmatpush1.msra.mxu0 0.0
    %1582 = vmatprep.subr.mxu0 0.0
    %1583 = vmatpush1.msra.mxu0 0.0
    %1584 = vmatprep.subr.mxu0 0.0
    %1585 = vmatpush1.msra.mxu0 0.0
    %1586 = vmatprep.subr.mxu0 0.0
    %1587 = vmatpush1.msra.mxu0 0.0
    %1588 = vmatprep.subr.mxu0 0.0
    %1589 = vmatpush1.msra.mxu0 0.0
    %1590 = vmatprep.subr.mxu0 0.0
    %1591 = vmatpush1.msra.mxu0 0.0
    %1592 = vmatprep.subr.mxu0 0.0
    %1593 = vmatpush1.msra.mxu0 0.0
    %1594 = vmatprep.subr.mxu0 0.0
    %1595 = vmatpush1.msra.mxu0 0.0
    %1596 = vmatprep.subr.mxu0 0.0
    %1597 = vmatpush1.msra.mxu0 0.0
    %1598 = vmatprep.subr.mxu0 0.0
    %1599 = vmatpush1.msra.mxu0 0.0
    %1600 = vmatprep.subr.mxu0 0.0
    %1601 = vmatpush1.msra.mxu0 0.0
    %1602 = vmatprep.subr.mxu0 0.0
    %1603 = vmatpush1.msra.mxu0 0.0
    %1604 = vmatprep.subr.mxu0 0.0
    %1605 = vmatpush1.msra.mxu0 0.0
    %1606 = vmatprep.subr.mxu0 0.0
    %1607 = vmatpush1.msra.mxu0 0.0
    %1608 = vmatprep.subr.mxu0 0.0
    %1609 = vmatpush1.msra.mxu0 0.0
    %1610 = vmatprep.subr.mxu0 0.0
    %1611 = vmatpush1.msra.mxu0 0.0
    %1612 = vmatprep.subr.mxu0 0.0
    %1613 = vmatpush1.msra.mxu0 0.0
    %1614 = vmatprep.subr.mxu0 0.0
    %1615 = vmatpush1.msra.mxu0 0.0
    %1616 = vmatprep.subr.mxu0 0.0
    %1617 = vmatpush1.msra.mxu0 0.0
    %1618 = vmatprep.subr.mxu0 0.0
    %1619 = vmatpush1.msra.mxu0 0.0
    %1620 = vmatprep.subr.mxu0 0.0
    %1621 = vmatpush1.msra.mxu0 0.0
    %1622 = vmatprep.subr.mxu0 0.0
    %1623 = vmatpush1.msra.mxu0 0.0
    %1624 = vmatprep.subr.mxu0 0.0
    %1625 = vmatpush1.msra.mxu0 0.0
    %1626 = vmatprep.subr.mxu0 0.0
    %1627 = vmatpush1.msra.mxu0 0.0
    %1628 = vmatprep.subr.mxu0 0.0
    %1629 = vmatpush1.msra.mxu0 0.0
    %1630 = vmatprep.subr.mxu0 0.0
    %1631 = vmatpush1.msra.mxu0 0.0
    %1632 = vmatprep.subr.mxu0 0.0
    %1633 = vmatpush1.msra.mxu0 0.0
    %1634 = vmatprep.subr.mxu0 0.0
    %1635 = vmatpush1.msra.mxu0 0.0
    %1636 = vmatprep.mubr.f32.mxu0 0.0
    %1637 = vmatmul.mubr.f32.gmra.mrb[0].mxu0 %v1570
    %v1638 = vpop.f32.mrb[0].mxu0
    %v1639 = vadd.f32 %v1337, %v1638
    %v1640 = vpop.f32.mrb[0].mxu0
    %1641 = vdwg.mxu0
    %v1643 = vrot.slane %v1639, 4
    %v1645 = vadd.f32 %v1305, %v1643
    %v1646 = vadd.f32 %v1310, %v1643
    %v1647 = vxor.u32 %v1645, 2147483648
    %v1648 = vxor.u32 %v1646, 2147483648
    %v1649 = vmul.f32 %v1647, 1.442695
    %v1650 = vpow.pop %v1649
    %v1651 = vmul.f32 %v1648, 1.442695
    %v1652 = vpow.pop %v1651
    %v1653 = vadd.f32 %v1650, 1.0
    %v1654 = vadd.f32 %v1652, 1.0
    %v1655 = vrcp.pop %v1653
    %v1656 = vmul.f32 1.0, %v1655
    %v1657 = vrcp.pop %v1654
    %v1658 = vmul.f32 1.0, %v1657
    %1659 = vrot.lane.b32.xlu0 %v1643, 64
    %v1660 = vpop.permute.xlu0 %1659
    %v1662 = vmul.f32 %v1656, %v1660
    %v1663 = vmul.f32 %v1658, %v1660
    %1666 = vrot.lane.b32.xlu0 %v1662, 64
    %v1667 = vpop.permute.xlu0 %1666
    %1668 = vrot.lane.b32.xlu0 %v1663, 64
    %v1669 = vpop.permute.xlu0 %1668
    %v1672 = vadd.f32 %v1305, %v1667
    %v1673 = vadd.f32 %v1310, %v1669
    %v1674 = vtanh.pop %v1672
    %v1675 = vtanh.pop %v1673
    %v1676 = vsub.f32 1.0, %v1656
    %v1677 = vsub.f32 1.0, %v1658
    %1680 = vrot.lane.b32.xlu0 %v1674, 96
    %v1681 = vpop.permute.xlu0 %1680
    %1682 = vrot.lane.b32.xlu0 %v1675, 96
    %v1683 = vpop.permute.xlu0 %1682
    %v1686 = vmul.f32 %v1676, %v1681
    %v1687 = vmul.f32 %v1677, %v1683
    %vm1688 = vcmask 1045504
    %v1689 = vrot.slane %v1560, 2
    %v1690 = vrot.slane %v1561, 2
    %v1691 = vsel %vm1688, %v1689, %v1690
    %v1694 = vmul.f32 %v1656, %v1691
    %v1695 = vmul.f32 %v1658, %v1690
    %v1696 = vadd.f32 %v1686, %v1694
    %v1697 = vadd.f32 %v1687, %v1695
    %vm1700 = vcmask 1043456
    %v1701 = vrot.slane %v1696, 4
    %v1702 = vrot.slane %v1697, 4
    %v1703 = vsel %vm1700, %v1701, %v1702
    %1704 = vrot.lane.b32.xlu0 %v1703, 96
    %v1705 = vpop.permute.xlu0 %1704
    %v1706 = vsel %vm151, %v1705, 0
    %1708 = vmatprep.subr.mxu0 0.0
    %1709 = vmatpush1.msra.mxu0 %v1328
    %1710 = vmatprep.subr.mxu0 0.0
    %1711 = vmatpush1.msra.mxu0 %v1329
    %1712 = vmatprep.subr.mxu0 0.0
    %1713 = vmatpush1.msra.mxu0 %v1330
    %1714 = vmatprep.subr.mxu0 0.0
    %1715 = vmatpush1.msra.mxu0 %v1331
    %1716 = vmatprep.subr.mxu0 0.0
    %1717 = vmatpush1.msra.mxu0 0.0
    %1718 = vmatprep.subr.mxu0 0.0
    %1719 = vmatpush1.msra.mxu0 0.0
    %1720 = vmatprep.subr.mxu0 0.0
    %1721 = vmatpush1.msra.mxu0 0.0
    %1722 = vmatprep.subr.mxu0 0.0
    %1723 = vmatpush1.msra.mxu0 0.0
    %1724 = vmatprep.subr.mxu0 0.0
    %1725 = vmatpush1.msra.mxu0 0.0
    %1726 = vmatprep.subr.mxu0 0.0
    %1727 = vmatpush1.msra.mxu0 0.0
    %1728 = vmatprep.subr.mxu0 0.0
    %1729 = vmatpush1.msra.mxu0 0.0
    %1730 = vmatprep.subr.mxu0 0.0
    %1731 = vmatpush1.msra.mxu0 0.0
    %1732 = vmatprep.subr.mxu0 0.0
    %1733 = vmatpush1.msra.mxu0 0.0
    %1734 = vmatprep.subr.mxu0 0.0
    %1735 = vmatpush1.msra.mxu0 0.0
    %1736 = vmatprep.subr.mxu0 0.0
    %1737 = vmatpush1.msra.mxu0 0.0
    %1738 = vmatprep.subr.mxu0 0.0
    %1739 = vmatpush1.msra.mxu0 0.0
    %1740 = vmatprep.subr.mxu0 0.0
    %1741 = vmatpush1.msra.mxu0 0.0
    %1742 = vmatprep.subr.mxu0 0.0
    %1743 = vmatpush1.msra.mxu0 0.0
    %1744 = vmatprep.subr.mxu0 0.0
    %1745 = vmatpush1.msra.mxu0 0.0
    %1746 = vmatprep.subr.mxu0 0.0
    %1747 = vmatpush1.msra.mxu0 0.0
    %1748 = vmatprep.subr.mxu0 0.0
    %1749 = vmatpush1.msra.mxu0 0.0
    %1750 = vmatprep.subr.mxu0 0.0
    %1751 = vmatpush1.msra.mxu0 0.0
    %1752 = vmatprep.subr.mxu0 0.0
    %1753 = vmatpush1.msra.mxu0 0.0
    %1754 = vmatprep.subr.mxu0 0.0
    %1755 = vmatpush1.msra.mxu0 0.0
    %1756 = vmatprep.subr.mxu0 0.0
    %1757 = vmatpush1.msra.mxu0 0.0
    %1758 = vmatprep.subr.mxu0 0.0
    %1759 = vmatpush1.msra.mxu0 0.0
    %1760 = vmatprep.subr.mxu0 0.0
    %1761 = vmatpush1.msra.mxu0 0.0
    %1762 = vmatprep.subr.mxu0 0.0
    %1763 = vmatpush1.msra.mxu0 0.0
    %1764 = vmatprep.subr.mxu0 0.0
    %1765 = vmatpush1.msra.mxu0 0.0
    %1766 = vmatprep.subr.mxu0 0.0
    %1767 = vmatpush1.msra.mxu0 0.0
    %1768 = vmatprep.subr.mxu0 0.0
    %1769 = vmatpush1.msra.mxu0 0.0
    %1770 = vmatprep.subr.mxu0 0.0
    %1771 = vmatpush1.msra.mxu0 0.0
    %1772 = vmatprep.mubr.f32.mxu0 0.0
    %1773 = vmatmul.mubr.f32.gmra.mrb[0].mxu0 %v1706
    %v1774 = vpop.f32.mrb[0].mxu0
    %v1775 = vadd.f32 %v1337, %v1774
    %v1776 = vpop.f32.mrb[0].mxu0
    %1777 = vdwg.mxu0
    %v1779 = vrot.slane %v1775, 6
    %v1781 = vadd.f32 %v1310, %v1779
    %v1782 = vxor.u32 %v1781, 2147483648
    %v1783 = vmul.f32 %v1782, 1.442695
    %v1784 = vpow.pop %v1783
    %v1785 = vadd.f32 %v1784, 1.0
    %v1786 = vrcp.pop %v1785
    %v1787 = vmul.f32 1.0, %v1786
    %1788 = vrot.lane.b32.xlu0 %v1779, 64
    %v1789 = vpop.permute.xlu0 %1788
    %v1791 = vmul.f32 %v1787, %v1789
    %1793 = vrot.lane.b32.xlu0 %v1791, 64
    %v1794 = vpop.permute.xlu0 %1793
    %v1796 = vadd.f32 %v1310, %v1794
    %v1797 = vtanh.pop %v1796
    %v1798 = vsub.f32 1.0, %v1787
    %1800 = vrot.lane.b32.xlu0 %v1797, 96
    %v1801 = vpop.permute.xlu0 %1800
    %v1803 = vmul.f32 %v1798, %v1801
    %v1804 = vrot.slane %v1696, 2
    %v1805 = vrot.slane %v1697, 2
    %v1806 = vsel %vm1688, %v1804, %v1805
    %v1808 = vmul.f32 %v1787, %v1806
    %v1809 = vadd.f32 %v1803, %v1808
    %v1811 = vrot.slane %v1809, 2
    %1812 = vrot.lane.b32.xlu0 %v1811, 96
    %v1813 = vpop.permute.xlu0 %1812
    %v1814 = vsel %vm151, %v1813, 0
    %1816 = vmatprep.subr.mxu0 0.0
    %1817 = vmatpush1.msra.mxu0 %v1328
    %1818 = vmatprep.subr.mxu0 0.0
    %1819 = vmatpush1.msra.mxu0 %v1329
    %1820 = vmatprep.subr.mxu0 0.0
    %1821 = vmatpush1.msra.mxu0 %v1330
    %1822 = vmatprep.subr.mxu0 0.0
    %1823 = vmatpush1.msra.mxu0 %v1331
    %1824 = vmatprep.subr.mxu0 0.0
    %1825 = vmatpush1.msra.mxu0 0.0
    %1826 = vmatprep.subr.mxu0 0.0
    %1827 = vmatpush1.msra.mxu0 0.0
    %1828 = vmatprep.subr.mxu0 0.0
    %1829 = vmatpush1.msra.mxu0 0.0
    %1830 = vmatprep.subr.mxu0 0.0
    %1831 = vmatpush1.msra.mxu0 0.0
    %1832 = vmatprep.subr.mxu0 0.0
    %1833 = vmatpush1.msra.mxu0 0.0
    %1834 = vmatprep.subr.mxu0 0.0
    %1835 = vmatpush1.msra.mxu0 0.0
    %1836 = vmatprep.subr.mxu0 0.0
    %1837 = vmatpush1.msra.mxu0 0.0
    %1838 = vmatprep.subr.mxu0 0.0
    %1839 = vmatpush1.msra.mxu0 0.0
    %1840 = vmatprep.subr.mxu0 0.0
    %1841 = vmatpush1.msra.mxu0 0.0
    %1842 = vmatprep.subr.mxu0 0.0
    %1843 = vmatpush1.msra.mxu0 0.0
    %1844 = vmatprep.subr.mxu0 0.0
    %1845 = vmatpush1.msra.mxu0 0.0
    %1846 = vmatprep.subr.mxu0 0.0
    %1847 = vmatpush1.msra.mxu0 0.0
    %1848 = vmatprep.subr.mxu0 0.0
    %1849 = vmatpush1.msra.mxu0 0.0
    %1850 = vmatprep.subr.mxu0 0.0
    %1851 = vmatpush1.msra.mxu0 0.0
    %1852 = vmatprep.subr.mxu0 0.0
    %1853 = vmatpush1.msra.mxu0 0.0
    %1854 = vmatprep.subr.mxu0 0.0
    %1855 = vmatpush1.msra.mxu0 0.0
    %1856 = vmatprep.subr.mxu0 0.0
    %1857 = vmatpush1.msra.mxu0 0.0
    %1858 = vmatprep.subr.mxu0 0.0
    %1859 = vmatpush1.msra.mxu0 0.0
    %1860 = vmatprep.subr.mxu0 0.0
    %1861 = vmatpush1.msra.mxu0 0.0
    %1862 = vmatprep.subr.mxu0 0.0
    %1863 = vmatpush1.msra.mxu0 0.0
    %1864 = vmatprep.subr.mxu0 0.0
    %1865 = vmatpush1.msra.mxu0 0.0
    %1866 = vmatprep.subr.mxu0 0.0
    %1867 = vmatpush1.msra.mxu0 0.0
    %1868 = vmatprep.subr.mxu0 0.0
    %1869 = vmatpush1.msra.mxu0 0.0
    %1870 = vmatprep.subr.mxu0 0.0
    %1871 = vmatpush1.msra.mxu0 0.0
    %1872 = vmatprep.subr.mxu0 0.0
    %1873 = vmatpush1.msra.mxu0 0.0
    %1874 = vmatprep.subr.mxu0 0.0
    %1875 = vmatpush1.msra.mxu0 0.0
    %1876 = vmatprep.subr.mxu0 0.0
    %1877 = vmatpush1.msra.mxu0 0.0
    %1878 = vmatprep.subr.mxu0 0.0
    %1879 = vmatpush1.msra.mxu0 0.0
    %1880 = vmatprep.mubr.f32.mxu0 0.0
    %1881 = vmatmul.mubr.f32.gmra.mrb[0].mxu0 %v1814
    %v1882 = vpop.f32.mrb[0].mxu0
    %v1883 = vadd.f32 %v1337, %v1882
    %v1884 = vpop.f32.mrb[0].mxu0
    %1885 = vdwg.mxu0
    %v1886 = vadd.f32 %v1315, %v1883
    %v1887 = vxor.u32 %v1886, 2147483648
    %v1888 = vmul.f32 %v1887, 1.442695
    %v1889 = vpow.pop %v1888
    %v1890 = vadd.f32 %v1889, 1.0
    %v1891 = vrcp.pop %v1890
    %v1892 = vmul.f32 1.0, %v1891
    %1894 = vrot.lane.b32.xlu0 %v1883, 64
    %v1895 = vpop.permute.xlu0 %1894
    %v1897 = vmul.f32 %v1892, %v1895
    %1899 = vrot.lane.b32.xlu0 %v1897, 64
    %v1900 = vpop.permute.xlu0 %1899
    %v1902 = vadd.f32 %v1315, %v1900
    %v1903 = vtanh.pop %v1902
    %v1904 = vsub.f32 1.0, %v1892
    %1906 = vrot.lane.b32.xlu0 %v1903, 96
    %v1907 = vpop.permute.xlu0 %1906
    %v1909 = vmul.f32 %v1904, %v1907
    %v1911 = vmul.f32 %v1892, %v1811
    %v1912 = vadd.f32 %v1909, %v1911
    %1914 = vrot.lane.b32.xlu0 %v1912, 96
    %v1915 = vpop.permute.xlu0 %1914
    %v1916 = vsel %vm151, %v1915, 0
    %1918 = vmatprep.subr.mxu0 0.0
    %1919 = vmatpush1.msra.mxu0 %v1328
    %1920 = vmatprep.subr.mxu0 0.0
    %1921 = vmatpush1.msra.mxu0 %v1329
    %1922 = vmatprep.subr.mxu0 0.0
    %1923 = vmatpush1.msra.mxu0 %v1330
    %1924 = vmatprep.subr.mxu0 0.0
    %1925 = vmatpush1.msra.mxu0 %v1331
    %1926 = vmatprep.subr.mxu0 0.0
    %1927 = vmatpush1.msra.mxu0 0.0
    %1928 = vmatprep.subr.mxu0 0.0
    %1929 = vmatpush1.msra.mxu0 0.0
    %1930 = vmatprep.subr.mxu0 0.0
    %1931 = vmatpush1.msra.mxu0 0.0
    %1932 = vmatprep.subr.mxu0 0.0
    %1933 = vmatpush1.msra.mxu0 0.0
    %1934 = vmatprep.subr.mxu0 0.0
    %1935 = vmatpush1.msra.mxu0 0.0
    %1936 = vmatprep.subr.mxu0 0.0
    %1937 = vmatpush1.msra.mxu0 0.0
    %1938 = vmatprep.subr.mxu0 0.0
    %1939 = vmatpush1.msra.mxu0 0.0
    %1940 = vmatprep.subr.mxu0 0.0
    %1941 = vmatpush1.msra.mxu0 0.0
    %1942 = vmatprep.subr.mxu0 0.0
    %1943 = vmatpush1.msra.mxu0 0.0
    %1944 = vmatprep.subr.mxu0 0.0
    %1945 = vmatpush1.msra.mxu0 0.0
    %1946 = vmatprep.subr.mxu0 0.0
    %1947 = vmatpush1.msra.mxu0 0.0
    %1948 = vmatprep.subr.mxu0 0.0
    %1949 = vmatpush1.msra.mxu0 0.0
    %1950 = vmatprep.subr.mxu0 0.0
    %1951 = vmatpush1.msra.mxu0 0.0
    %1952 = vmatprep.subr.mxu0 0.0
    %1953 = vmatpush1.msra.mxu0 0.0
    %1954 = vmatprep.subr.mxu0 0.0
    %1955 = vmatpush1.msra.mxu0 0.0
    %1956 = vmatprep.subr.mxu0 0.0
    %1957 = vmatpush1.msra.mxu0 0.0
    %1958 = vmatprep.subr.mxu0 0.0
    %1959 = vmatpush1.msra.mxu0 0.0
    %1960 = vmatprep.subr.mxu0 0.0
    %1961 = vmatpush1.msra.mxu0 0.0
    %1962 = vmatprep.subr.mxu0 0.0
    %1963 = vmatpush1.msra.mxu0 0.0
    %1964 = vmatprep.subr.mxu0 0.0
    %1965 = vmatpush1.msra.mxu0 0.0
    %1966 = vmatprep.subr.mxu0 0.0
    %1967 = vmatpush1.msra.mxu0 0.0
    %1968 = vmatprep.subr.mxu0 0.0
    %1969 = vmatpush1.msra.mxu0 0.0
    %1970 = vmatprep.subr.mxu0 0.0
    %1971 = vmatpush1.msra.mxu0 0.0
    %1972 = vmatprep.subr.mxu0 0.0
    %1973 = vmatpush1.msra.mxu0 0.0
    %1974 = vmatprep.subr.mxu0 0.0
    %1975 = vmatpush1.msra.mxu0 0.0
    %1976 = vmatprep.subr.mxu0 0.0
    %1977 = vmatpush1.msra.mxu0 0.0
    %1978 = vmatprep.subr.mxu0 0.0
    %1979 = vmatpush1.msra.mxu0 0.0
    %1980 = vmatprep.subr.mxu0 0.0
    %1981 = vmatpush1.msra.mxu0 0.0
    %1982 = vmatprep.mubr.f32.mxu0 0.0
    %1983 = vmatmul.mubr.f32.gmra.mrb[0].mxu0 %v1916
    %v1984 = vpop.f32.mrb[0].mxu0
    %v1985 = vadd.f32 %v1337, %v1984
    %v1986 = vpop.f32.mrb[0].mxu0
    %1987 = vdwg.mxu0
    %v1989 = vrot.slane %v1985, 2
    %v1991 = vadd.f32 %v1315, %v1989
    %v1992 = vadd.f32 %v1320, %v1989
    %v1993 = vxor.u32 %v1991, 2147483648
    %v1994 = vxor.u32 %v1992, 2147483648
    %v1995 = vmul.f32 %v1993, 1.442695
    %v1996 = vpow.pop %v1995
    %v1997 = vmul.f32 %v1994, 1.442695
    %v1998 = vpow.pop %v1997
    %v1999 = vadd.f32 %v1996, 1.0
    %v2000 = vadd.f32 %v1998, 1.0
    %v2001 = vrcp.pop %v1999
    %v2002 = vmul.f32 1.0, %v2001
    %v2003 = vrcp.pop %v2000
    %v2004 = vmul.f32 1.0, %v2003
    %2005 = vrot.lane.b32.xlu0 %v1989, 64
    %v2006 = vpop.permute.xlu0 %2005
    %v2008 = vmul.f32 %v2002, %v2006
    %v2009 = vmul.f32 %v2004, %v2006
    %2012 = vrot.lane.b32.xlu0 %v2008, 64
    %v2013 = vpop.permute.xlu0 %2012
    %2014 = vrot.lane.b32.xlu0 %v2009, 64
    %v2015 = vpop.permute.xlu0 %2014
    %v2018 = vadd.f32 %v1315, %v2013
    %v2019 = vadd.f32 %v1320, %v2015
    %v2020 = vtanh.pop %v2018
    %v2021 = vtanh.pop %v2019
    %v2022 = vsub.f32 1.0, %v2002
    %v2023 = vsub.f32 1.0, %v2004
    %2026 = vrot.lane.b32.xlu0 %v2020, 96
    %v2027 = vpop.permute.xlu0 %2026
    %2028 = vrot.lane.b32.xlu0 %v2021, 96
    %v2029 = vpop.permute.xlu0 %2028
    %v2032 = vmul.f32 %v2022, %v2027
    %v2033 = vmul.f32 %v2023, %v2029
    %v2034 = vrot.slane %v1912, 2
    %v2036 = vmul.f32 %v2002, %v2034
    %v2037 = vmul.f32 %v2004, %v2034
    %v2038 = vadd.f32 %v2032, %v2036
    %v2039 = vadd.f32 %v2033, %v2037
    %v2042 = vrot.slane %v2038, 6
    %v2043 = vrot.slane %v2039, 6
    %v2044 = vsel %vm1564, %v2042, %v2043
    %2045 = vrot.lane.b32.xlu0 %v2044, 96
    %v2046 = vpop.permute.xlu0 %2045
    %v2047 = vsel %vm151, %v2046, 0
    %2049 = vmatprep.subr.mxu0 0.0
    %2050 = vmatpush1.msra.mxu0 %v1328
    %2051 = vmatprep.subr.mxu0 0.0
    %2052 = vmatpush1.msra.mxu0 %v1329
    %2053 = vmatprep.subr.mxu0 0.0
    %2054 = vmatpush1.msra.mxu0 %v1330
    %2055 = vmatprep.subr.mxu0 0.0
    %2056 = vmatpush1.msra.mxu0 %v1331
    %2057 = vmatprep.subr.mxu0 0.0
    %2058 = vmatpush1.msra.mxu0 0.0
    %2059 = vmatprep.subr.mxu0 0.0
    %2060 = vmatpush1.msra.mxu0 0.0
    %2061 = vmatprep.subr.mxu0 0.0
    %2062 = vmatpush1.msra.mxu0 0.0
    %2063 = vmatprep.subr.mxu0 0.0
    %2064 = vmatpush1.msra.mxu0 0.0
    %2065 = vmatprep.subr.mxu0 0.0
    %2066 = vmatpush1.msra.mxu0 0.0
    %2067 = vmatprep.subr.mxu0 0.0
    %2068 = vmatpush1.msra.mxu0 0.0
    %2069 = vmatprep.subr.mxu0 0.0
    %2070 = vmatpush1.msra.mxu0 0.0
    %2071 = vmatprep.subr.mxu0 0.0
    %2072 = vmatpush1.msra.mxu0 0.0
    %2073 = vmatprep.subr.mxu0 0.0
    %2074 = vmatpush1.msra.mxu0 0.0
    %2075 = vmatprep.subr.mxu0 0.0
    %2076 = vmatpush1.msra.mxu0 0.0
    %2077 = vmatprep.subr.mxu0 0.0
    %2078 = vmatpush1.msra.mxu0 0.0
    %2079 = vmatprep.subr.mxu0 0.0
    %2080 = vmatpush1.msra.mxu0 0.0
    %2081 = vmatprep.subr.mxu0 0.0
    %2082 = vmatpush1.msra.mxu0 0.0
    %2083 = vmatprep.subr.mxu0 0.0
    %2084 = vmatpush1.msra.mxu0 0.0
    %2085 = vmatprep.subr.mxu0 0.0
    %2086 = vmatpush1.msra.mxu0 0.0
    %2087 = vmatprep.subr.mxu0 0.0
    %2088 = vmatpush1.msra.mxu0 0.0
    %2089 = vmatprep.subr.mxu0 0.0
    %2090 = vmatpush1.msra.mxu0 0.0
    %2091 = vmatprep.subr.mxu0 0.0
    %2092 = vmatpush1.msra.mxu0 0.0
    %2093 = vmatprep.subr.mxu0 0.0
    %2094 = vmatpush1.msra.mxu0 0.0
    %2095 = vmatprep.subr.mxu0 0.0
    %2096 = vmatpush1.msra.mxu0 0.0
    %2097 = vmatprep.subr.mxu0 0.0
    %2098 = vmatpush1.msra.mxu0 0.0
    %2099 = vmatprep.subr.mxu0 0.0
    %2100 = vmatpush1.msra.mxu0 0.0
    %2101 = vmatprep.subr.mxu0 0.0
    %2102 = vmatpush1.msra.mxu0 0.0
    %2103 = vmatprep.subr.mxu0 0.0
    %2104 = vmatpush1.msra.mxu0 0.0
    %2105 = vmatprep.subr.mxu0 0.0
    %2106 = vmatpush1.msra.mxu0 0.0
    %2107 = vmatprep.subr.mxu0 0.0
    %2108 = vmatpush1.msra.mxu0 0.0
    %2109 = vmatprep.subr.mxu0 0.0
    %2110 = vmatpush1.msra.mxu0 0.0
    %2111 = vmatprep.subr.mxu0 0.0
    %2112 = vmatpush1.msra.mxu0 0.0
    %2113 = vmatprep.mubr.f32.mxu0 0.0
    %2114 = vmatmul.mubr.f32.gmra.mrb[0].mxu0 %v2047
    %v2115 = vpop.f32.mrb[0].mxu0
    %v2116 = vadd.f32 %v1337, %v2115
    %v2117 = vpop.f32.mrb[0].mxu0
    %2118 = vdwg.mxu0
    %v2120 = vrot.slane %v2116, 4
    %v2122 = vadd.f32 %v1320, %v2120
    %v2123 = vadd.f32 %v1325, %v2120
    %v2124 = vxor.u32 %v2122, 2147483648
    %v2125 = vxor.u32 %v2123, 2147483648
    %v2126 = vmul.f32 %v2124, 1.442695
    %v2127 = vpow.pop %v2126
    %v2128 = vmul.f32 %v2125, 1.442695
    %v2129 = vpow.pop %v2128
    %v2130 = vadd.f32 %v2127, 1.0
    %v2131 = vadd.f32 %v2129, 1.0
    %v2132 = vrcp.pop %v2130
    %v2133 = vmul.f32 1.0, %v2132
    %v2134 = vrcp.pop %v2131
    %v2135 = vmul.f32 1.0, %v2134
    %2136 = vrot.lane.b32.xlu0 %v2120, 64
    %v2137 = vpop.permute.xlu0 %2136
    %v2139 = vmul.f32 %v2133, %v2137
    %v2140 = vmul.f32 %v2135, %v2137
    %2143 = vrot.lane.b32.xlu0 %v2139, 64
    %v2144 = vpop.permute.xlu0 %2143
    %2145 = vrot.lane.b32.xlu0 %v2140, 64
    %v2146 = vpop.permute.xlu0 %2145
    %v2149 = vadd.f32 %v1320, %v2144
    %v2150 = vadd.f32 %v1325, %v2146
    %v2151 = vtanh.pop %v2149
    %v2152 = vtanh.pop %v2150
    %v2153 = vsub.f32 1.0, %v2133
    %v2154 = vsub.f32 1.0, %v2135
    %2157 = vrot.lane.b32.xlu0 %v2151, 96
    %v2158 = vpop.permute.xlu0 %2157
    %2159 = vrot.lane.b32.xlu0 %v2152, 96
    %v2160 = vpop.permute.xlu0 %2159
    %v2163 = vmul.f32 %v2153, %v2158
    %v2164 = vmul.f32 %v2154, %v2160
    %v2165 = vrot.slane %v2038, 2
    %v2166 = vrot.slane %v2039, 2
    %v2167 = vsel %vm1688, %v2165, %v2166
    %v2170 = vmul.f32 %v2133, %v2167
    %v2171 = vmul.f32 %v2135, %v2166
    %v2172 = vadd.f32 %v2163, %v2170
    %v2173 = vadd.f32 %v2164, %v2171
    %v2176 = vrot.slane %v2172, 4
    %v2177 = vrot.slane %v2173, 4
    %v2178 = vsel %vm1700, %v2176, %v2177
    %2179 = vrot.lane.b32.xlu0 %v2178, 96
    %v2180 = vpop.permute.xlu0 %2179
    %v2181 = vsel %vm151, %v2180, 0
    %2183 = vmatprep.subr.mxu0 0.0
    %2184 = vmatpush1.msra.mxu0 %v1328
    %2185 = vmatprep.subr.mxu0 0.0
    %2186 = vmatpush1.msra.mxu0 %v1329
    %2187 = vmatprep.subr.mxu0 0.0
    %2188 = vmatpush1.msra.mxu0 %v1330
    %2189 = vmatprep.subr.mxu0 0.0
    %2190 = vmatpush1.msra.mxu0 %v1331
    %2191 = vmatprep.subr.mxu0 0.0
    %2192 = vmatpush1.msra.mxu0 0.0
    %2193 = vmatprep.subr.mxu0 0.0
    %2194 = vmatpush1.msra.mxu0 0.0
    %2195 = vmatprep.subr.mxu0 0.0
    %2196 = vmatpush1.msra.mxu0 0.0
    %2197 = vmatprep.subr.mxu0 0.0
    %2198 = vmatpush1.msra.mxu0 0.0
    %2199 = vmatprep.subr.mxu0 0.0
    %2200 = vmatpush1.msra.mxu0 0.0
    %2201 = vmatprep.subr.mxu0 0.0
    %2202 = vmatpush1.msra.mxu0 0.0
    %2203 = vmatprep.subr.mxu0 0.0
    %2204 = vmatpush1.msra.mxu0 0.0
    %2205 = vmatprep.subr.mxu0 0.0
    %2206 = vmatpush1.msra.mxu0 0.0
    %2207 = vmatprep.subr.mxu0 0.0
    %2208 = vmatpush1.msra.mxu0 0.0
    %2209 = vmatprep.subr.mxu0 0.0
    %2210 = vmatpush1.msra.mxu0 0.0
    %2211 = vmatprep.subr.mxu0 0.0
    %2212 = vmatpush1.msra.mxu0 0.0
    %2213 = vmatprep.subr.mxu0 0.0
    %2214 = vmatpush1.msra.mxu0 0.0
    %2215 = vmatprep.subr.mxu0 0.0
    %2216 = vmatpush1.msra.mxu0 0.0
    %2217 = vmatprep.subr.mxu0 0.0
    %2218 = vmatpush1.msra.mxu0 0.0
    %2219 = vmatprep.subr.mxu0 0.0
    %2220 = vmatpush1.msra.mxu0 0.0
    %2221 = vmatprep.subr.mxu0 0.0
    %2222 = vmatpush1.msra.mxu0 0.0
    %2223 = vmatprep.subr.mxu0 0.0
    %2224 = vmatpush1.msra.mxu0 0.0
    %2225 = vmatprep.subr.mxu0 0.0
    %2226 = vmatpush1.msra.mxu0 0.0
    %2227 = vmatprep.subr.mxu0 0.0
    %2228 = vmatpush1.msra.mxu0 0.0
    %2229 = vmatprep.subr.mxu0 0.0
    %2230 = vmatpush1.msra.mxu0 0.0
    %2231 = vmatprep.subr.mxu0 0.0
    %2232 = vmatpush1.msra.mxu0 0.0
    %2233 = vmatprep.subr.mxu0 0.0
    %2234 = vmatpush1.msra.mxu0 0.0
    %2235 = vmatprep.subr.mxu0 0.0
    %2236 = vmatpush1.msra.mxu0 0.0
    %2237 = vmatprep.subr.mxu0 0.0
    %2238 = vmatpush1.msra.mxu0 0.0
    %2239 = vmatprep.subr.mxu0 0.0
    %2240 = vmatpush1.msra.mxu0 0.0
    %2241 = vmatprep.subr.mxu0 0.0
    %2242 = vmatpush1.msra.mxu0 0.0
    %2243 = vmatprep.subr.mxu0 0.0
    %2244 = vmatpush1.msra.mxu0 0.0
    %2245 = vmatprep.subr.mxu0 0.0
    %2246 = vmatpush1.msra.mxu0 0.0
    %2247 = vmatprep.mubr.f32.mxu0 0.0
    %2248 = vmatmul.mubr.f32.gmra.mrb[0].mxu0 %v2181
    %v2249 = vpop.f32.mrb[0].mxu0
    %v2250 = vadd.f32 %v1337, %v2249
    %v2251 = vpop.f32.mrb[0].mxu0
    %2252 = vdwg.mxu0
    %v2254 = vrot.slane %v2250, 6
    %v2256 = vadd.f32 %v1325, %v2254
    %v2257 = vxor.u32 %v2256, 2147483648
    %v2258 = vmul.f32 %v2257, 1.442695
    %v2259 = vpow.pop %v2258
    %v2260 = vadd.f32 %v2259, 1.0
    %v2261 = vrcp.pop %v2260
    %v2262 = vmul.f32 1.0, %v2261
    %2263 = vrot.lane.b32.xlu0 %v2254, 64
    %v2264 = vpop.permute.xlu0 %2263
    %v2266 = vmul.f32 %v2262, %v2264
    %2268 = vrot.lane.b32.xlu0 %v2266, 64
    %v2269 = vpop.permute.xlu0 %2268
    %v2271 = vadd.f32 %v1325, %v2269
    %v2272 = vtanh.pop %v2271
    %v2273 = vsub.f32 1.0, %v2262
    %2275 = vrot.lane.b32.xlu0 %v2272, 96
    %v2276 = vpop.permute.xlu0 %2275
    %v2278 = vmul.f32 %v2273, %v2276
    %v2279 = vrot.slane %v2172, 2
    %v2280 = vrot.slane %v2173, 2
    %v2281 = vsel %vm1688, %v2279, %v2280
    %v2283 = vmul.f32 %v2262, %v2281
    %v2284 = vadd.f32 %v2278, %v2283
    %v2285 = vand.u32 2147483647, %v1199
    %2287 = vrot.lane.b32.xlu0 %v1199, 96
    %v2288 = vpop.permute.xlu0 %2287
    %v2290 = vsel %vm151, %v2288, %v2285
    %v2291 = vld [vmem:[%s10] sm:$0xff]
    %v2292 = vld [vmem:[%s10 + $0x8] sm:$0xff]
    %v2293 = vld [vmem:[%s10 + $0x10] sm:$0xff]
    %v2294 = vld [vmem:[%s10 + $0x18] sm:$0xff]
    %v2295 = vld [vmem:[%s10 + $0x20] sm:$0xff]
    %v2296 = vld [vmem:[%s10 + $0x28] sm:$0xff]
    %v2297 = vld [vmem:[%s10 + $0x30] sm:$0xff]
    %v2298 = vld [vmem:[%s10 + $0x38] sm:$0xff]
    %v2300 = vrot.slane %v2290, 1
    %vm2301 = vcmask 523264
    %v2302 = vsel %vm2301, %v2300, 0
    %2304 = vmatprep.subr.mxu0 0.0
    %2305 = vmatpush1.msra.mxu0 %v2291
    %2306 = vmatprep.subr.mxu0 0.0
    %2307 = vmatpush1.msra.mxu0 %v2292
    %2308 = vmatprep.subr.mxu0 0.0
    %2309 = vmatpush1.msra.mxu0 %v2293
    %2310 = vmatprep.subr.mxu0 0.0
    %2311 = vmatpush1.msra.mxu0 %v2294
    %2312 = vmatprep.subr.mxu0 0.0
    %2313 = vmatpush1.msra.mxu0 %v2295
    %2314 = vmatprep.subr.mxu0 0.0
    %2315 = vmatpush1.msra.mxu0 %v2296
    %2316 = vmatprep.subr.mxu0 0.0
    %2317 = vmatpush1.msra.mxu0 %v2297
    %2318 = vmatprep.subr.mxu0 0.0
    %2319 = vmatpush1.msra.mxu0 %v2298
    %2320 = vmatprep.subr.mxu0 0.0
    %2321 = vmatpush1.msra.mxu0 0.0
    %2322 = vmatprep.subr.mxu0 0.0
    %2323 = vmatpush1.msra.mxu0 0.0
    %2324 = vmatprep.subr.mxu0 0.0
    %2325 = vmatpush1.msra.mxu0 0.0
    %2326 = vmatprep.subr.mxu0 0.0
    %2327 = vmatpush1.msra.mxu0 0.0
    %2328 = vmatprep.subr.mxu0 0.0
    %2329 = vmatpush1.msra.mxu0 0.0
    %2330 = vmatprep.subr.mxu0 0.0
    %2331 = vmatpush1.msra.mxu0 0.0
    %2332 = vmatprep.subr.mxu0 0.0
    %2333 = vmatpush1.msra.mxu0 0.0
    %2334 = vmatprep.subr.mxu0 0.0
    %2335 = vmatpush1.msra.mxu0 0.0
    %2336 = vmatprep.subr.mxu0 0.0
    %2337 = vmatpush1.msra.mxu0 0.0
    %2338 = vmatprep.subr.mxu0 0.0
    %2339 = vmatpush1.msra.mxu0 0.0
    %2340 = vmatprep.subr.mxu0 0.0
    %2341 = vmatpush1.msra.mxu0 0.0
    %2342 = vmatprep.subr.mxu0 0.0
    %2343 = vmatpush1.msra.mxu0 0.0
    %2344 = vmatprep.subr.mxu0 0.0
    %2345 = vmatpush1.msra.mxu0 0.0
    %2346 = vmatprep.subr.mxu0 0.0
    %2347 = vmatpush1.msra.mxu0 0.0
    %2348 = vmatprep.subr.mxu0 0.0
    %2349 = vmatpush1.msra.mxu0 0.0
    %2350 = vmatprep.subr.mxu0 0.0
    %2351 = vmatpush1.msra.mxu0 0.0
    %2352 = vmatprep.subr.mxu0 0.0
    %2353 = vmatpush1.msra.mxu0 0.0
    %2354 = vmatprep.subr.mxu0 0.0
    %2355 = vmatpush1.msra.mxu0 0.0
    %2356 = vmatprep.subr.mxu0 0.0
    %2357 = vmatpush1.msra.mxu0 0.0
    %2358 = vmatprep.subr.mxu0 0.0
    %2359 = vmatpush1.msra.mxu0 0.0
    %2360 = vmatprep.subr.mxu0 0.0
    %2361 = vmatpush1.msra.mxu0 0.0
    %2362 = vmatprep.subr.mxu0 0.0
    %2363 = vmatpush1.msra.mxu0 0.0
    %2364 = vmatprep.subr.mxu0 0.0
    %2365 = vmatpush1.msra.mxu0 0.0
    %2366 = vmatprep.subr.mxu0 0.0
    %2367 = vmatpush1.msra.mxu0 0.0
    %2368 = vmatprep.mubr.f32.mxu0 0.0
    %2369 = vmatmul.mubr.f32.gmra.mrb[0].mxu0 %v2302
    %v2370 = vpop.f32.mrb[0].mxu0
    %v2371 = vadd.f32 0.0, %v2370
    %v2372 = vpop.f32.mrb[0].mxu0
    %2373 = vdwg.mxu0
    %v2374 = vtanh.pop %v2371
    %v2375 = vld [vmem:[%s11] sm:$0xff]
    %v2376 = vld [vmem:[%s11 + $0x8] sm:$0xff]
    %v2377 = vld [vmem:[%s11 + $0x10] sm:$0xff]
    %v2378 = vld [vmem:[%s11 + $0x18] sm:$0xff]
    %v2379 = vld [vmem:[#allocation2] sm:$0x1]
    %v2381 = vsel %vm151, %v2374, 0
    %2383 = vmatprep.subr.mxu0 0.0
    %2384 = vmatpush1.msra.mxu0 %v2375
    %2385 = vmatprep.subr.mxu0 0.0
    %2386 = vmatpush1.msra.mxu0 %v2376
    %2387 = vmatprep.subr.mxu0 0.0
    %2388 = vmatpush1.msra.mxu0 %v2377
    %2389 = vmatprep.subr.mxu0 0.0
    %2390 = vmatpush1.msra.mxu0 %v2378
    %2391 = vmatprep.subr.mxu0 0.0
    %2392 = vmatpush1.msra.mxu0 0.0
    %2393 = vmatprep.subr.mxu0 0.0
    %2394 = vmatpush1.msra.mxu0 0.0
    %2395 = vmatprep.subr.mxu0 0.0
    %2396 = vmatpush1.msra.mxu0 0.0
    %2397 = vmatprep.subr.mxu0 0.0
    %2398 = vmatpush1.msra.mxu0 0.0
    %2399 = vmatprep.subr.mxu0 0.0
    %2400 = vmatpush1.msra.mxu0 0.0
    %2401 = vmatprep.subr.mxu0 0.0
    %2402 = vmatpush1.msra.mxu0 0.0
    %2403 = vmatprep.subr.mxu0 0.0
    %2404 = vmatpush1.msra.mxu0 0.0
    %2405 = vmatprep.subr.mxu0 0.0
    %2406 = vmatpush1.msra.mxu0 0.0
    %2407 = vmatprep.subr.mxu0 0.0
    %2408 = vmatpush1.msra.mxu0 0.0
    %2409 = vmatprep.subr.mxu0 0.0
    %2410 = vmatpush1.msra.mxu0 0.0
    %2411 = vmatprep.subr.mxu0 0.0
    %2412 = vmatpush1.msra.mxu0 0.0
    %2413 = vmatprep.subr.mxu0 0.0
    %2414 = vmatpush1.msra.mxu0 0.0
    %2415 = vmatprep.subr.mxu0 0.0
    %2416 = vmatpush1.msra.mxu0 0.0
    %2417 = vmatprep.subr.mxu0 0.0
    %2418 = vmatpush1.msra.mxu0 0.0
    %2419 = vmatprep.subr.mxu0 0.0
    %2420 = vmatpush1.msra.mxu0 0.0
    %2421 = vmatprep.subr.mxu0 0.0
    %2422 = vmatpush1.msra.mxu0 0.0
    %2423 = vmatprep.subr.mxu0 0.0
    %2424 = vmatpush1.msra.mxu0 0.0
    %2425 = vmatprep.subr.mxu0 0.0
    %2426 = vmatpush1.msra.mxu0 0.0
    %2427 = vmatprep.subr.mxu0 0.0
    %2428 = vmatpush1.msra.mxu0 0.0
    %2429 = vmatprep.subr.mxu0 0.0
    %2430 = vmatpush1.msra.mxu0 0.0
    %2431 = vmatprep.subr.mxu0 0.0
    %2432 = vmatpush1.msra.mxu0 0.0
    %2433 = vmatprep.subr.mxu0 0.0
    %2434 = vmatpush1.msra.mxu0 0.0
    %2435 = vmatprep.subr.mxu0 0.0
    %2436 = vmatpush1.msra.mxu0 0.0
    %2437 = vmatprep.subr.mxu0 0.0
    %2438 = vmatpush1.msra.mxu0 0.0
    %2439 = vmatprep.subr.mxu0 0.0
    %2440 = vmatpush1.msra.mxu0 0.0
    %2441 = vmatprep.subr.mxu0 0.0
    %2442 = vmatpush1.msra.mxu0 0.0
    %2443 = vmatprep.subr.mxu0 0.0
    %2444 = vmatpush1.msra.mxu0 0.0
    %2445 = vmatprep.subr.mxu0 0.0
    %2446 = vmatpush1.msra.mxu0 0.0
    %2447 = vmatprep.mubr.f32.mxu0 0.0
    %2448 = vmatmul.mubr.f32.gmra.mrb[0].mxu0 %v2381
    %v2449 = vpop.f32.mrb[0].mxu0
    %v2450 = vadd.f32 %v2379, %v2449
    %v2451 = vpop.f32.mrb[0].mxu0
    %2452 = vdwg.mxu0
    %v2453 = vtanh.pop %v2450
    %v2454 = vlaneseq
    %v2455 = vshrl.u32 %v2454, 7
    %v2456 = vsub.s32 0, %v2455
    %v2457 = vrot.slane %v2453, %v2456
    %vm2458 = vcmask 7168
    %v2459 = vsel %vm2458, %v2457, -inf
    %v2460 = vsub.f32 %v2457, %v2459
    %v2461 = vmul.f32 %v2460, 1.442695
    %v2462 = vpow.pop %v2461
    %vm2463 = vcmask 5120
    %v2464 = vsel %vm2463, %v2462, 0.0
    %v2465 = vrot.slane %v2464, 4
    %v2466 = vadd.f32 %v2464, %v2465
    %v2467 = vrot.slane %v2466, 2
    %v2468 = vadd.f32 %v2466, %v2467
    %v2469 = vrot.slane %v2468, 1
    %v2470 = vadd.f32 %v2468, %v2469
    %v2471 = vrcp.pop %v2470
    %v2472 = vmul.f32 %v2462, %v2471
    %2474 = vset.pattern.permute.xlu0 0
    %2475 = vperm.xlu0 %2474, %v2472
    %v2476 = vpop.permute.xlu0 %2475
    %v2478 = vmul.f32 %v2476, %v2284
    %v2480 = vrot.slane %v2478, 2
    %vm2482 = vcmask 521472
    %v2483 = vsel %vm2482, %v2480, 0.0
    %v2484 = vrot.slane %v2483, 4
    %v2485 = vadd.f32 %v2483, %v2484
    %v2486 = vrot.slane %v2485, 2
    %v2487 = vadd.f32 %v2485, %v2486
    %v2488 = vrot.slane %v2487, 1
    %v2489 = vadd.f32 %v2487, %v2488
    %v2490 = vld [vmem:[%s13] sm:$0xff]
    %v2491 = vld [vmem:[%s13 + $0x8] sm:$0xff]
    %v2492 = vld [vmem:[%s13 + $0x10] sm:$0xff]
    %v2493 = vld [vmem:[%s13 + $0x18] sm:$0xff]
    %v2494 = vld [vmem:[%s14] sm:$0x1]
    %2496 = vrot.lane.b32.xlu0 %v2489, 96
    %v2497 = vpop.permute.xlu0 %2496
    %v2498 = vsel %vm151, %v2497, 0
    %2500 = vmatprep.subr.mxu0 0.0
    %2501 = vmatpush1.msra.mxu0 %v2490
    %2502 = vmatprep.subr.mxu0 0.0
    %2503 = vmatpush1.msra.mxu0 %v2491
    %2504 = vmatprep.subr.mxu0 0.0
    %2505 = vmatpush1.msra.mxu0 %v2492
    %2506 = vmatprep.subr.mxu0 0.0
    %2507 = vmatpush1.msra.mxu0 %v2493
    %2508 = vmatprep.subr.mxu0 0.0
    %2509 = vmatpush1.msra.mxu0 0.0
    %2510 = vmatprep.subr.mxu0 0.0
    %2511 = vmatpush1.msra.mxu0 0.0
    %2512 = vmatprep.subr.mxu0 0.0
    %2513 = vmatpush1.msra.mxu0 0.0
    %2514 = vmatprep.subr.mxu0 0.0
    %2515 = vmatpush1.msra.mxu0 0.0
    %2516 = vmatprep.subr.mxu0 0.0
    %2517 = vmatpush1.msra.mxu0 0.0
    %2518 = vmatprep.subr.mxu0 0.0
    %2519 = vmatpush1.msra.mxu0 0.0
    %2520 = vmatprep.subr.mxu0 0.0
    %2521 = vmatpush1.msra.mxu0 0.0
    %2522 = vmatprep.subr.mxu0 0.0
    %2523 = vmatpush1.msra.mxu0 0.0
    %2524 = vmatprep.subr.mxu0 0.0
    %2525 = vmatpush1.msra.mxu0 0.0
    %2526 = vmatprep.subr.mxu0 0.0
    %2527 = vmatpush1.msra.mxu0 0.0
    %2528 = vmatprep.subr.mxu0 0.0
    %2529 = vmatpush1.msra.mxu0 0.0
    %2530 = vmatprep.subr.mxu0 0.0
    %2531 = vmatpush1.msra.mxu0 0.0
    %2532 = vmatprep.subr.mxu0 0.0
    %2533 = vmatpush1.msra.mxu0 0.0
    %2534 = vmatprep.subr.mxu0 0.0
    %2535 = vmatpush1.msra.mxu0 0.0
    %2536 = vmatprep.subr.mxu0 0.0
    %2537 = vmatpush1.msra.mxu0 0.0
    %2538 = vmatprep.subr.mxu0 0.0
    %2539 = vmatpush1.msra.mxu0 0.0
    %2540 = vmatprep.subr.mxu0 0.0
    %2541 = vmatpush1.msra.mxu0 0.0
    %2542 = vmatprep.subr.mxu0 0.0
    %2543 = vmatpush1.msra.mxu0 0.0
    %2544 = vmatprep.subr.mxu0 0.0
    %2545 = vmatpush1.msra.mxu0 0.0
    %2546 = vmatprep.subr.mxu0 0.0
    %2547 = vmatpush1.msra.mxu0 0.0
    %2548 = vmatprep.subr.mxu0 0.0
    %2549 = vmatpush1.msra.mxu0 0.0
    %2550 = vmatprep.subr.mxu0 0.0
    %2551 = vmatpush1.msra.mxu0 0.0
    %2552 = vmatprep.subr.mxu0 0.0
    %2553 = vmatpush1.msra.mxu0 0.0
    %2554 = vmatprep.subr.mxu0 0.0
    %2555 = vmatpush1.msra.mxu0 0.0
    %2556 = vmatprep.subr.mxu0 0.0
    %2557 = vmatpush1.msra.mxu0 0.0
    %2558 = vmatprep.subr.mxu0 0.0
    %2559 = vmatpush1.msra.mxu0 0.0
    %2560 = vmatprep.subr.mxu0 0.0
    %2561 = vmatpush1.msra.mxu0 0.0
    %2562 = vmatprep.subr.mxu0 0.0
    %2563 = vmatpush1.msra.mxu0 0.0
    %2564 = vmatprep.mubr.f32.mxu0 0.0
    %2565 = vmatmul.mubr.f32.gmra.mrb[0].mxu0 %v2498
    %v2566 = vpop.f32.mrb[0].mxu0
    %v2567 = vadd.f32 %v2494, %v2566
    %v2568 = vpop.f32.mrb[0].mxu0
    %2569 = vdwg.mxu0
    %v2570 = vxor.u32 %v2567, 2147483648
    %v2571 = vmul.f32 %v2570, 1.442695
    %v2572 = vpow.pop %v2571
    %v2573 = vadd.f32 %v2572, 1.0
    %v2574 = vrcp.pop %v2573
    %v2575 = vmul.f32 1.0, %v2574
    %vm2576 = vcmask 24576
    %2577 = vst.msk [vmem:[#allocation3] sm:$0x1] %vm2576, %v2575
    // Predicated region
    $region62: #{han_forward.1} parent=1 // pred_check
      _
    $region63: #{han_forward.1} parent=1 // pred_check_branch
      %2579 = sbr.rel (0) target = $region65
    $region64: #{han_forward.1} parent=1 // pred_region
      %s2581 = ssub.s32 16, 16
      %2582 = vsyncadd [#allocation4], %s2581
      %s2584 = sshll.u32 [#allocation3], 4
      %s2585 = int_to_ptr.vmem [resolvable:$true] %s2584
      %2587 = dma.vmem_to_hbm [thread:$0]  %s2585, 16, %s15, [#allocation4]
    $region65: #{han_forward.1} parent=1 // pred_fallthru
      _
    // Predicated region
    $region66: #{han_forward.1} parent=1 // pred_check
      _
    $region67: #{han_forward.1} parent=1 // pred_check_branch
      %2589 = sbr.rel (0) target = $region69
    $region68: #{han_forward.1} parent=1 // pred_region
      %2590 = dma.done [#allocation4], 16
    $region69: #{han_forward.1} parent=1 // pred_fallthru
      _
    %2591 = vsyncpa [#allocation4], 1

</llo_original>
